<compile_context>
chip_gen: v7x
topology: tpu7x:2x2x1
jax: 0.10.0
libtpu: 0.0.40
codegen_flags: <defaults>
</compile_context>

<pallas_src>
import functools
import math

import jax
import jax.numpy as jnp
from jax import lax
from jax.experimental import pallas as pl
from jax.experimental.pallas import tpu as pltpu

# Safe on every generation: v5e/v6e have 128 MiB physical VMEM, v7x has 64 MiB.
_VMEM_LIMIT = 32 * 1024 * 1024

# Tile targets (v7x-safe; also fine for v5e/v6e).
_TM, _TN, _TK = 256, 256, 512      # matmul tiles
_TQ, _TKV = 128, 256               # flash-attention tiles


def _pick_tile(dim, target, base):
    """Largest tile <= target that is a multiple of `base` and divides `dim`;
    falls back to the full dimension (always a legal block shape)."""
    if dim <= target:
        return dim
    t = (target // base) * base
    while t >= base:
        if dim % t == 0:
            return t
        t -= base
    return dim


def _gelu(y):
    # exact GELU (matches torch.nn.GELU default): 0.5*x*(1+erf(x/sqrt(2)))
    # TODO(synk): on v5e a tanh-approx GELU would move work to the EUP slot.
    return 0.5 * y * (1.0 + lax.erf(y * (1.0 / math.sqrt(2.0))))


# ----------------------------- linear kernels ------------------------------

def _linear_kernel(x_ref, w_ref, b_ref, o_ref, acc_ref, *, activation):
    @pl.when(pl.program_id(2) == 0)
    def _init():
        acc_ref[...] = jnp.zeros_like(acc_ref)

    acc_ref[...] += jnp.dot(x_ref[...], w_ref[...],
                            preferred_element_type=jnp.float32)

    @pl.when(pl.program_id(2) == pl.num_programs(2) - 1)
    def _finalize():
        y = acc_ref[...] + b_ref[...]
        if activation == "gelu":
            y = _gelu(y)
        o_ref[...] = y.astype(o_ref.dtype)


def linear(x2d, w, b, activation=None, out_dtype=jnp.float32):
    """y = act(x @ w + b).   x2d: [M, K]; w: [K, N]; b: [N]."""
    M, K = x2d.shape
    N = w.shape[1]
    tm = _pick_tile(M, _TM, 8)
    tn = _pick_tile(N, _TN, 128)
    tk = _pick_tile(K, _TK, 128)
    x2d = x2d.astype(jnp.bfloat16)      # bf16 MXU inputs, f32 accumulation
    w = w.astype(jnp.bfloat16)
    return pl.pallas_call(
        functools.partial(_linear_kernel, activation=activation),
        grid=(M // tm, N // tn, K // tk),
        in_specs=[
            pl.BlockSpec((tm, tk), lambda i, j, k: (i, k)),
            pl.BlockSpec((tk, tn), lambda i, j, k: (k, j)),
            pl.BlockSpec((1, tn), lambda i, j, k: (0, j)),
        ],
        out_specs=pl.BlockSpec((tm, tn), lambda i, j, k: (i, j)),
        out_shape=jax.ShapeDtypeStruct((M, N), out_dtype),
        scratch_shapes=[pltpu.VMEM((tm, tn), jnp.float32)],
        compiler_params=pltpu.CompilerParams(
            dimension_semantics=("parallel", "parallel", "arbitrary"),
            vmem_limit_bytes=_VMEM_LIMIT),
    )(x2d, w, b.reshape(1, N))


def _linear_add_ln_kernel(x_ref, w_ref, b_ref, r_ref, g_ref, bt_ref, o_ref,
                          acc_ref, *, eps):
    @pl.when(pl.program_id(1) == 0)
    def _init():
        acc_ref[...] = jnp.zeros_like(acc_ref)

    acc_ref[...] += jnp.dot(x_ref[...], w_ref[...],
                            preferred_element_type=jnp.float32)

    @pl.when(pl.program_id(1) == pl.num_programs(1) - 1)
    def _finalize():
        # LayerNorm(residual + x@W + b), biased variance (torch.nn.LayerNorm)
        y = acc_ref[...] + b_ref[...] + r_ref[...]
        mean = jnp.mean(y, axis=-1, keepdims=True)
        var = jnp.mean(jnp.square(y - mean), axis=-1, keepdims=True)
        o_ref[...] = (((y - mean) * lax.rsqrt(var + eps)) * g_ref[...]
                      + bt_ref[...]).astype(o_ref.dtype)


def linear_add_layernorm(x2d, w, b, residual2d, gamma, beta, eps):
    """LayerNorm(residual + x @ w + b) fused into the matmul epilogue (f32 out)."""
    M, K = x2d.shape
    N = w.shape[1]
    tm = _pick_tile(M, _TM, 8)
    tk = _pick_tile(K, _TK, 128)
    x2d = x2d.astype(jnp.bfloat16)
    w = w.astype(jnp.bfloat16)
    return pl.pallas_call(
        functools.partial(_linear_add_ln_kernel, eps=eps),
        grid=(M // tm, K // tk),
        in_specs=[
            pl.BlockSpec((tm, tk), lambda i, k: (i, k)),   # x
            pl.BlockSpec((tk, N), lambda i, k: (k, 0)),    # w
            pl.BlockSpec((1, N), lambda i, k: (0, 0)),     # bias
            pl.BlockSpec((tm, N), lambda i, k: (i, 0)),    # residual
            pl.BlockSpec((1, N), lambda i, k: (0, 0)),     # gamma
            pl.BlockSpec((1, N), lambda i, k: (0, 0)),     # beta
        ],
        out_specs=pl.BlockSpec((tm, N), lambda i, k: (i, 0)),
        out_shape=jax.ShapeDtypeStruct((M, N), jnp.float32),
        scratch_shapes=[pltpu.VMEM((tm, N), jnp.float32)],
        input_output_aliases={3: 0},   # reuse the residual buffer for the output
        compiler_params=pltpu.CompilerParams(
            dimension_semantics=("parallel", "arbitrary"),
            vmem_limit_bytes=_VMEM_LIMIT),
    )(x2d, w, b.reshape(1, N), residual2d, gamma.reshape(1, N),
      beta.reshape(1, N))


# ---------------------------- attention kernels -----------------------------

def _flash_attn_kernel(pad_ref, q_ref, k_ref, v_ref, o_ref,
                       m_scr, l_scr, acc_scr, *, scale, causal, tq, tk):
    ki = pl.program_id(2)

    @pl.when(ki == 0)
    def _init():
        m_scr[...] = jnp.full_like(m_scr, -jnp.inf)
        l_scr[...] = jnp.zeros_like(l_scr)
        acc_scr[...] = jnp.zeros_like(acc_scr)

    q = q_ref[0]                    # [H, tq, Dh]  bf16
    k = k_ref[0]                    # [H, tk, Dh]  bf16
    v = v_ref[0]                    # [H, tk, Dh]  bf16
    s = jnp.einsum("hqd,hkd->hqk", q, k,
                   preferred_element_type=jnp.float32) * scale

    neg = jnp.float32(-1e9)
    pad = pad_ref[0]                # [1, tk]  (1.0 = keep, 0.0 = masked)
    s = jnp.where(pad[None, :, :] == 0.0, neg, s)
    if causal:
        rows = pl.program_id(1) * tq + lax.broadcasted_iota(jnp.int32, (tq, tk), 0)
        cols = ki * tk + lax.broadcasted_iota(jnp.int32, (tq, tk), 1)
        s = jnp.where((cols > rows)[None, :, :], neg, s)

    m_prev = m_scr[...]
    m_new = jnp.maximum(m_prev, jnp.max(s, axis=-1, keepdims=True))
    alpha = jnp.exp(m_prev - m_new)
    p = jnp.exp(s - m_new)
    l_scr[...] = alpha * l_scr[...] + jnp.sum(p, axis=-1, keepdims=True)
    acc_scr[...] = alpha * acc_scr[...] + jnp.einsum(
        "hqk,hkd->hqd", p.astype(v.dtype), v, preferred_element_type=jnp.float32)
    m_scr[...] = m_new

    @pl.when(ki == pl.num_programs(2) - 1)
    def _finalize():
        inv = pl.reciprocal(l_scr[...], approx=True)
        o_ref[0] = (acc_scr[...] * inv).astype(o_ref.dtype)


def flash_attention(q, k, v, pad_b1k, scale, causal):
    """q,k,v: [B, H, S, Dh] bf16; pad_b1k: [B, 1, Sk].  No score materialization."""
    B, H, Sq, Dh = q.shape
    Sk = k.shape[2]
    tq = _pick_tile(Sq, _TQ, 8)
    tk = _pick_tile(Sk, _TKV, 128)
    return pl.pallas_call(
        functools.partial(_flash_attn_kernel, scale=scale, causal=causal,
                          tq=tq, tk=tk),
        grid=(B, Sq // tq, Sk // tk),
        in_specs=[
            pl.BlockSpec((1, 1, tk), lambda b, qi, ki: (b, 0, ki)),
            pl.BlockSpec((1, H, tq, Dh), lambda b, qi, ki: (b, 0, qi, 0)),
            pl.BlockSpec((1, H, tk, Dh), lambda b, qi, ki: (b, 0, ki, 0)),
            pl.BlockSpec((1, H, tk, Dh), lambda b, qi, ki: (b, 0, ki, 0)),
        ],
        out_specs=pl.BlockSpec((1, H, tq, Dh), lambda b, qi, ki: (b, 0, qi, 0)),
        out_shape=jax.ShapeDtypeStruct((B, H, Sq, Dh), jnp.bfloat16),
        scratch_shapes=[
            pltpu.VMEM((H, tq, 1), jnp.float32),    # running max
            pltpu.VMEM((H, tq, 1), jnp.float32),    # running denominator
            pltpu.VMEM((H, tq, Dh), jnp.float32),   # output accumulator
        ],
        compiler_params=pltpu.CompilerParams(
            dimension_semantics=("parallel", "parallel", "arbitrary"),
            vmem_limit_bytes=_VMEM_LIMIT),
    )(pad_b1k, q, k, v)


def _attn_scores_kernel(pad_ref, q_ref, k_ref, v_ref, o_ref, p_ref, *,
                        scale, causal):
    # Debug / spec-parity path: materializes the full [H, Sq, Sk] probabilities.
    q = q_ref[0]                    # [H, Sq, Dh]
    k = k_ref[0]
    v = v_ref[0]
    s = jnp.einsum("hqd,hkd->hqk", q, k,
                   preferred_element_type=jnp.float32) * scale
    neg = jnp.float32(-1e9)
    pad = pad_ref[0]                # [1, Sk]
    s = jnp.where(pad[None, :, :] == 0.0, neg, s)
    if causal:
        Sq, Sk = s.shape[1], s.shape[2]
        rows = lax.broadcasted_iota(jnp.int32, (Sq, Sk), 0)
        cols = lax.broadcasted_iota(jnp.int32, (Sq, Sk), 1)
        s = jnp.where((cols > rows)[None, :, :], neg, s)
    s = s - jnp.max(s, axis=-1, keepdims=True)
    e = jnp.exp(s)
    p = e / jnp.sum(e, axis=-1, keepdims=True)
    p_ref[0] = p.astype(p_ref.dtype)
    o_ref[0] = jnp.einsum("hqk,hkd->hqd", p.astype(v.dtype), v,
                          preferred_element_type=jnp.float32).astype(o_ref.dtype)


def attention_with_scores(q, k, v, pad_b1k, scale, causal):
    B, H, Sq, Dh = q.shape
    Sk = k.shape[2]
    return pl.pallas_call(
        functools.partial(_attn_scores_kernel, scale=scale, causal=causal),
        grid=(B,),
        in_specs=[
            pl.BlockSpec((1, 1, Sk), lambda b: (b, 0, 0)),
            pl.BlockSpec((1, H, Sq, Dh), lambda b: (b, 0, 0, 0)),
            pl.BlockSpec((1, H, Sk, Dh), lambda b: (b, 0, 0, 0)),
            pl.BlockSpec((1, H, Sk, Dh), lambda b: (b, 0, 0, 0)),
        ],
        out_specs=[
            pl.BlockSpec((1, H, Sq, Dh), lambda b: (b, 0, 0, 0)),
            pl.BlockSpec((1, H, Sq, Sk), lambda b: (b, 0, 0, 0)),
        ],
        out_shape=[
            jax.ShapeDtypeStruct((B, H, Sq, Dh), jnp.bfloat16),
            jax.ShapeDtypeStruct((B, H, Sq, Sk), jnp.float32),
        ],
        compiler_params=pltpu.CompilerParams(
            dimension_semantics=("parallel",),
            vmem_limit_bytes=_VMEM_LIMIT),
    )(pad_b1k, q, k, v)


# ------------------------------ model glue ---------------------------------

def multi_head_attention(x_q, x_kv, pad_b1k, p, num_heads, *, causal,
                         self_attention, return_scores):
    B, Sq, D = x_q.shape
    Sk = x_kv.shape[1]
    Dh = D // num_heads
    if self_attention:
        qkv = linear(x_q.reshape(B * Sq, D), p["wqkv"], p["bqkv"],
                     out_dtype=jnp.bfloat16)
        q, k, v = jnp.split(qkv, 3, axis=-1)
    else:
        q = linear(x_q.reshape(B * Sq, D), p["wq"], p["bq"],
                   out_dtype=jnp.bfloat16)
        kv = linear(x_kv.reshape(B * Sk, D), p["wkv"], p["bkv"],
                    out_dtype=jnp.bfloat16)
        k, v = jnp.split(kv, 2, axis=-1)
    q = q.reshape(B, Sq, num_heads, Dh).transpose(0, 2, 1, 3)
    k = k.reshape(B, Sk, num_heads, Dh).transpose(0, 2, 1, 3)
    v = v.reshape(B, Sk, num_heads, Dh).transpose(0, 2, 1, 3)
    scale = 1.0 / math.sqrt(Dh)
    if return_scores:
        ctx, probs = attention_with_scores(q, k, v, pad_b1k, scale, causal)
    else:
        ctx = flash_attention(q, k, v, pad_b1k, scale, causal)
        probs = None
    ctx = ctx.transpose(0, 2, 1, 3).reshape(B * Sq, D)
    return ctx, probs   # output projection is fused with add+LayerNorm outside


def encoder_layer(x, enc_pad_b1k, p, num_heads, return_scores):
    B, S, D = x.shape
    M = B * S
    ctx, scores = multi_head_attention(x, x, enc_pad_b1k, p["self_attn"],
                                       num_heads, causal=False,
                                       self_attention=True,
                                       return_scores=return_scores)
    x1 = linear_add_layernorm(ctx, p["self_attn"]["wo"], p["self_attn"]["bo"],
                              x.reshape(M, D), p["ln1_g"], p["ln1_b"], eps=1e-12)
    h = linear(x1, p["w1"], p["b1"], activation="gelu", out_dtype=jnp.bfloat16)
    x2 = linear_add_layernorm(h, p["w2"], p["b2"],
                              x1, p["ln2_g"], p["ln2_b"], eps=1e-12)
    return x2.reshape(B, S, D), scores


def decoder_layer(y, enc_out, dec_pad_b1k, enc_pad_b1k, p, num_heads,
                  return_scores):
    B, S, D = y.shape
    M = B * S
    ctx, s1 = multi_head_attention(y, y, dec_pad_b1k, p["self_attn"],
                                   num_heads, causal=True,
                                   self_attention=True,
                                   return_scores=return_scores)
    # spec: self_attn_layer_norm uses torch default eps=1e-5; other norms 1e-12.
    x1 = linear_add_layernorm(ctx, p["self_attn"]["wo"], p["self_attn"]["bo"],
                              y.reshape(M, D), p["ln1_g"], p["ln1_b"], eps=1e-5)
    x1_3d = x1.reshape(B, S, D)
    ctx2, s2 = multi_head_attention(x1_3d, enc_out, enc_pad_b1k,
                                    p["cross_attn"], num_heads, causal=False,
                                    self_attention=False,
                                    return_scores=return_scores)
    x2 = linear_add_layernorm(ctx2, p["cross_attn"]["wo"], p["cross_attn"]["bo"],
                              x1, p["ln2_g"], p["ln2_b"], eps=1e-12)
    h = linear(x2, p["w1"], p["b1"], activation="gelu", out_dtype=jnp.bfloat16)
    x3 = linear_add_layernorm(h, p["w2"], p["b2"],
                              x2, p["ln3_g"], p["ln3_b"], eps=1e-12)
    return x3.reshape(B, S, D), s1, s2


def transformer_forward(params, enc_input, dec_input, enc_pad_mask, num_heads,
                        return_attn_scores=True):
    B, Se, _ = enc_input.shape
    Sd = dec_input.shape[1]

    # padding mask as a tiny [B, 1, Sk] row (broadcast happens in-kernel);
    # look-ahead mask is generated in-kernel with iota (causal=True).
    enc_pad = enc_pad_mask.astype(jnp.float32).reshape(B, 1, Se)
    dec_all_ones = jnp.ones((B, 1, Sd), jnp.float32)

    x = enc_input
    enc_attn_scores = []
    for lp in params["encoder"]:
        x, s = encoder_layer(x, enc_pad, lp, num_heads, return_attn_scores)
        if return_attn_scores:
            enc_attn_scores.append(s)
    enc_output = x

    y = dec_input
    dec_attn_scores, dec_cross_attn_scores = [], []
    for lp in params["decoder"]:
        y, s1, s2 = decoder_layer(y, enc_output, dec_all_ones, enc_pad, lp,
                                  num_heads, return_attn_scores)
        if return_attn_scores:
            dec_attn_scores.append(s1)
            dec_cross_attn_scores.append(s2)

    return enc_output, y, enc_attn_scores, dec_attn_scores, dec_cross_attn_scores


# --------------------------- parameter creation -----------------------------

def init_params(key, num_layers, d_model, dff):
    def dense(k, din, dout, scale=0.02):
        w = scale * jax.random.normal(k, (din, dout), jnp.float32)
        b = jnp.zeros((dout,), jnp.float32)
        return w, b

    def self_attn_params(k, d):
        ks = jax.random.split(k, 2)
        wqkv, bqkv = dense(ks[0], d, 3 * d)        # fused Q|K|V projection
        wo, bo = dense(ks[1], d, d)
        return dict(wqkv=wqkv, bqkv=bqkv, wo=wo, bo=bo)

    def cross_attn_params(k, d):
        ks = jax.random.split(k, 3)
        wq, bq = dense(ks[0], d, d)
        wkv, bkv = dense(ks[1], d, 2 * d)          # fused K|V projection
        wo, bo = dense(ks[2], d, d)
        return dict(wq=wq, bq=bq, wkv=wkv, bkv=bkv, wo=wo, bo=bo)

    ones = lambda: jnp.ones((d_model,), jnp.float32)
    zeros = lambda: jnp.zeros((d_model,), jnp.float32)

    def enc_layer_params(k):
        ks = jax.random.split(k, 3)
        w1, b1 = dense(ks[1], d_model, dff)
        w2, b2 = dense(ks[2], dff, d_model)
        return dict(self_attn=self_attn_params(ks[0], d_model),
                    ln1_g=ones(), ln1_b=zeros(),
                    w1=w1, b1=b1, w2=w2, b2=b2,
                    ln2_g=ones(), ln2_b=zeros())

    def dec_layer_params(k):
        ks = jax.random.split(k, 4)
        w1, b1 = dense(ks[2], d_model, dff)
        w2, b2 = dense(ks[3], dff, d_model)
        return dict(self_attn=self_attn_params(ks[0], d_model),
                    cross_attn=cross_attn_params(ks[1], d_model),
                    ln1_g=ones(), ln1_b=zeros(),
                    ln2_g=ones(), ln2_b=zeros(),
                    w1=w1, b1=b1, w2=w2, b2=b2,
                    ln3_g=ones(), ln3_b=zeros())

    kenc, kdec = jax.random.split(key)
    enc = [enc_layer_params(k) for k in jax.random.split(kenc, num_layers)]
    dec = [dec_layer_params(k) for k in jax.random.split(kdec, num_layers)]
    return dict(encoder=enc, decoder=dec)


# ---------------------------------- main ------------------------------------

if __name__ == "__main__":
    num_layers, d_model, num_heads = 2, 32, 4
    dim_feedforward = 4 * d_model
    B, Se, Sd = 2, 8, 8

    key = jax.random.PRNGKey(0)
    k_params, k_enc, k_dec = jax.random.split(key, 3)
    params = init_params(k_params, num_layers, d_model, dim_feedforward)

    enc_input = jax.random.normal(k_enc, (B, Se, d_model), jnp.float32)
    dec_input = jax.random.normal(k_dec, (B, Sd, d_model), jnp.float32)
    # 1 = valid token, 0 = padding (last two encoder positions are padded)
    enc_pad_mask = jnp.concatenate(
        [jnp.ones((B, Se - 2), jnp.float32), jnp.zeros((B, 2), jnp.float32)],
        axis=1)

    # Spec-parity path: returns per-layer attention score tensors.
    fwd_full = jax.jit(functools.partial(transformer_forward,
                                         num_heads=num_heads,
                                         return_attn_scores=True))
    outs = fwd_full(params, enc_input, dec_input, enc_pad_mask)
    jax.block_until_ready(outs)
    enc_out, dec_out, enc_s, dec_s, cross_s = outs
    assert enc_out.shape == (B, Se, d_model)
    assert dec_out.shape == (B, Sd, d_model)
    assert len(enc_s) == num_layers and enc_s[0].shape == (B, num_heads, Se, Se)
    assert dec_s[0].shape == (B, num_heads, Sd, Sd)
    assert cross_s[0].shape == (B, num_heads, Sd, Se)
    assert bool(jnp.all(jnp.isfinite(dec_out)))

    # Production path: flash-style attention, no O(S^2) score output.
    fwd_flash = jax.jit(functools.partial(transformer_forward,
                                          num_heads=num_heads,
                                          return_attn_scores=False))
    outs2 = fwd_flash(params, enc_input, dec_input, enc_pad_mask)
    jax.block_until_ready(outs2)
    enc_out2, dec_out2 = outs2[0], outs2[1]
    assert enc_out2.shape == (B, Se, d_model)
    assert dec_out2.shape == (B, Sd, d_model)
    assert bool(jnp.all(jnp.isfinite(dec_out2)))
    # Both attention implementations must agree (bf16-level tolerance).
    assert float(jnp.max(jnp.abs(enc_out - enc_out2))) < 0.25
    assert float(jnp.max(jnp.abs(dec_out - dec_out2))) < 0.25

    print("KERNEL_OK")
</pallas_src>

<mosaic_0001>
module attributes {stable_mosaic.version = 11 : i64} {
  func.func @_linear_kernel(%arg0: i32, %arg1: i32, %arg2: i32, %arg3: memref<16x32xbf16, #tpu.memory_space<vmem>>, %arg4: memref<32x96xbf16, #tpu.memory_space<vmem>>, %arg5: memref<1x96xf32, #tpu.memory_space<vmem>>, %arg6: memref<16x96xbf16, #tpu.memory_space<vmem>>, %arg7: memref<16x96xf32, #tpu.memory_space<vmem>>) attributes {dimension_semantics = [#tpu.dimension_semantics<parallel>, #tpu.dimension_semantics<parallel>, #tpu.dimension_semantics<arbitrary>], iteration_bounds = array<i64: 1, 1, 1>, scalar_prefetch = 0 : i64, scratch_operands = 1 : i64, tpu.core_type = #tpu.core_type<tc>, window_params = [{transform_indices = @transform_0, window_bounds = array<i64: 16, 32>}, {transform_indices = @transform_1, window_bounds = array<i64: 32, 96>}, {transform_indices = @transform_2, window_bounds = array<i64: 1, 96>}, {transform_indices = @transform_3, window_bounds = array<i64: 16, 96>}]} {
    %c0_i32 = arith.constant 0 : i32
    %0 = arith.cmpi eq, %arg2, %c0_i32 : i32
    %1 = arith.extui %0 : i1 to i32
    %c0_i32_0 = arith.constant 0 : i32
    %2 = arith.cmpi ne, %1, %c0_i32_0 : i32
    scf.if %2 {
      %cst_10 = arith.constant 0.000000e+00 : f32
      %12 = vector.broadcast %cst_10 : f32 to vector<16x96xf32>
      %c0_11 = arith.constant 0 : index
      %c0_12 = arith.constant 0 : index
      %13 = vector.load %arg7[%c0_11, %c0_12] : memref<16x96xf32, #tpu.memory_space<vmem>>, vector<16x96xf32>
      tpu.vector_store %arg7[%c0_11, %c0_12], %12 {strides = array<i32>} : memref<16x96xf32, #tpu.memory_space<vmem>>, vector<16x96xf32>,
    } else {
    }
    %c0 = arith.constant 0 : index
    %c0_1 = arith.constant 0 : index
    %3 = vector.load %arg7[%c0, %c0_1] : memref<16x96xf32, #tpu.memory_space<vmem>>, vector<16x96xf32>
    %c0_2 = arith.constant 0 : index
    %c0_3 = arith.constant 0 : index
    %4 = vector.load %arg3[%c0_2, %c0_3] : memref<16x32xbf16, #tpu.memory_space<vmem>>, vector<16x32xbf16>
    %c0_4 = arith.constant 0 : index
    %c0_5 = arith.constant 0 : index
    %5 = vector.load %arg4[%c0_4, %c0_5] : memref<32x96xbf16, #tpu.memory_space<vmem>>, vector<32x96xbf16>
    %cst = arith.constant dense<0.000000e+00> : vector<16x96xf32>
    %6 = tpu.matmul %4, %5, %cst {dimension_numbers = #tpu.dot_dimension_numbers<[1], [0], [0], [1], [0, 0, 1, 1], [], []>} : vector<16x32xbf16>, vector<32x96xbf16>, vector<16x96xf32> -> vector<16x96xf32>
    %7 = arith.addf %3, %6 : vector<16x96xf32>
    %c0_6 = arith.constant 0 : index
    %c0_7 = arith.constant 0 : index
    %8 = vector.load %arg7[%c0_6, %c0_7] : memref<16x96xf32, #tpu.memory_space<vmem>>, vector<16x96xf32>
    tpu.vector_store %arg7[%c0_6, %c0_7], %7 {strides = array<i32>} : memref<16x96xf32, #tpu.memory_space<vmem>>, vector<16x96xf32>,
    %c0_i32_8 = arith.constant 0 : i32
    %9 = arith.cmpi eq, %arg2, %c0_i32_8 : i32
    %10 = arith.extui %9 : i1 to i32
    %c0_i32_9 = arith.constant 0 : i32
    %11 = arith.cmpi ne, %10, %c0_i32_9 : i32
    scf.if %11 {
      %c0_10 = arith.constant 0 : index
      %c0_11 = arith.constant 0 : index
      %12 = vector.load %arg7[%c0_10, %c0_11] : memref<16x96xf32, #tpu.memory_space<vmem>>, vector<16x96xf32>
      %c0_12 = arith.constant 0 : index
      %c0_13 = arith.constant 0 : index
      %13 = vector.load %arg5[%c0_12, %c0_13] : memref<1x96xf32, #tpu.memory_space<vmem>>, vector<1x96xf32>
      %14 = vector.broadcast %13 : vector<1x96xf32> to vector<16x96xf32>
      %15 = arith.addf %12, %14 : vector<16x96xf32>
      %16 = arith.truncf %15 : vector<16x96xf32> to vector<16x96xbf16>
      %c0_14 = arith.constant 0 : index
      %c0_15 = arith.constant 0 : index
      %17 = vector.load %arg6[%c0_14, %c0_15] : memref<16x96xbf16, #tpu.memory_space<vmem>>, vector<16x96xbf16>
      tpu.vector_store %arg6[%c0_14, %c0_15], %16 {strides = array<i32>} : memref<16x96xbf16, #tpu.memory_space<vmem>>, vector<16x96xbf16>,
    } else {
    }
    return
  }
  func.func @transform_0(%arg0: i32, %arg1: i32, %arg2: i32) -> (i32, i32) {
    %c0_i32 = arith.constant 0 : i32
    return %arg0, %arg2 : i32, i32
  }
  func.func @transform_1(%arg0: i32, %arg1: i32, %arg2: i32) -> (i32, i32) {
    %c0_i32 = arith.constant 0 : i32
    return %arg2, %arg1 : i32, i32
  }
  func.func @transform_2(%arg0: i32, %arg1: i32, %arg2: i32) -> (i32, i32) {
    %c0_i32 = arith.constant 0 : i32
    %c0_i32_0 = arith.constant 0 : i32
    return %c0_i32, %arg1 : i32, i32
  }
  func.func @transform_3(%arg0: i32, %arg1: i32, %arg2: i32) -> (i32, i32) {
    %c0_i32 = arith.constant 0 : i32
    return %arg0, %arg1 : i32, i32
  }
}

module attributes {stable_mosaic.version = 11 : i64} {
  func.func @_attn_scores_kernel(%arg0: i32, %arg1: memref<1x1x8xf32, #tpu.memory_space<vmem>>, %arg2: memref<1x4x8x8xbf16, #tpu.memory_space<vmem>>, %arg3: memref<1x4x8x8xbf16, #tpu.memory_space<vmem>>, %arg4: memref<1x4x8x8xbf16, #tpu.memory_space<vmem>>, %arg5: memref<1x4x8x8xbf16, #tpu.memory_space<vmem>>, %arg6: memref<1x4x8x8xf32, #tpu.memory_space<vmem>>) attributes {dimension_semantics = [#tpu.dimension_semantics<parallel>], iteration_bounds = array<i64: 2>, scalar_prefetch = 0 : i64, scratch_operands = 0 : i64, tpu.core_type = #tpu.core_type<tc>, window_params = [{transform_indices = @transform_0, window_bounds = array<i64: 1, 1, 8>}, {transform_indices = @transform_1, window_bounds = array<i64: 1, 4, 8, 8>}, {transform_indices = @transform_2, window_bounds = array<i64: 1, 4, 8, 8>}, {transform_indices = @transform_3, window_bounds = array<i64: 1, 4, 8, 8>}, {transform_indices = @transform_4, window_bounds = array<i64: 1, 4, 8, 8>}, {transform_indices = @transform_5, window_bounds = array<i64: 1, 4, 8, 8>}]} {
    %c0 = arith.constant 0 : index
    %c0_0 = arith.constant 0 : index
    %c0_1 = arith.constant 0 : index
    %c0_2 = arith.constant 0 : index
    %0 = vector.load %arg2[%c0, %c0_0, %c0_1, %c0_2] : memref<1x4x8x8xbf16, #tpu.memory_space<vmem>>, vector<1x4x8x8xbf16>
    %1 = vector.shape_cast %0 : vector<1x4x8x8xbf16> to vector<4x8x8xbf16>
    %c0_3 = arith.constant 0 : index
    %c0_4 = arith.constant 0 : index
    %c0_5 = arith.constant 0 : index
    %c0_6 = arith.constant 0 : index
    %2 = vector.load %arg3[%c0_3, %c0_4, %c0_5, %c0_6] : memref<1x4x8x8xbf16, #tpu.memory_space<vmem>>, vector<1x4x8x8xbf16>
    %3 = vector.shape_cast %2 : vector<1x4x8x8xbf16> to vector<4x8x8xbf16>
    %c0_7 = arith.constant 0 : index
    %c0_8 = arith.constant 0 : index
    %c0_9 = arith.constant 0 : index
    %c0_10 = arith.constant 0 : index
    %4 = vector.load %arg4[%c0_7, %c0_8, %c0_9, %c0_10] : memref<1x4x8x8xbf16, #tpu.memory_space<vmem>>, vector<1x4x8x8xbf16>
    %5 = vector.shape_cast %4 : vector<1x4x8x8xbf16> to vector<4x8x8xbf16>
    "tpu.trace_start"() <{level = 10 : i32, message = "hqd,hkd->hqk"}> : () -> ()
    %cst = arith.constant dense<0.000000e+00> : vector<4x8x8xf32>
    %6 = tpu.matmul %1, %3, %cst {dimension_numbers = #tpu.dot_dimension_numbers<[2], [2], [1], [1], [0, 0, 0, 1, 1, 1], [0], [0]>} : vector<4x8x8xbf16>, vector<4x8x8xbf16>, vector<4x8x8xf32> -> vector<4x8x8xf32>
    "tpu.trace_stop"() : () -> ()
    %cst_11 = arith.constant 0.353553385 : f32
    %7 = vector.broadcast %cst_11 : f32 to vector<4x8x8xf32>
    %8 = arith.mulf %6, %7 : vector<4x8x8xf32>
    %c0_12 = arith.constant 0 : index
    %c0_13 = arith.constant 0 : index
    %c0_14 = arith.constant 0 : index
    %9 = vector.load %arg1[%c0_12, %c0_13, %c0_14] : memref<1x1x8xf32, #tpu.memory_space<vmem>>, vector<1x1x8xf32>
    %10 = vector.shape_cast %9 : vector<1x1x8xf32> to vector<1x8xf32>
    %11 = vector.shape_cast %10 : vector<1x8xf32> to vector<1x1x8xf32>
    %cst_15 = arith.constant 0.000000e+00 : f32
    %12 = vector.broadcast %cst_15 : f32 to vector<1x1x8xf32>
    %13 = arith.cmpf oeq, %11, %12 : vector<1x1x8xf32>
    %cst_16 = arith.constant -1.000000e+09 : f32
    %14 = vector.shape_cast %13 : vector<1x1x8xi1> to vector<1x1x8xi1>
    %15 = vector.broadcast %14 : vector<1x1x8xi1> to vector<4x8x8xi1>
    %16 = vector.broadcast %cst_16 : f32 to vector<4x8x8xf32>
    %17 = arith.select %15, %16, %8 : vector<4x8x8xi1>, vector<4x8x8xf32>
    %cst_17 = arith.constant dense<0xFF800000> : vector<4x8xf32>
    %18 = vector.multi_reduction <maximumf>, %17, %cst_17 [2] : vector<4x8x8xf32> to vector<4x8xf32>
    %19 = vector.shape_cast %18 : vector<4x8xf32> to vector<4x8x1xf32>
    %20 = vector.broadcast %19 : vector<4x8x1xf32> to vector<4x8x8xf32>
    %21 = arith.subf %17, %20 : vector<4x8x8xf32>
    %22 = math.exp %21 : vector<4x8x8xf32>
    %cst_18 = arith.constant dense<0.000000e+00> : vector<4x8xf32>
    %23 = vector.multi_reduction <add>, %22, %cst_18 [2] : vector<4x8x8xf32> to vector<4x8xf32>
    %24 = vector.shape_cast %23 : vector<4x8xf32> to vector<4x8x1xf32>
    %25 = vector.broadcast %24 : vector<4x8x1xf32> to vector<4x8x8xf32>
    %26 = arith.divf %22, %25 : vector<4x8x8xf32>
    %c0_19 = arith.constant 0 : index
    %c0_20 = arith.constant 0 : index
    %c0_21 = arith.constant 0 : index
    %c0_22 = arith.constant 0 : index
    %27 = vector.load %arg6[%c0_19, %c0_20, %c0_21, %c0_22] : memref<1x4x8x8xf32, #tpu.memory_space<vmem>>, vector<1x4x8x8xf32>
    %28 = vector.shape_cast %27 : vector<1x4x8x8xf32> to vector<4x8x8xf32>
    %29 = vector.shape_cast %26 : vector<4x8x8xf32> to vector<1x4x8x8xf32>
    tpu.vector_store %arg6[%c0_19, %c0_20, %c0_21, %c0_22], %29 {strides = array<i32>} : memref<1x4x8x8xf32, #tpu.memory_space<vmem>>, vector<1x4x8x8xf32>,
    %30 = arith.truncf %26 : vector<4x8x8xf32> to vector<4x8x8xbf16>
    "tpu.trace_start"() <{level = 10 : i32, message = "hqk,hkd->hqd"}> : () -> ()
    %cst_23 = arith.constant dense<0.000000e+00> : vector<4x8x8xf32>
    %31 = tpu.matmul %30, %5, %cst_23 {dimension_numbers = #tpu.dot_dimension_numbers<[2], [1], [1], [2], [0, 0, 0, 1, 1, 2], [0], [0]>} : vector<4x8x8xbf16>, vector<4x8x8xbf16>, vector<4x8x8xf32> -> vector<4x8x8xf32>
    "tpu.trace_stop"() : () -> ()
    %32 = arith.truncf %31 : vector<4x8x8xf32> to vector<4x8x8xbf16>
    %c0_24 = arith.constant 0 : index
    %c0_25 = arith.constant 0 : index
    %c0_26 = arith.constant 0 : index
    %c0_27 = arith.constant 0 : index
    %33 = vector.load %arg5[%c0_24, %c0_25, %c0_26, %c0_27] : memref<1x4x8x8xbf16, #tpu.memory_space<vmem>>, vector<1x4x8x8xbf16>
    %34 = vector.shape_cast %33 : vector<1x4x8x8xbf16> to vector<4x8x8xbf16>
    %35 = vector.shape_cast %32 : vector<4x8x8xbf16> to vector<1x4x8x8xbf16>
    tpu.vector_store %arg5[%c0_24, %c0_25, %c0_26, %c0_27], %35 {strides = array<i32>} : memref<1x4x8x8xbf16, #tpu.memory_space<vmem>>, vector<1x4x8x8xbf16>,
    return
  }
  func.func @transform_0(%arg0: i32) -> (i32, i32, i32) {
    %c0_i32 = arith.constant 0 : i32
    %c0_i32_0 = arith.constant 0 : i32
    %c0_i32_1 = arith.constant 0 : i32
    return %arg0, %c0_i32, %c0_i32_0 : i32, i32, i32
  }
  func.func @transform_1(%arg0: i32) -> (i32, i32, i32, i32) {
    %c0_i32 = arith.constant 0 : i32
    %c0_i32_0 = arith.constant 0 : i32
    %c0_i32_1 = arith.constant 0 : i32
    %c0_i32_2 = arith.constant 0 : i32
    return %arg0, %c0_i32, %c0_i32_0, %c0_i32_1 : i32, i32, i32, i32
  }
  func.func @transform_2(%arg0: i32) -> (i32, i32, i32, i32) {
    %c0_i32 = arith.constant 0 : i32
    %c0_i32_0 = arith.constant 0 : i32
    %c0_i32_1 = arith.constant 0 : i32
    %c0_i32_2 = arith.constant 0 : i32
    return %arg0, %c0_i32, %c0_i32_0, %c0_i32_1 : i32, i32, i32, i32
  }
  func.func @transform_3(%arg0: i32) -> (i32, i32, i32, i32) {
    %c0_i32 = arith.constant 0 : i32
    %c0_i32_0 = arith.constant 0 : i32
    %c0_i32_1 = arith.constant 0 : i32
    %c0_i32_2 = arith.constant 0 : i32
    return %arg0, %c0_i32, %c0_i32_0, %c0_i32_1 : i32, i32, i32, i32
  }
  func.func @transform_4(%arg0: i32) -> (i32, i32, i32, i32) {
    %c0_i32 = arith.constant 0 : i32
    %c0_i32_0 = arith.constant 0 : i32
    %c0_i32_1 = arith.constant 0 : i32
    %c0_i32_2 = arith.constant 0 : i32
    return %arg0, %c0_i32, %c0_i32_0, %c0_i32_1 : i32, i32, i32, i32
  }
  func.func @transform_5(%arg0: i32) -> (i32, i32, i32, i32) {
    %c0_i32 = arith.constant 0 : i32
    %c0_i32_0 = arith.constant 0 : i32
    %c0_i32_1 = arith.constant 0 : i32
    %c0_i32_2 = arith.constant 0 : i32
    return %arg0, %c0_i32, %c0_i32_0, %c0_i32_1 : i32, i32, i32, i32
  }
}

module attributes {stable_mosaic.version = 11 : i64} {
  func.func @_linear_add_ln_kernel(%arg0: i32, %arg1: i32, %arg2: memref<16x32xbf16, #tpu.memory_space<vmem>>, %arg3: memref<32x32xbf16, #tpu.memory_space<vmem>>, %arg4: memref<1x32xf32, #tpu.memory_space<vmem>>, %arg5: memref<16x32xf32, #tpu.memory_space<vmem>>, %arg6: memref<1x32xf32, #tpu.memory_space<vmem>>, %arg7: memref<1x32xf32, #tpu.memory_space<vmem>>, %arg8: memref<16x32xf32, #tpu.memory_space<vmem>>, %arg9: memref<16x32xf32, #tpu.memory_space<vmem>>) attributes {dimension_semantics = [#tpu.dimension_semantics<parallel>, #tpu.dimension_semantics<arbitrary>], iteration_bounds = array<i64: 1, 1>, scalar_prefetch = 0 : i64, scratch_operands = 1 : i64, tpu.core_type = #tpu.core_type<tc>, window_params = [{transform_indices = @transform_0, window_bounds = array<i64: 16, 32>}, {transform_indices = @transform_1, window_bounds = array<i64: 32, 32>}, {pipeline_mode = #tpu.pipeline_mode<synchronous>, transform_indices = @transform_2, window_bounds = array<i64: 1, 32>}, {transform_indices = @transform_3, window_bounds = array<i64: 16, 32>}, {pipeline_mode = #tpu.pipeline_mode<synchronous>, transform_indices = @transform_4, window_bounds = array<i64: 1, 32>}, {pipeline_mode = #tpu.pipeline_mode<synchronous>, transform_indices = @transform_5, window_bounds = array<i64: 1, 32>}, {transform_indices = @transform_6, window_bounds = array<i64: 16, 32>}]} {
    %c0_i32 = arith.constant 0 : i32
    %0 = arith.cmpi eq, %arg1, %c0_i32 : i32
    %1 = arith.extui %0 : i1 to i32
    %c0_i32_0 = arith.constant 0 : i32
    %2 = arith.cmpi ne, %1, %c0_i32_0 : i32
    scf.if %2 {
      %cst_10 = arith.constant 0.000000e+00 : f32
      %12 = vector.broadcast %cst_10 : f32 to vector<16x32xf32>
      %c0_11 = arith.constant 0 : index
      %c0_12 = arith.constant 0 : index
      %13 = vector.load %arg9[%c0_11, %c0_12] : memref<16x32xf32, #tpu.memory_space<vmem>>, vector<16x32xf32>
      tpu.vector_store %arg9[%c0_11, %c0_12], %12 {strides = array<i32>} : memref<16x32xf32, #tpu.memory_space<vmem>>, vector<16x32xf32>,
    } else {
    }
    %c0 = arith.constant 0 : index
    %c0_1 = arith.constant 0 : index
    %3 = vector.load %arg9[%c0, %c0_1] : memref<16x32xf32, #tpu.memory_space<vmem>>, vector<16x32xf32>
    %c0_2 = arith.constant 0 : index
    %c0_3 = arith.constant 0 : index
    %4 = vector.load %arg2[%c0_2, %c0_3] : memref<16x32xbf16, #tpu.memory_space<vmem>>, vector<16x32xbf16>
    %c0_4 = arith.constant 0 : index
    %c0_5 = arith.constant 0 : index
    %5 = vector.load %arg3[%c0_4, %c0_5] : memref<32x32xbf16, #tpu.memory_space<vmem>>, vector<32x32xbf16>
    %cst = arith.constant dense<0.000000e+00> : vector<16x32xf32>
    %6 = tpu.matmul %4, %5, %cst {dimension_numbers = #tpu.dot_dimension_numbers<[1], [0], [0], [1], [0, 0, 1, 1], [], []>} : vector<16x32xbf16>, vector<32x32xbf16>, vector<16x32xf32> -> vector<16x32xf32>
    %7 = arith.addf %3, %6 : vector<16x32xf32>
    %c0_6 = arith.constant 0 : index
    %c0_7 = arith.constant 0 : index
    %8 = vector.load %arg9[%c0_6, %c0_7] : memref<16x32xf32, #tpu.memory_space<vmem>>, vector<16x32xf32>
    tpu.vector_store %arg9[%c0_6, %c0_7], %7 {strides = array<i32>} : memref<16x32xf32, #tpu.memory_space<vmem>>, vector<16x32xf32>,
    %c0_i32_8 = arith.constant 0 : i32
    %9 = arith.cmpi eq, %arg1, %c0_i32_8 : i32
    %10 = arith.extui %9 : i1 to i32
    %c0_i32_9 = arith.constant 0 : i32
    %11 = arith.cmpi ne, %10, %c0_i32_9 : i32
    scf.if %11 {
      %c0_10 = arith.constant 0 : index
      %c0_11 = arith.constant 0 : index
      %12 = vector.load %arg9[%c0_10, %c0_11] : memref<16x32xf32, #tpu.memory_space<vmem>>, vector<16x32xf32>
      %c0_12 = arith.constant 0 : index
      %c0_13 = arith.constant 0 : index
      %13 = vector.load %arg4[%c0_12, %c0_13] : memref<1x32xf32, #tpu.memory_space<vmem>>, vector<1x32xf32>
      %14 = vector.broadcast %13 : vector<1x32xf32> to vector<16x32xf32>
      %15 = arith.addf %12, %14 : vector<16x32xf32>
      %c0_14 = arith.constant 0 : index
      %c0_15 = arith.constant 0 : index
      %16 = vector.load %arg5[%c0_14, %c0_15] : memref<16x32xf32, #tpu.memory_space<vmem>>, vector<16x32xf32>
      %17 = arith.addf %15, %16 : vector<16x32xf32>
      %cst_16 = arith.constant dense<0.000000e+00> : vector<16xf32>
      %18 = vector.multi_reduction <add>, %17, %cst_16 [1] : vector<16x32xf32> to vector<16xf32>
      %19 = vector.shape_cast %18 : vector<16xf32> to vector<16x1xf32>
      %cst_17 = arith.constant 3.200000e+01 : f32
      %20 = vector.broadcast %cst_17 : f32 to vector<16x1xf32>
      %21 = arith.divf %19, %20 : vector<16x1xf32>
      %22 = vector.broadcast %21 : vector<16x1xf32> to vector<16x32xf32>
      %23 = arith.subf %17, %22 : vector<16x32xf32>
      %24 = arith.mulf %23, %23 : vector<16x32xf32>
      %cst_18 = arith.constant dense<0.000000e+00> : vector<16xf32>
      %25 = vector.multi_reduction <add>, %24, %cst_18 [1] : vector<16x32xf32> to vector<16xf32>
      %26 = vector.shape_cast %25 : vector<16xf32> to vector<16x1xf32>
      %cst_19 = arith.constant 3.200000e+01 : f32
      %27 = vector.broadcast %cst_19 : f32 to vector<16x1xf32>
      %28 = arith.divf %26, %27 : vector<16x1xf32>
      %29 = vector.broadcast %21 : vector<16x1xf32> to vector<16x32xf32>
      %30 = arith.subf %17, %29 : vector<16x32xf32>
      %cst_20 = arith.constant 9.99999996E-13 : f32
      %31 = vector.broadcast %cst_20 : f32 to vector<16x1xf32>
      %32 = arith.addf %28, %31 : vector<16x1xf32>
      %33 = math.rsqrt %32 : vector<16x1xf32>
      %34 = vector.broadcast %33 : vector<16x1xf32> to vector<16x32xf32>
      %35 = arith.mulf %30, %34 : vector<16x32xf32>
      %c0_21 = arith.constant 0 : index
      %c0_22 = arith.constant 0 : index
      %36 = vector.load %arg6[%c0_21, %c0_22] : memref<1x32xf32, #tpu.memory_space<vmem>>, vector<1x32xf32>
      %37 = vector.broadcast %36 : vector<1x32xf32> to vector<16x32xf32>
      %38 = arith.mulf %35, %37 : vector<16x32xf32>
      %c0_23 = arith.constant 0 : index
      %c0_24 = arith.constant 0 : index
      %39 = vector.load %arg7[%c0_23, %c0_24] : memref<1x32xf32, #tpu.memory_space<vmem>>, vector<1x32xf32>
      %40 = vector.broadcast %39 : vector<1x32xf32> to vector<16x32xf32>
      %41 = arith.addf %38, %40 : vector<16x32xf32>
      %c0_25 = arith.constant 0 : index
      %c0_26 = arith.constant 0 : index
      %42 = vector.load %arg8[%c0_25, %c0_26] : memref<16x32xf32, #tpu.memory_space<vmem>>, vector<16x32xf32>
      tpu.vector_store %arg8[%c0_25, %c0_26], %41 {strides = array<i32>} : memref<16x32xf32, #tpu.memory_space<vmem>>, vector<16x32xf32>,
    } else {
    }
    return
  }
  func.func @transform_0(%arg0: i32, %arg1: i32) -> (i32, i32) {
    %c0_i32 = arith.constant 0 : i32
    return %arg0, %arg1 : i32, i32
  }
  func.func @transform_1(%arg0: i32, %arg1: i32) -> (i32, i32) {
    %c0_i32 = arith.constant 0 : i32
    %c0_i32_0 = arith.constant 0 : i32
    return %arg1, %c0_i32 : i32, i32
  }
  func.func @transform_2(%arg0: i32, %arg1: i32) -> (i32, i32) {
    %c0_i32 = arith.constant 0 : i32
    %c0_i32_0 = arith.constant 0 : i32
    %c0_i32_1 = arith.constant 0 : i32
    return %c0_i32, %c0_i32_0 : i32, i32
  }
  func.func @transform_3(%arg0: i32, %arg1: i32) -> (i32, i32) {
    %c0_i32 = arith.constant 0 : i32
    %c0_i32_0 = arith.constant 0 : i32
    return %arg0, %c0_i32 : i32, i32
  }
  func.func @transform_4(%arg0: i32, %arg1: i32) -> (i32, i32) {
    %c0_i32 = arith.constant 0 : i32
    %c0_i32_0 = arith.constant 0 : i32
    %c0_i32_1 = arith.constant 0 : i32
    return %c0_i32, %c0_i32_0 : i32, i32
  }
  func.func @transform_5(%arg0: i32, %arg1: i32) -> (i32, i32) {
    %c0_i32 = arith.constant 0 : i32
    %c0_i32_0 = arith.constant 0 : i32
    %c0_i32_1 = arith.constant 0 : i32
    return %c0_i32, %c0_i32_0 : i32, i32
  }
  func.func @transform_6(%arg0: i32, %arg1: i32) -> (i32, i32) {
    %c0_i32 = arith.constant 0 : i32
    %c0_i32_0 = arith.constant 0 : i32
    return %arg0, %c0_i32 : i32, i32
  }
}

module attributes {stable_mosaic.version = 11 : i64} {
  func.func @_linear_kernel(%arg0: i32, %arg1: i32, %arg2: i32, %arg3: memref<16x32xbf16, #tpu.memory_space<vmem>>, %arg4: memref<32x128xbf16, #tpu.memory_space<vmem>>, %arg5: memref<1x128xf32, #tpu.memory_space<vmem>>, %arg6: memref<16x128xbf16, #tpu.memory_space<vmem>>, %arg7: memref<16x128xf32, #tpu.memory_space<vmem>>) attributes {dimension_semantics = [#tpu.dimension_semantics<parallel>, #tpu.dimension_semantics<parallel>, #tpu.dimension_semantics<arbitrary>], iteration_bounds = array<i64: 1, 1, 1>, scalar_prefetch = 0 : i64, scratch_operands = 1 : i64, tpu.core_type = #tpu.core_type<tc>, window_params = [{transform_indices = @transform_0, window_bounds = array<i64: 16, 32>}, {transform_indices = @transform_1, window_bounds = array<i64: 32, 128>}, {transform_indices = @transform_2, window_bounds = array<i64: 1, 128>}, {transform_indices = @transform_3, window_bounds = array<i64: 16, 128>}]} {
    %c0_i32 = arith.constant 0 : i32
    %0 = arith.cmpi eq, %arg2, %c0_i32 : i32
    %1 = arith.extui %0 : i1 to i32
    %c0_i32_0 = arith.constant 0 : i32
    %2 = arith.cmpi ne, %1, %c0_i32_0 : i32
    scf.if %2 {
      %cst_10 = arith.constant 0.000000e+00 : f32
      %12 = vector.broadcast %cst_10 : f32 to vector<16x128xf32>
      %c0_11 = arith.constant 0 : index
      %c0_12 = arith.constant 0 : index
      %13 = vector.load %arg7[%c0_11, %c0_12] : memref<16x128xf32, #tpu.memory_space<vmem>>, vector<16x128xf32>
      tpu.vector_store %arg7[%c0_11, %c0_12], %12 {strides = array<i32>} : memref<16x128xf32, #tpu.memory_space<vmem>>, vector<16x128xf32>,
    } else {
    }
    %c0 = arith.constant 0 : index
    %c0_1 = arith.constant 0 : index
    %3 = vector.load %arg7[%c0, %c0_1] : memref<16x128xf32, #tpu.memory_space<vmem>>, vector<16x128xf32>
    %c0_2 = arith.constant 0 : index
    %c0_3 = arith.constant 0 : index
    %4 = vector.load %arg3[%c0_2, %c0_3] : memref<16x32xbf16, #tpu.memory_space<vmem>>, vector<16x32xbf16>
    %c0_4 = arith.constant 0 : index
    %c0_5 = arith.constant 0 : index
    %5 = vector.load %arg4[%c0_4, %c0_5] : memref<32x128xbf16, #tpu.memory_space<vmem>>, vector<32x128xbf16>
    %cst = arith.constant dense<0.000000e+00> : vector<16x128xf32>
    %6 = tpu.matmul %4, %5, %cst {dimension_numbers = #tpu.dot_dimension_numbers<[1], [0], [0], [1], [0, 0, 1, 1], [], []>} : vector<16x32xbf16>, vector<32x128xbf16>, vector<16x128xf32> -> vector<16x128xf32>
    %7 = arith.addf %3, %6 : vector<16x128xf32>
    %c0_6 = arith.constant 0 : index
    %c0_7 = arith.constant 0 : index
    %8 = vector.load %arg7[%c0_6, %c0_7] : memref<16x128xf32, #tpu.memory_space<vmem>>, vector<16x128xf32>
    tpu.vector_store %arg7[%c0_6, %c0_7], %7 {strides = array<i32>} : memref<16x128xf32, #tpu.memory_space<vmem>>, vector<16x128xf32>,
    %c0_i32_8 = arith.constant 0 : i32
    %9 = arith.cmpi eq, %arg2, %c0_i32_8 : i32
    %10 = arith.extui %9 : i1 to i32
    %c0_i32_9 = arith.constant 0 : i32
    %11 = arith.cmpi ne, %10, %c0_i32_9 : i32
    scf.if %11 {
      %c0_10 = arith.constant 0 : index
      %c0_11 = arith.constant 0 : index
      %12 = vector.load %arg7[%c0_10, %c0_11] : memref<16x128xf32, #tpu.memory_space<vmem>>, vector<16x128xf32>
      %c0_12 = arith.constant 0 : index
      %c0_13 = arith.constant 0 : index
      %13 = vector.load %arg5[%c0_12, %c0_13] : memref<1x128xf32, #tpu.memory_space<vmem>>, vector<1x128xf32>
      %14 = vector.broadcast %13 : vector<1x128xf32> to vector<16x128xf32>
      %15 = arith.addf %12, %14 : vector<16x128xf32>
      %cst_14 = arith.constant 5.000000e-01 : f32
      %16 = vector.broadcast %cst_14 : f32 to vector<16x128xf32>
      %17 = arith.mulf %16, %15 : vector<16x128xf32>
      %cst_15 = arith.constant 0.707106769 : f32
      %18 = vector.broadcast %cst_15 : f32 to vector<16x128xf32>
      %19 = arith.mulf %15, %18 : vector<16x128xf32>
      %20 = math.erf %19 : vector<16x128xf32>
      %cst_16 = arith.constant 1.000000e+00 : f32
      %21 = vector.broadcast %cst_16 : f32 to vector<16x128xf32>
      %22 = arith.addf %21, %20 : vector<16x128xf32>
      %23 = arith.mulf %17, %22 : vector<16x128xf32>
      %24 = arith.truncf %23 : vector<16x128xf32> to vector<16x128xbf16>
      %c0_17 = arith.constant 0 : index
      %c0_18 = arith.constant 0 : index
      %25 = vector.load %arg6[%c0_17, %c0_18] : memref<16x128xbf16, #tpu.memory_space<vmem>>, vector<16x128xbf16>
      tpu.vector_store %arg6[%c0_17, %c0_18], %24 {strides = array<i32>} : memref<16x128xbf16, #tpu.memory_space<vmem>>, vector<16x128xbf16>,
    } else {
    }
    return
  }
  func.func @transform_0(%arg0: i32, %arg1: i32, %arg2: i32) -> (i32, i32) {
    %c0_i32 = arith.constant 0 : i32
    return %arg0, %arg2 : i32, i32
  }
  func.func @transform_1(%arg0: i32, %arg1: i32, %arg2: i32) -> (i32, i32) {
    %c0_i32 = arith.constant 0 : i32
    return %arg2, %arg1 : i32, i32
  }
  func.func @transform_2(%arg0: i32, %arg1: i32, %arg2: i32) -> (i32, i32) {
    %c0_i32 = arith.constant 0 : i32
    %c0_i32_0 = arith.constant 0 : i32
    return %c0_i32, %arg1 : i32, i32
  }
  func.func @transform_3(%arg0: i32, %arg1: i32, %arg2: i32) -> (i32, i32) {
    %c0_i32 = arith.constant 0 : i32
    return %arg0, %arg1 : i32, i32
  }
}

module attributes {stable_mosaic.version = 11 : i64} {
  func.func @_linear_add_ln_kernel(%arg0: i32, %arg1: i32, %arg2: memref<16x128xbf16, #tpu.memory_space<vmem>>, %arg3: memref<128x32xbf16, #tpu.memory_space<vmem>>, %arg4: memref<1x32xf32, #tpu.memory_space<vmem>>, %arg5: memref<16x32xf32, #tpu.memory_space<vmem>>, %arg6: memref<1x32xf32, #tpu.memory_space<vmem>>, %arg7: memref<1x32xf32, #tpu.memory_space<vmem>>, %arg8: memref<16x32xf32, #tpu.memory_space<vmem>>, %arg9: memref<16x32xf32, #tpu.memory_space<vmem>>) attributes {dimension_semantics = [#tpu.dimension_semantics<parallel>, #tpu.dimension_semantics<arbitrary>], iteration_bounds = array<i64: 1, 1>, scalar_prefetch = 0 : i64, scratch_operands = 1 : i64, tpu.core_type = #tpu.core_type<tc>, window_params = [{transform_indices = @transform_0, window_bounds = array<i64: 16, 128>}, {transform_indices = @transform_1, window_bounds = array<i64: 128, 32>}, {pipeline_mode = #tpu.pipeline_mode<synchronous>, transform_indices = @transform_2, window_bounds = array<i64: 1, 32>}, {transform_indices = @transform_3, window_bounds = array<i64: 16, 32>}, {pipeline_mode = #tpu.pipeline_mode<synchronous>, transform_indices = @transform_4, window_bounds = array<i64: 1, 32>}, {pipeline_mode = #tpu.pipeline_mode<synchronous>, transform_indices = @transform_5, window_bounds = array<i64: 1, 32>}, {transform_indices = @transform_6, window_bounds = array<i64: 16, 32>}]} {
    %c0_i32 = arith.constant 0 : i32
    %0 = arith.cmpi eq, %arg1, %c0_i32 : i32
    %1 = arith.extui %0 : i1 to i32
    %c0_i32_0 = arith.constant 0 : i32
    %2 = arith.cmpi ne, %1, %c0_i32_0 : i32
    scf.if %2 {
      %cst_10 = arith.constant 0.000000e+00 : f32
      %12 = vector.broadcast %cst_10 : f32 to vector<16x32xf32>
      %c0_11 = arith.constant 0 : index
      %c0_12 = arith.constant 0 : index
      %13 = vector.load %arg9[%c0_11, %c0_12] : memref<16x32xf32, #tpu.memory_space<vmem>>, vector<16x32xf32>
      tpu.vector_store %arg9[%c0_11, %c0_12], %12 {strides = array<i32>} : memref<16x32xf32, #tpu.memory_space<vmem>>, vector<16x32xf32>,
    } else {
    }
    %c0 = arith.constant 0 : index
    %c0_1 = arith.constant 0 : index
    %3 = vector.load %arg9[%c0, %c0_1] : memref<16x32xf32, #tpu.memory_space<vmem>>, vector<16x32xf32>
    %c0_2 = arith.constant 0 : index
    %c0_3 = arith.constant 0 : index
    %4 = vector.load %arg2[%c0_2, %c0_3] : memref<16x128xbf16, #tpu.memory_space<vmem>>, vector<16x128xbf16>
    %c0_4 = arith.constant 0 : index
    %c0_5 = arith.constant 0 : index
    %5 = vector.load %arg3[%c0_4, %c0_5] : memref<128x32xbf16, #tpu.memory_space<vmem>>, vector<128x32xbf16>
    %cst = arith.constant dense<0.000000e+00> : vector<16x32xf32>
    %6 = tpu.matmul %4, %5, %cst {dimension_numbers = #tpu.dot_dimension_numbers<[1], [0], [0], [1], [0, 0, 1, 1], [], []>} : vector<16x128xbf16>, vector<128x32xbf16>, vector<16x32xf32> -> vector<16x32xf32>
    %7 = arith.addf %3, %6 : vector<16x32xf32>
    %c0_6 = arith.constant 0 : index
    %c0_7 = arith.constant 0 : index
    %8 = vector.load %arg9[%c0_6, %c0_7] : memref<16x32xf32, #tpu.memory_space<vmem>>, vector<16x32xf32>
    tpu.vector_store %arg9[%c0_6, %c0_7], %7 {strides = array<i32>} : memref<16x32xf32, #tpu.memory_space<vmem>>, vector<16x32xf32>,
    %c0_i32_8 = arith.constant 0 : i32
    %9 = arith.cmpi eq, %arg1, %c0_i32_8 : i32
    %10 = arith.extui %9 : i1 to i32
    %c0_i32_9 = arith.constant 0 : i32
    %11 = arith.cmpi ne, %10, %c0_i32_9 : i32
    scf.if %11 {
      %c0_10 = arith.constant 0 : index
      %c0_11 = arith.constant 0 : index
      %12 = vector.load %arg9[%c0_10, %c0_11] : memref<16x32xf32, #tpu.memory_space<vmem>>, vector<16x32xf32>
      %c0_12 = arith.constant 0 : index
      %c0_13 = arith.constant 0 : index
      %13 = vector.load %arg4[%c0_12, %c0_13] : memref<1x32xf32, #tpu.memory_space<vmem>>, vector<1x32xf32>
      %14 = vector.broadcast %13 : vector<1x32xf32> to vector<16x32xf32>
      %15 = arith.addf %12, %14 : vector<16x32xf32>
      %c0_14 = arith.constant 0 : index
      %c0_15 = arith.constant 0 : index
      %16 = vector.load %arg5[%c0_14, %c0_15] : memref<16x32xf32, #tpu.memory_space<vmem>>, vector<16x32xf32>
      %17 = arith.addf %15, %16 : vector<16x32xf32>
      %cst_16 = arith.constant dense<0.000000e+00> : vector<16xf32>
      %18 = vector.multi_reduction <add>, %17, %cst_16 [1] : vector<16x32xf32> to vector<16xf32>
      %19 = vector.shape_cast %18 : vector<16xf32> to vector<16x1xf32>
      %cst_17 = arith.constant 3.200000e+01 : f32
      %20 = vector.broadcast %cst_17 : f32 to vector<16x1xf32>
      %21 = arith.divf %19, %20 : vector<16x1xf32>
      %22 = vector.broadcast %21 : vector<16x1xf32> to vector<16x32xf32>
      %23 = arith.subf %17, %22 : vector<16x32xf32>
      %24 = arith.mulf %23, %23 : vector<16x32xf32>
      %cst_18 = arith.constant dense<0.000000e+00> : vector<16xf32>
      %25 = vector.multi_reduction <add>, %24, %cst_18 [1] : vector<16x32xf32> to vector<16xf32>
      %26 = vector.shape_cast %25 : vector<16xf32> to vector<16x1xf32>
      %cst_19 = arith.constant 3.200000e+01 : f32
      %27 = vector.broadcast %cst_19 : f32 to vector<16x1xf32>
      %28 = arith.divf %26, %27 : vector<16x1xf32>
      %29 = vector.broadcast %21 : vector<16x1xf32> to vector<16x32xf32>
      %30 = arith.subf %17, %29 : vector<16x32xf32>
      %cst_20 = arith.constant 9.99999996E-13 : f32
      %31 = vector.broadcast %cst_20 : f32 to vector<16x1xf32>
      %32 = arith.addf %28, %31 : vector<16x1xf32>
      %33 = math.rsqrt %32 : vector<16x1xf32>
      %34 = vector.broadcast %33 : vector<16x1xf32> to vector<16x32xf32>
      %35 = arith.mulf %30, %34 : vector<16x32xf32>
      %c0_21 = arith.constant 0 : index
      %c0_22 = arith.constant 0 : index
      %36 = vector.load %arg6[%c0_21, %c0_22] : memref<1x32xf32, #tpu.memory_space<vmem>>, vector<1x32xf32>
      %37 = vector.broadcast %36 : vector<1x32xf32> to vector<16x32xf32>
      %38 = arith.mulf %35, %37 : vector<16x32xf32>
      %c0_23 = arith.constant 0 : index
      %c0_24 = arith.constant 0 : index
      %39 = vector.load %arg7[%c0_23, %c0_24] : memref<1x32xf32, #tpu.memory_space<vmem>>, vector<1x32xf32>
      %40 = vector.broadcast %39 : vector<1x32xf32> to vector<16x32xf32>
      %41 = arith.addf %38, %40 : vector<16x32xf32>
      %c0_25 = arith.constant 0 : index
      %c0_26 = arith.constant 0 : index
      %42 = vector.load %arg8[%c0_25, %c0_26] : memref<16x32xf32, #tpu.memory_space<vmem>>, vector<16x32xf32>
      tpu.vector_store %arg8[%c0_25, %c0_26], %41 {strides = array<i32>} : memref<16x32xf32, #tpu.memory_space<vmem>>, vector<16x32xf32>,
    } else {
    }
    return
  }
  func.func @transform_0(%arg0: i32, %arg1: i32) -> (i32, i32) {
    %c0_i32 = arith.constant 0 : i32
    return %arg0, %arg1 : i32, i32
  }
  func.func @transform_1(%arg0: i32, %arg1: i32) -> (i32, i32) {
    %c0_i32 = arith.constant 0 : i32
    %c0_i32_0 = arith.constant 0 : i32
    return %arg1, %c0_i32 : i32, i32
  }
  func.func @transform_2(%arg0: i32, %arg1: i32) -> (i32, i32) {
    %c0_i32 = arith.constant 0 : i32
    %c0_i32_0 = arith.constant 0 : i32
    %c0_i32_1 = arith.constant 0 : i32
    return %c0_i32, %c0_i32_0 : i32, i32
  }
  func.func @transform_3(%arg0: i32, %arg1: i32) -> (i32, i32) {
    %c0_i32 = arith.constant 0 : i32
    %c0_i32_0 = arith.constant 0 : i32
    return %arg0, %c0_i32 : i32, i32
  }
  func.func @transform_4(%arg0: i32, %arg1: i32) -> (i32, i32) {
    %c0_i32 = arith.constant 0 : i32
    %c0_i32_0 = arith.constant 0 : i32
    %c0_i32_1 = arith.constant 0 : i32
    return %c0_i32, %c0_i32_0 : i32, i32
  }
  func.func @transform_5(%arg0: i32, %arg1: i32) -> (i32, i32) {
    %c0_i32 = arith.constant 0 : i32
    %c0_i32_0 = arith.constant 0 : i32
    %c0_i32_1 = arith.constant 0 : i32
    return %c0_i32, %c0_i32_0 : i32, i32
  }
  func.func @transform_6(%arg0: i32, %arg1: i32) -> (i32, i32) {
    %c0_i32 = arith.constant 0 : i32
    %c0_i32_0 = arith.constant 0 : i32
    return %arg0, %c0_i32 : i32, i32
  }
}

module attributes {stable_mosaic.version = 11 : i64} {
  func.func @_linear_kernel(%arg0: i32, %arg1: i32, %arg2: i32, %arg3: memref<16x32xbf16, #tpu.memory_space<vmem>>, %arg4: memref<32x64xbf16, #tpu.memory_space<vmem>>, %arg5: memref<1x64xf32, #tpu.memory_space<vmem>>, %arg6: memref<16x64xbf16, #tpu.memory_space<vmem>>, %arg7: memref<16x64xf32, #tpu.memory_space<vmem>>) attributes {dimension_semantics = [#tpu.dimension_semantics<parallel>, #tpu.dimension_semantics<parallel>, #tpu.dimension_semantics<arbitrary>], iteration_bounds = array<i64: 1, 1, 1>, scalar_prefetch = 0 : i64, scratch_operands = 1 : i64, tpu.core_type = #tpu.core_type<tc>, window_params = [{transform_indices = @transform_0, window_bounds = array<i64: 16, 32>}, {transform_indices = @transform_1, window_bounds = array<i64: 32, 64>}, {transform_indices = @transform_2, window_bounds = array<i64: 1, 64>}, {transform_indices = @transform_3, window_bounds = array<i64: 16, 64>}]} {
    %c0_i32 = arith.constant 0 : i32
    %0 = arith.cmpi eq, %arg2, %c0_i32 : i32
    %1 = arith.extui %0 : i1 to i32
    %c0_i32_0 = arith.constant 0 : i32
    %2 = arith.cmpi ne, %1, %c0_i32_0 : i32
    scf.if %2 {
      %cst_10 = arith.constant 0.000000e+00 : f32
      %12 = vector.broadcast %cst_10 : f32 to vector<16x64xf32>
      %c0_11 = arith.constant 0 : index
      %c0_12 = arith.constant 0 : index
      %13 = vector.load %arg7[%c0_11, %c0_12] : memref<16x64xf32, #tpu.memory_space<vmem>>, vector<16x64xf32>
      tpu.vector_store %arg7[%c0_11, %c0_12], %12 {strides = array<i32>} : memref<16x64xf32, #tpu.memory_space<vmem>>, vector<16x64xf32>,
    } else {
    }
    %c0 = arith.constant 0 : index
    %c0_1 = arith.constant 0 : index
    %3 = vector.load %arg7[%c0, %c0_1] : memref<16x64xf32, #tpu.memory_space<vmem>>, vector<16x64xf32>
    %c0_2 = arith.constant 0 : index
    %c0_3 = arith.constant 0 : index
    %4 = vector.load %arg3[%c0_2, %c0_3] : memref<16x32xbf16, #tpu.memory_space<vmem>>, vector<16x32xbf16>
    %c0_4 = arith.constant 0 : index
    %c0_5 = arith.constant 0 : index
    %5 = vector.load %arg4[%c0_4, %c0_5] : memref<32x64xbf16, #tpu.memory_space<vmem>>, vector<32x64xbf16>
    %cst = arith.constant dense<0.000000e+00> : vector<16x64xf32>
    %6 = tpu.matmul %4, %5, %cst {dimension_numbers = #tpu.dot_dimension_numbers<[1], [0], [0], [1], [0, 0, 1, 1], [], []>} : vector<16x32xbf16>, vector<32x64xbf16>, vector<16x64xf32> -> vector<16x64xf32>
    %7 = arith.addf %3, %6 : vector<16x64xf32>
    %c0_6 = arith.constant 0 : index
    %c0_7 = arith.constant 0 : index
    %8 = vector.load %arg7[%c0_6, %c0_7] : memref<16x64xf32, #tpu.memory_space<vmem>>, vector<16x64xf32>
    tpu.vector_store %arg7[%c0_6, %c0_7], %7 {strides = array<i32>} : memref<16x64xf32, #tpu.memory_space<vmem>>, vector<16x64xf32>,
    %c0_i32_8 = arith.constant 0 : i32
    %9 = arith.cmpi eq, %arg2, %c0_i32_8 : i32
    %10 = arith.extui %9 : i1 to i32
    %c0_i32_9 = arith.constant 0 : i32
    %11 = arith.cmpi ne, %10, %c0_i32_9 : i32
    scf.if %11 {
      %c0_10 = arith.constant 0 : index
      %c0_11 = arith.constant 0 : index
      %12 = vector.load %arg7[%c0_10, %c0_11] : memref<16x64xf32, #tpu.memory_space<vmem>>, vector<16x64xf32>
      %c0_12 = arith.constant 0 : index
      %c0_13 = arith.constant 0 : index
      %13 = vector.load %arg5[%c0_12, %c0_13] : memref<1x64xf32, #tpu.memory_space<vmem>>, vector<1x64xf32>
      %14 = vector.broadcast %13 : vector<1x64xf32> to vector<16x64xf32>
      %15 = arith.addf %12, %14 : vector<16x64xf32>
      %16 = arith.truncf %15 : vector<16x64xf32> to vector<16x64xbf16>
      %c0_14 = arith.constant 0 : index
      %c0_15 = arith.constant 0 : index
      %17 = vector.load %arg6[%c0_14, %c0_15] : memref<16x64xbf16, #tpu.memory_space<vmem>>, vector<16x64xbf16>
      tpu.vector_store %arg6[%c0_14, %c0_15], %16 {strides = array<i32>} : memref<16x64xbf16, #tpu.memory_space<vmem>>, vector<16x64xbf16>,
    } else {
    }
    return
  }
  func.func @transform_0(%arg0: i32, %arg1: i32, %arg2: i32) -> (i32, i32) {
    %c0_i32 = arith.constant 0 : i32
    return %arg0, %arg2 : i32, i32
  }
  func.func @transform_1(%arg0: i32, %arg1: i32, %arg2: i32) -> (i32, i32) {
    %c0_i32 = arith.constant 0 : i32
    return %arg2, %arg1 : i32, i32
  }
  func.func @transform_2(%arg0: i32, %arg1: i32, %arg2: i32) -> (i32, i32) {
    %c0_i32 = arith.constant 0 : i32
    %c0_i32_0 = arith.constant 0 : i32
    return %c0_i32, %arg1 : i32, i32
  }
  func.func @transform_3(%arg0: i32, %arg1: i32, %arg2: i32) -> (i32, i32) {
    %c0_i32 = arith.constant 0 : i32
    return %arg0, %arg1 : i32, i32
  }
}

module attributes {stable_mosaic.version = 11 : i64} {
  func.func @_attn_scores_kernel(%arg0: i32, %arg1: memref<1x1x8xf32, #tpu.memory_space<vmem>>, %arg2: memref<1x4x8x8xbf16, #tpu.memory_space<vmem>>, %arg3: memref<1x4x8x8xbf16, #tpu.memory_space<vmem>>, %arg4: memref<1x4x8x8xbf16, #tpu.memory_space<vmem>>, %arg5: memref<1x4x8x8xbf16, #tpu.memory_space<vmem>>, %arg6: memref<1x4x8x8xf32, #tpu.memory_space<vmem>>) attributes {dimension_semantics = [#tpu.dimension_semantics<parallel>], iteration_bounds = array<i64: 2>, scalar_prefetch = 0 : i64, scratch_operands = 0 : i64, tpu.core_type = #tpu.core_type<tc>, window_params = [{transform_indices = @transform_0, window_bounds = array<i64: 1, 1, 8>}, {transform_indices = @transform_1, window_bounds = array<i64: 1, 4, 8, 8>}, {transform_indices = @transform_2, window_bounds = array<i64: 1, 4, 8, 8>}, {transform_indices = @transform_3, window_bounds = array<i64: 1, 4, 8, 8>}, {transform_indices = @transform_4, window_bounds = array<i64: 1, 4, 8, 8>}, {transform_indices = @transform_5, window_bounds = array<i64: 1, 4, 8, 8>}]} {
    %c0 = arith.constant 0 : index
    %c0_0 = arith.constant 0 : index
    %c0_1 = arith.constant 0 : index
    %c0_2 = arith.constant 0 : index
    %0 = vector.load %arg2[%c0, %c0_0, %c0_1, %c0_2] : memref<1x4x8x8xbf16, #tpu.memory_space<vmem>>, vector<1x4x8x8xbf16>
    %1 = vector.shape_cast %0 : vector<1x4x8x8xbf16> to vector<4x8x8xbf16>
    %c0_3 = arith.constant 0 : index
    %c0_4 = arith.constant 0 : index
    %c0_5 = arith.constant 0 : index
    %c0_6 = arith.constant 0 : index
    %2 = vector.load %arg3[%c0_3, %c0_4, %c0_5, %c0_6] : memref<1x4x8x8xbf16, #tpu.memory_space<vmem>>, vector<1x4x8x8xbf16>
    %3 = vector.shape_cast %2 : vector<1x4x8x8xbf16> to vector<4x8x8xbf16>
    %c0_7 = arith.constant 0 : index
    %c0_8 = arith.constant 0 : index
    %c0_9 = arith.constant 0 : index
    %c0_10 = arith.constant 0 : index
    %4 = vector.load %arg4[%c0_7, %c0_8, %c0_9, %c0_10] : memref<1x4x8x8xbf16, #tpu.memory_space<vmem>>, vector<1x4x8x8xbf16>
    %5 = vector.shape_cast %4 : vector<1x4x8x8xbf16> to vector<4x8x8xbf16>
    "tpu.trace_start"() <{level = 10 : i32, message = "hqd,hkd->hqk"}> : () -> ()
    %cst = arith.constant dense<0.000000e+00> : vector<4x8x8xf32>
    %6 = tpu.matmul %1, %3, %cst {dimension_numbers = #tpu.dot_dimension_numbers<[2], [2], [1], [1], [0, 0, 0, 1, 1, 1], [0], [0]>} : vector<4x8x8xbf16>, vector<4x8x8xbf16>, vector<4x8x8xf32> -> vector<4x8x8xf32>
    "tpu.trace_stop"() : () -> ()
    %cst_11 = arith.constant 0.353553385 : f32
    %7 = vector.broadcast %cst_11 : f32 to vector<4x8x8xf32>
    %8 = arith.mulf %6, %7 : vector<4x8x8xf32>
    %c0_12 = arith.constant 0 : index
    %c0_13 = arith.constant 0 : index
    %c0_14 = arith.constant 0 : index
    %9 = vector.load %arg1[%c0_12, %c0_13, %c0_14] : memref<1x1x8xf32, #tpu.memory_space<vmem>>, vector<1x1x8xf32>
    %10 = vector.shape_cast %9 : vector<1x1x8xf32> to vector<1x8xf32>
    %11 = vector.shape_cast %10 : vector<1x8xf32> to vector<1x1x8xf32>
    %cst_15 = arith.constant 0.000000e+00 : f32
    %12 = vector.broadcast %cst_15 : f32 to vector<1x1x8xf32>
    %13 = arith.cmpf oeq, %11, %12 : vector<1x1x8xf32>
    %cst_16 = arith.constant -1.000000e+09 : f32
    %14 = vector.shape_cast %13 : vector<1x1x8xi1> to vector<1x1x8xi1>
    %15 = vector.broadcast %14 : vector<1x1x8xi1> to vector<4x8x8xi1>
    %16 = vector.broadcast %cst_16 : f32 to vector<4x8x8xf32>
    %17 = arith.select %15, %16, %8 : vector<4x8x8xi1>, vector<4x8x8xf32>
    %18 = tpu.iota {dimensions = array<i32: 0>} : vector<8x8xi32>
    %19 = tpu.iota {dimensions = array<i32: 1>} : vector<8x8xi32>
    %20 = arith.cmpi sgt, %19, %18 : vector<8x8xi32>
    %21 = vector.shape_cast %20 : vector<8x8xi1> to vector<1x8x8xi1>
    %cst_17 = arith.constant -1.000000e+09 : f32
    %22 = vector.shape_cast %21 : vector<1x8x8xi1> to vector<1x8x8xi1>
    %23 = vector.broadcast %22 : vector<1x8x8xi1> to vector<4x8x8xi1>
    %24 = vector.broadcast %cst_17 : f32 to vector<4x8x8xf32>
    %25 = arith.select %23, %24, %17 : vector<4x8x8xi1>, vector<4x8x8xf32>
    %cst_18 = arith.constant dense<0xFF800000> : vector<4x8xf32>
    %26 = vector.multi_reduction <maximumf>, %25, %cst_18 [2] : vector<4x8x8xf32> to vector<4x8xf32>
    %27 = vector.shape_cast %26 : vector<4x8xf32> to vector<4x8x1xf32>
    %28 = vector.broadcast %27 : vector<4x8x1xf32> to vector<4x8x8xf32>
    %29 = arith.subf %25, %28 : vector<4x8x8xf32>
    %30 = math.exp %29 : vector<4x8x8xf32>
    %cst_19 = arith.constant dense<0.000000e+00> : vector<4x8xf32>
    %31 = vector.multi_reduction <add>, %30, %cst_19 [2] : vector<4x8x8xf32> to vector<4x8xf32>
    %32 = vector.shape_cast %31 : vector<4x8xf32> to vector<4x8x1xf32>
    %33 = vector.broadcast %32 : vector<4x8x1xf32> to vector<4x8x8xf32>
    %34 = arith.divf %30, %33 : vector<4x8x8xf32>
    %c0_20 = arith.constant 0 : index
    %c0_21 = arith.constant 0 : index
    %c0_22 = arith.constant 0 : index
    %c0_23 = arith.constant 0 : index
    %35 = vector.load %arg6[%c0_20, %c0_21, %c0_22, %c0_23] : memref<1x4x8x8xf32, #tpu.memory_space<vmem>>, vector<1x4x8x8xf32>
    %36 = vector.shape_cast %35 : vector<1x4x8x8xf32> to vector<4x8x8xf32>
    %37 = vector.shape_cast %34 : vector<4x8x8xf32> to vector<1x4x8x8xf32>
    tpu.vector_store %arg6[%c0_20, %c0_21, %c0_22, %c0_23], %37 {strides = array<i32>} : memref<1x4x8x8xf32, #tpu.memory_space<vmem>>, vector<1x4x8x8xf32>,
    %38 = arith.truncf %34 : vector<4x8x8xf32> to vector<4x8x8xbf16>
    "tpu.trace_start"() <{level = 10 : i32, message = "hqk,hkd->hqd"}> : () -> ()
    %cst_24 = arith.constant dense<0.000000e+00> : vector<4x8x8xf32>
    %39 = tpu.matmul %38, %5, %cst_24 {dimension_numbers = #tpu.dot_dimension_numbers<[2], [1], [1], [2], [0, 0, 0, 1, 1, 2], [0], [0]>} : vector<4x8x8xbf16>, vector<4x8x8xbf16>, vector<4x8x8xf32> -> vector<4x8x8xf32>
    "tpu.trace_stop"() : () -> ()
    %40 = arith.truncf %39 : vector<4x8x8xf32> to vector<4x8x8xbf16>
    %c0_25 = arith.constant 0 : index
    %c0_26 = arith.constant 0 : index
    %c0_27 = arith.constant 0 : index
    %c0_28 = arith.constant 0 : index
    %41 = vector.load %arg5[%c0_25, %c0_26, %c0_27, %c0_28] : memref<1x4x8x8xbf16, #tpu.memory_space<vmem>>, vector<1x4x8x8xbf16>
    %42 = vector.shape_cast %41 : vector<1x4x8x8xbf16> to vector<4x8x8xbf16>
    %43 = vector.shape_cast %40 : vector<4x8x8xbf16> to vector<1x4x8x8xbf16>
    tpu.vector_store %arg5[%c0_25, %c0_26, %c0_27, %c0_28], %43 {strides = array<i32>} : memref<1x4x8x8xbf16, #tpu.memory_space<vmem>>, vector<1x4x8x8xbf16>,
    return
  }
  func.func @transform_0(%arg0: i32) -> (i32, i32, i32) {
    %c0_i32 = arith.constant 0 : i32
    %c0_i32_0 = arith.constant 0 : i32
    %c0_i32_1 = arith.constant 0 : i32
    return %arg0, %c0_i32, %c0_i32_0 : i32, i32, i32
  }
  func.func @transform_1(%arg0: i32) -> (i32, i32, i32, i32) {
    %c0_i32 = arith.constant 0 : i32
    %c0_i32_0 = arith.constant 0 : i32
    %c0_i32_1 = arith.constant 0 : i32
    %c0_i32_2 = arith.constant 0 : i32
    return %arg0, %c0_i32, %c0_i32_0, %c0_i32_1 : i32, i32, i32, i32
  }
  func.func @transform_2(%arg0: i32) -> (i32, i32, i32, i32) {
    %c0_i32 = arith.constant 0 : i32
    %c0_i32_0 = arith.constant 0 : i32
    %c0_i32_1 = arith.constant 0 : i32
    %c0_i32_2 = arith.constant 0 : i32
    return %arg0, %c0_i32, %c0_i32_0, %c0_i32_1 : i32, i32, i32, i32
  }
  func.func @transform_3(%arg0: i32) -> (i32, i32, i32, i32) {
    %c0_i32 = arith.constant 0 : i32
    %c0_i32_0 = arith.constant 0 : i32
    %c0_i32_1 = arith.constant 0 : i32
    %c0_i32_2 = arith.constant 0 : i32
    return %arg0, %c0_i32, %c0_i32_0, %c0_i32_1 : i32, i32, i32, i32
  }
  func.func @transform_4(%arg0: i32) -> (i32, i32, i32, i32) {
    %c0_i32 = arith.constant 0 : i32
    %c0_i32_0 = arith.constant 0 : i32
    %c0_i32_1 = arith.constant 0 : i32
    %c0_i32_2 = arith.constant 0 : i32
    return %arg0, %c0_i32, %c0_i32_0, %c0_i32_1 : i32, i32, i32, i32
  }
  func.func @transform_5(%arg0: i32) -> (i32, i32, i32, i32) {
    %c0_i32 = arith.constant 0 : i32
    %c0_i32_0 = arith.constant 0 : i32
    %c0_i32_1 = arith.constant 0 : i32
    %c0_i32_2 = arith.constant 0 : i32
    return %arg0, %c0_i32, %c0_i32_0, %c0_i32_1 : i32, i32, i32, i32
  }
}

module attributes {stable_mosaic.version = 11 : i64} {
  func.func @_linear_add_ln_kernel(%arg0: i32, %arg1: i32, %arg2: memref<16x32xbf16, #tpu.memory_space<vmem>>, %arg3: memref<32x32xbf16, #tpu.memory_space<vmem>>, %arg4: memref<1x32xf32, #tpu.memory_space<vmem>>, %arg5: memref<16x32xf32, #tpu.memory_space<vmem>>, %arg6: memref<1x32xf32, #tpu.memory_space<vmem>>, %arg7: memref<1x32xf32, #tpu.memory_space<vmem>>, %arg8: memref<16x32xf32, #tpu.memory_space<vmem>>, %arg9: memref<16x32xf32, #tpu.memory_space<vmem>>) attributes {dimension_semantics = [#tpu.dimension_semantics<parallel>, #tpu.dimension_semantics<arbitrary>], iteration_bounds = array<i64: 1, 1>, scalar_prefetch = 0 : i64, scratch_operands = 1 : i64, tpu.core_type = #tpu.core_type<tc>, window_params = [{transform_indices = @transform_0, window_bounds = array<i64: 16, 32>}, {transform_indices = @transform_1, window_bounds = array<i64: 32, 32>}, {pipeline_mode = #tpu.pipeline_mode<synchronous>, transform_indices = @transform_2, window_bounds = array<i64: 1, 32>}, {transform_indices = @transform_3, window_bounds = array<i64: 16, 32>}, {pipeline_mode = #tpu.pipeline_mode<synchronous>, transform_indices = @transform_4, window_bounds = array<i64: 1, 32>}, {pipeline_mode = #tpu.pipeline_mode<synchronous>, transform_indices = @transform_5, window_bounds = array<i64: 1, 32>}, {transform_indices = @transform_6, window_bounds = array<i64: 16, 32>}]} {
    %c0_i32 = arith.constant 0 : i32
    %0 = arith.cmpi eq, %arg1, %c0_i32 : i32
    %1 = arith.extui %0 : i1 to i32
    %c0_i32_0 = arith.constant 0 : i32
    %2 = arith.cmpi ne, %1, %c0_i32_0 : i32
    scf.if %2 {
      %cst_10 = arith.constant 0.000000e+00 : f32
      %12 = vector.broadcast %cst_10 : f32 to vector<16x32xf32>
      %c0_11 = arith.constant 0 : index
      %c0_12 = arith.constant 0 : index
      %13 = vector.load %arg9[%c0_11, %c0_12] : memref<16x32xf32, #tpu.memory_space<vmem>>, vector<16x32xf32>
      tpu.vector_store %arg9[%c0_11, %c0_12], %12 {strides = array<i32>} : memref<16x32xf32, #tpu.memory_space<vmem>>, vector<16x32xf32>,
    } else {
    }
    %c0 = arith.constant 0 : index
    %c0_1 = arith.constant 0 : index
    %3 = vector.load %arg9[%c0, %c0_1] : memref<16x32xf32, #tpu.memory_space<vmem>>, vector<16x32xf32>
    %c0_2 = arith.constant 0 : index
    %c0_3 = arith.constant 0 : index
    %4 = vector.load %arg2[%c0_2, %c0_3] : memref<16x32xbf16, #tpu.memory_space<vmem>>, vector<16x32xbf16>
    %c0_4 = arith.constant 0 : index
    %c0_5 = arith.constant 0 : index
    %5 = vector.load %arg3[%c0_4, %c0_5] : memref<32x32xbf16, #tpu.memory_space<vmem>>, vector<32x32xbf16>
    %cst = arith.constant dense<0.000000e+00> : vector<16x32xf32>
    %6 = tpu.matmul %4, %5, %cst {dimension_numbers = #tpu.dot_dimension_numbers<[1], [0], [0], [1], [0, 0, 1, 1], [], []>} : vector<16x32xbf16>, vector<32x32xbf16>, vector<16x32xf32> -> vector<16x32xf32>
    %7 = arith.addf %3, %6 : vector<16x32xf32>
    %c0_6 = arith.constant 0 : index
    %c0_7 = arith.constant 0 : index
    %8 = vector.load %arg9[%c0_6, %c0_7] : memref<16x32xf32, #tpu.memory_space<vmem>>, vector<16x32xf32>
    tpu.vector_store %arg9[%c0_6, %c0_7], %7 {strides = array<i32>} : memref<16x32xf32, #tpu.memory_space<vmem>>, vector<16x32xf32>,
    %c0_i32_8 = arith.constant 0 : i32
    %9 = arith.cmpi eq, %arg1, %c0_i32_8 : i32
    %10 = arith.extui %9 : i1 to i32
    %c0_i32_9 = arith.constant 0 : i32
    %11 = arith.cmpi ne, %10, %c0_i32_9 : i32
    scf.if %11 {
      %c0_10 = arith.constant 0 : index
      %c0_11 = arith.constant 0 : index
      %12 = vector.load %arg9[%c0_10, %c0_11] : memref<16x32xf32, #tpu.memory_space<vmem>>, vector<16x32xf32>
      %c0_12 = arith.constant 0 : index
      %c0_13 = arith.constant 0 : index
      %13 = vector.load %arg4[%c0_12, %c0_13] : memref<1x32xf32, #tpu.memory_space<vmem>>, vector<1x32xf32>
      %14 = vector.broadcast %13 : vector<1x32xf32> to vector<16x32xf32>
      %15 = arith.addf %12, %14 : vector<16x32xf32>
      %c0_14 = arith.constant 0 : index
      %c0_15 = arith.constant 0 : index
      %16 = vector.load %arg5[%c0_14, %c0_15] : memref<16x32xf32, #tpu.memory_space<vmem>>, vector<16x32xf32>
      %17 = arith.addf %15, %16 : vector<16x32xf32>
      %cst_16 = arith.constant dense<0.000000e+00> : vector<16xf32>
      %18 = vector.multi_reduction <add>, %17, %cst_16 [1] : vector<16x32xf32> to vector<16xf32>
      %19 = vector.shape_cast %18 : vector<16xf32> to vector<16x1xf32>
      %cst_17 = arith.constant 3.200000e+01 : f32
      %20 = vector.broadcast %cst_17 : f32 to vector<16x1xf32>
      %21 = arith.divf %19, %20 : vector<16x1xf32>
      %22 = vector.broadcast %21 : vector<16x1xf32> to vector<16x32xf32>
      %23 = arith.subf %17, %22 : vector<16x32xf32>
      %24 = arith.mulf %23, %23 : vector<16x32xf32>
      %cst_18 = arith.constant dense<0.000000e+00> : vector<16xf32>
      %25 = vector.multi_reduction <add>, %24, %cst_18 [1] : vector<16x32xf32> to vector<16xf32>
      %26 = vector.shape_cast %25 : vector<16xf32> to vector<16x1xf32>
      %cst_19 = arith.constant 3.200000e+01 : f32
      %27 = vector.broadcast %cst_19 : f32 to vector<16x1xf32>
      %28 = arith.divf %26, %27 : vector<16x1xf32>
      %29 = vector.broadcast %21 : vector<16x1xf32> to vector<16x32xf32>
      %30 = arith.subf %17, %29 : vector<16x32xf32>
      %cst_20 = arith.constant 9.99999974E-6 : f32
      %31 = vector.broadcast %cst_20 : f32 to vector<16x1xf32>
      %32 = arith.addf %28, %31 : vector<16x1xf32>
      %33 = math.rsqrt %32 : vector<16x1xf32>
      %34 = vector.broadcast %33 : vector<16x1xf32> to vector<16x32xf32>
      %35 = arith.mulf %30, %34 : vector<16x32xf32>
      %c0_21 = arith.constant 0 : index
      %c0_22 = arith.constant 0 : index
      %36 = vector.load %arg6[%c0_21, %c0_22] : memref<1x32xf32, #tpu.memory_space<vmem>>, vector<1x32xf32>
      %37 = vector.broadcast %36 : vector<1x32xf32> to vector<16x32xf32>
      %38 = arith.mulf %35, %37 : vector<16x32xf32>
      %c0_23 = arith.constant 0 : index
      %c0_24 = arith.constant 0 : index
      %39 = vector.load %arg7[%c0_23, %c0_24] : memref<1x32xf32, #tpu.memory_space<vmem>>, vector<1x32xf32>
      %40 = vector.broadcast %39 : vector<1x32xf32> to vector<16x32xf32>
      %41 = arith.addf %38, %40 : vector<16x32xf32>
      %c0_25 = arith.constant 0 : index
      %c0_26 = arith.constant 0 : index
      %42 = vector.load %arg8[%c0_25, %c0_26] : memref<16x32xf32, #tpu.memory_space<vmem>>, vector<16x32xf32>
      tpu.vector_store %arg8[%c0_25, %c0_26], %41 {strides = array<i32>} : memref<16x32xf32, #tpu.memory_space<vmem>>, vector<16x32xf32>,
    } else {
    }
    return
  }
  func.func @transform_0(%arg0: i32, %arg1: i32) -> (i32, i32) {
    %c0_i32 = arith.constant 0 : i32
    return %arg0, %arg1 : i32, i32
  }
  func.func @transform_1(%arg0: i32, %arg1: i32) -> (i32, i32) {
    %c0_i32 = arith.constant 0 : i32
    %c0_i32_0 = arith.constant 0 : i32
    return %arg1, %c0_i32 : i32, i32
  }
  func.func @transform_2(%arg0: i32, %arg1: i32) -> (i32, i32) {
    %c0_i32 = arith.constant 0 : i32
    %c0_i32_0 = arith.constant 0 : i32
    %c0_i32_1 = arith.constant 0 : i32
    return %c0_i32, %c0_i32_0 : i32, i32
  }
  func.func @transform_3(%arg0: i32, %arg1: i32) -> (i32, i32) {
    %c0_i32 = arith.constant 0 : i32
    %c0_i32_0 = arith.constant 0 : i32
    return %arg0, %c0_i32 : i32, i32
  }
  func.func @transform_4(%arg0: i32, %arg1: i32) -> (i32, i32) {
    %c0_i32 = arith.constant 0 : i32
    %c0_i32_0 = arith.constant 0 : i32
    %c0_i32_1 = arith.constant 0 : i32
    return %c0_i32, %c0_i32_0 : i32, i32
  }
  func.func @transform_5(%arg0: i32, %arg1: i32) -> (i32, i32) {
    %c0_i32 = arith.constant 0 : i32
    %c0_i32_0 = arith.constant 0 : i32
    %c0_i32_1 = arith.constant 0 : i32
    return %c0_i32, %c0_i32_0 : i32, i32
  }
  func.func @transform_6(%arg0: i32, %arg1: i32) -> (i32, i32) {
    %c0_i32 = arith.constant 0 : i32
    %c0_i32_0 = arith.constant 0 : i32
    return %arg0, %c0_i32 : i32, i32
  }
}

module attributes {stable_mosaic.version = 11 : i64} {
  func.func @_linear_kernel(%arg0: i32, %arg1: i32, %arg2: i32, %arg3: memref<16x32xbf16, #tpu.memory_space<vmem>>, %arg4: memref<32x32xbf16, #tpu.memory_space<vmem>>, %arg5: memref<1x32xf32, #tpu.memory_space<vmem>>, %arg6: memref<16x32xbf16, #tpu.memory_space<vmem>>, %arg7: memref<16x32xf32, #tpu.memory_space<vmem>>) attributes {dimension_semantics = [#tpu.dimension_semantics<parallel>, #tpu.dimension_semantics<parallel>, #tpu.dimension_semantics<arbitrary>], iteration_bounds = array<i64: 1, 1, 1>, scalar_prefetch = 0 : i64, scratch_operands = 1 : i64, tpu.core_type = #tpu.core_type<tc>, window_params = [{transform_indices = @transform_0, window_bounds = array<i64: 16, 32>}, {transform_indices = @transform_1, window_bounds = array<i64: 32, 32>}, {transform_indices = @transform_2, window_bounds = array<i64: 1, 32>}, {transform_indices = @transform_3, window_bounds = array<i64: 16, 32>}]} {
    %c0_i32 = arith.constant 0 : i32
    %0 = arith.cmpi eq, %arg2, %c0_i32 : i32
    %1 = arith.extui %0 : i1 to i32
    %c0_i32_0 = arith.constant 0 : i32
    %2 = arith.cmpi ne, %1, %c0_i32_0 : i32
    scf.if %2 {
      %cst_10 = arith.constant 0.000000e+00 : f32
      %12 = vector.broadcast %cst_10 : f32 to vector<16x32xf32>
      %c0_11 = arith.constant 0 : index
      %c0_12 = arith.constant 0 : index
      %13 = vector.load %arg7[%c0_11, %c0_12] : memref<16x32xf32, #tpu.memory_space<vmem>>, vector<16x32xf32>
      tpu.vector_store %arg7[%c0_11, %c0_12], %12 {strides = array<i32>} : memref<16x32xf32, #tpu.memory_space<vmem>>, vector<16x32xf32>,
    } else {
    }
    %c0 = arith.constant 0 : index
    %c0_1 = arith.constant 0 : index
    %3 = vector.load %arg7[%c0, %c0_1] : memref<16x32xf32, #tpu.memory_space<vmem>>, vector<16x32xf32>
    %c0_2 = arith.constant 0 : index
    %c0_3 = arith.constant 0 : index
    %4 = vector.load %arg3[%c0_2, %c0_3] : memref<16x32xbf16, #tpu.memory_space<vmem>>, vector<16x32xbf16>
    %c0_4 = arith.constant 0 : index
    %c0_5 = arith.constant 0 : index
    %5 = vector.load %arg4[%c0_4, %c0_5] : memref<32x32xbf16, #tpu.memory_space<vmem>>, vector<32x32xbf16>
    %cst = arith.constant dense<0.000000e+00> : vector<16x32xf32>
    %6 = tpu.matmul %4, %5, %cst {dimension_numbers = #tpu.dot_dimension_numbers<[1], [0], [0], [1], [0, 0, 1, 1], [], []>} : vector<16x32xbf16>, vector<32x32xbf16>, vector<16x32xf32> -> vector<16x32xf32>
    %7 = arith.addf %3, %6 : vector<16x32xf32>
    %c0_6 = arith.constant 0 : index
    %c0_7 = arith.constant 0 : index
    %8 = vector.load %arg7[%c0_6, %c0_7] : memref<16x32xf32, #tpu.memory_space<vmem>>, vector<16x32xf32>
    tpu.vector_store %arg7[%c0_6, %c0_7], %7 {strides = array<i32>} : memref<16x32xf32, #tpu.memory_space<vmem>>, vector<16x32xf32>,
    %c0_i32_8 = arith.constant 0 : i32
    %9 = arith.cmpi eq, %arg2, %c0_i32_8 : i32
    %10 = arith.extui %9 : i1 to i32
    %c0_i32_9 = arith.constant 0 : i32
    %11 = arith.cmpi ne, %10, %c0_i32_9 : i32
    scf.if %11 {
      %c0_10 = arith.constant 0 : index
      %c0_11 = arith.constant 0 : index
      %12 = vector.load %arg7[%c0_10, %c0_11] : memref<16x32xf32, #tpu.memory_space<vmem>>, vector<16x32xf32>
      %c0_12 = arith.constant 0 : index
      %c0_13 = arith.constant 0 : index
      %13 = vector.load %arg5[%c0_12, %c0_13] : memref<1x32xf32, #tpu.memory_space<vmem>>, vector<1x32xf32>
      %14 = vector.broadcast %13 : vector<1x32xf32> to vector<16x32xf32>
      %15 = arith.addf %12, %14 : vector<16x32xf32>
      %16 = arith.truncf %15 : vector<16x32xf32> to vector<16x32xbf16>
      %c0_14 = arith.constant 0 : index
      %c0_15 = arith.constant 0 : index
      %17 = vector.load %arg6[%c0_14, %c0_15] : memref<16x32xbf16, #tpu.memory_space<vmem>>, vector<16x32xbf16>
      tpu.vector_store %arg6[%c0_14, %c0_15], %16 {strides = array<i32>} : memref<16x32xbf16, #tpu.memory_space<vmem>>, vector<16x32xbf16>,
    } else {
    }
    return
  }
  func.func @transform_0(%arg0: i32, %arg1: i32, %arg2: i32) -> (i32, i32) {
    %c0_i32 = arith.constant 0 : i32
    return %arg0, %arg2 : i32, i32
  }
  func.func @transform_1(%arg0: i32, %arg1: i32, %arg2: i32) -> (i32, i32) {
    %c0_i32 = arith.constant 0 : i32
    return %arg2, %arg1 : i32, i32
  }
  func.func @transform_2(%arg0: i32, %arg1: i32, %arg2: i32) -> (i32, i32) {
    %c0_i32 = arith.constant 0 : i32
    %c0_i32_0 = arith.constant 0 : i32
    return %c0_i32, %arg1 : i32, i32
  }
  func.func @transform_3(%arg0: i32, %arg1: i32, %arg2: i32) -> (i32, i32) {
    %c0_i32 = arith.constant 0 : i32
    return %arg0, %arg1 : i32, i32
  }
}

</mosaic_0001>

<llo_original>
// kernel: transformer_forward.28
$region0: #{transformer_forward.28}
  #allocation0 [shape = 'u32[]', space=smem, size = 0x4, offset = 0x4, fixed_abs, tag = 'smem constant byte address 0x4 - core index']
  #allocation1 [shape = 'u32[144,128]{1,0:T(1,128)}', space=vmem, size = 0x12000, scoped, tag = 'internal scratch']
  #allocation2 [shape = 'f32[16,96]{1,0:T(8,128)}', space=vmem, size = 0x2000, scoped, tag = 'scratch operand']
  %s0 = inlined_call_operand.vmem [shape: bf16[16,32], index: 0, kind: input, shape index: {}]
  %s1 = inlined_call_operand.vmem [shape: bf16[32,96], index: 1, kind: input, shape index: {}]
  %s2 = inlined_call_operand.vmem [shape: f32[1,96], index: 2, kind: input, shape index: {}]
  %s3 = inlined_call_operand.vmem [shape: bf16[16,96], index: 3, kind: output, shape index: {}]
  %s4 = sld [smem:[#allocation0]]
  $region30: #{transformer_forward.28} parent=0
    _
  %s6 = ssub.s32 1, %s4
  %s7 = scalar_select 0, %s6, %s4
  // Predicated region
  $region2: #{transformer_forward.28} parent=0 // pred_check
    _
  $region3: #{transformer_forward.28} parent=0 // pred_check_branch
    %9 = sbr.rel (0) target = $region5
  $region4: #{transformer_forward.28} parent=0 // pred_region
    _
  $region5: #{transformer_forward.28} parent=0 // pred_fallthru
    _
  // Predicated region
  $region6: #{transformer_forward.28} parent=0 // pred_check
    _
  $region7: #{transformer_forward.28} parent=0 // pred_check_branch
    %11 = sbr.rel (0) target = $region9
  $region8: #{transformer_forward.28} parent=0 // pred_region
    _
  $region9: #{transformer_forward.28} parent=0 // pred_fallthru
    _
  // Predicated region
  $region10: #{transformer_forward.28} parent=0 // pred_check
    _
  $region11: #{transformer_forward.28} parent=0 // pred_check_branch
    %13 = sbr.rel (0) target = $region13
  $region12: #{transformer_forward.28} parent=0 // pred_region
    _
  $region13: #{transformer_forward.28} parent=0 // pred_fallthru
    _
  %p15 = scmp.eq.s32.totalorder 0, 0
  // Predicated region
  $region14: #{transformer_forward.28} parent=0 // pred_check
    %p16 = pneg %p15
  $region15: #{transformer_forward.28} parent=0 // pred_check_branch
    %18 = sbr.rel (%p16) target = $region17
  $region16: #{transformer_forward.28} parent=0 // pred_region
    %vm19 = vcmask 785408
    %20 = vst.msk [vmem:[#allocation2] sm:$0xff] %vm19, 0.0
    %21 = vst.msk [vmem:[#allocation2 + $0x8] sm:$0xff] %vm19, 0.0
  $region17: #{transformer_forward.28} parent=0 // pred_fallthru
    _
  %v22 = vld [vmem:[#allocation2] sm:$0xff]
  %v23 = vld [vmem:[#allocation2 + $0x8] sm:$0xff]
  %v24 = vld [vmem:[%s0] sm:$0xf]
  %v25 = vld [vmem:[%s0 + $0x4] sm:$0xf]
  %v26 = vld [vmem:[%s1] sm:$0xf]
  %v27 = vld [vmem:[%s1 + $0x4] sm:$0xf]
  %v28 = vld [vmem:[%s1 + $0x8] sm:$0xf]
  %v29 = vld [vmem:[%s1 + $0xc] sm:$0xf]
  %v32 = vunpack.c.l.b16 %v24
  %v33 = vunpack.c.l.b16 %v25
  %v34 = vpack.c.b16 %v33, %v32
  %v39 = vunpack.c.l.b16 %v26
  %v40 = vunpack.c.l.b16 %v27
  %v41 = vunpack.c.l.b16 %v28
  %v42 = vunpack.c.l.b16 %v29
  %v43 = vpack.c.b16 %v40, %v39
  %v44 = vpack.c.b16 %v42, %v41
  %vm47 = vcmask 261120
  %v49 = vsel %vm47, %v34, 0
  %51 = vmatprep.subr.bf16.mxu0 0
  %52 = vmatpush1.bf16.msra.mxu0 %v43
  %53 = vmatprep.subr.bf16.mxu0 0
  %54 = vmatpush1.bf16.msra.mxu0 %v44
  %55 = vmatprep.subr.bf16.mxu0 0
  %56 = vmatpush1.bf16.msra.mxu0 0
  %57 = vmatprep.subr.bf16.mxu0 0
  %58 = vmatpush1.bf16.msra.mxu0 0
  %59 = vmatprep.subr.bf16.mxu0 0
  %60 = vmatpush1.bf16.msra.mxu0 0
  %61 = vmatprep.subr.bf16.mxu0 0
  %62 = vmatpush1.bf16.msra.mxu0 0
  %63 = vmatprep.subr.bf16.mxu0 0
  %64 = vmatpush1.bf16.msra.mxu0 0
  %65 = vmatprep.subr.bf16.mxu0 0
  %66 = vmatpush1.bf16.msra.mxu0 0
  %67 = vmatprep.subr.bf16.mxu0 0
  %68 = vmatpush1.bf16.msra.mxu0 0
  %69 = vmatprep.subr.bf16.mxu0 0
  %70 = vmatpush1.bf16.msra.mxu0 0
  %71 = vmatprep.subr.bf16.mxu0 0
  %72 = vmatpush1.bf16.msra.mxu0 0
  %73 = vmatprep.subr.bf16.mxu0 0
  %74 = vmatpush1.bf16.msra.mxu0 0
  %75 = vmatprep.subr.bf16.mxu0 0
  %76 = vmatpush1.bf16.msra.mxu0 0
  %77 = vmatprep.subr.bf16.mxu0 0
  %78 = vmatpush1.bf16.msra.mxu0 0
  %79 = vmatprep.subr.bf16.mxu0 0
  %80 = vmatpush1.bf16.msra.mxu0 0
  %81 = vmatprep.subr.bf16.mxu0 0
  %82 = vmatpush1.bf16.msra.mxu0 0
  %83 = vmatprep.mubr.bf16.mxu0 0
  %84 = vmatmul.mubr.bf16.gmra.mrb[0].mxu0 %v49
  %v85 = vpop.f32.mrb[0].mxu0
  %v86 = vadd.f32 0.0, %v85
  %v87 = vpop.f32.mrb[0].mxu0
  %v88 = vpop.f32.mrb[0].mxu0
  %v89 = vadd.f32 0.0, %v88
  %v90 = vpop.f32.mrb[0].mxu0
  %91 = vdwg.mxu0
  %v92 = vadd.f32 %v22, %v86
  %v93 = vadd.f32 %v23, %v89
  %vm94 = vcmask 785408
  %95 = vst.msk [vmem:[#allocation2] sm:$0xff] %vm94, %v92
  %96 = vst.msk [vmem:[#allocation2 + $0x8] sm:$0xff] %vm94, %v93
  // Predicated region
  $region18: #{transformer_forward.28} parent=0 // pred_check
    %p97 = pneg %p15
  $region19: #{transformer_forward.28} parent=0 // pred_check_branch
    %99 = sbr.rel (%p97) target = $region21
  $region20: #{transformer_forward.28} parent=0 // pred_region
    %v100 = vld [vmem:[#allocation2] sm:$0xff]
    %v101 = vld [vmem:[#allocation2 + $0x8] sm:$0xff]
    %v102 = vld [vmem:[%s2] sm:$0x1]
    %v104 = vlaneseq
    %v105 = vshrl.u32 %v104, 7
    %v106 = vsub.s32 0, %v105
    %v107 = vrot.slane %v102, %v106
    %v109 = vadd.f32 %v100, %v107
    %v110 = vadd.f32 %v101, %v107
    %v111 = vpack.c.bf16 %v110, %v109
    %v113 = vunpack.c.l.b16 %v111
    %v114 = vunpack.c.h.b16 %v111
    %v115 = vpack.c.b16 %v113, %v113
    %v116 = vpack.c.b16 %v114, %v114
    %vm119 = vcmask 781312
    %120 = vst.msk [vmem:[%s3] sm:$0xf] %vm119, %v115
    %121 = vst.msk [vmem:[%s3 + $0x4] sm:$0xf] %vm119, %v116
  $region21: #{transformer_forward.28} parent=0 // pred_fallthru
    _
  // Predicated region
  $region22: #{transformer_forward.28} parent=0 // pred_check
    _
  $region23: #{transformer_forward.28} parent=0 // pred_check_branch
    %123 = sbr.rel (0) target = $region25
  $region24: #{transformer_forward.28} parent=0 // pred_region
    _
  $region25: #{transformer_forward.28} parent=0 // pred_fallthru
    _
  // Predicated region
  $region26: #{transformer_forward.28} parent=0 // pred_check
    _
  $region27: #{transformer_forward.28} parent=0 // pred_check_branch
    %125 = sbr.rel (0) target = $region29
  $region28: #{transformer_forward.28} parent=0 // pred_region
    _
  $region29: #{transformer_forward.28} parent=0 // pred_fallthru
    _

// kernel: transformer_forward.30
$region0: #{transformer_forward.30}
  #allocation0 [shape = 'u32[]', space=smem, size = 0x4, offset = 0x4, fixed_abs, tag = 'smem constant byte address 0x4 - core index']
  #allocation1 [shape = 'u32[144,128]{1,0:T(1,128)}', space=vmem, size = 0x12000, scoped, tag = 'internal scratch']
  #allocation2 [shape = 'f32[16,32]{1,0:T(8,128)}', space=vmem, size = 0x2000, scoped, tag = 'scratch operand']
  %s0 = inlined_call_operand.vmem [shape: bf16[16,32], index: 0, kind: input, shape index: {}]
  %s1 = inlined_call_operand.vmem [shape: bf16[32,32], index: 1, kind: input, shape index: {}]
  %s2 = inlined_call_operand.vmem [shape: f32[1,32], index: 2, kind: input, shape index: {}]
  %s3 = inlined_call_operand.vmem [shape: f32[16,32], index: 3, kind: input, shape index: {}, may-alias: {3,6}]
  %s4 = inlined_call_operand.vmem [shape: f32[1,32], index: 4, kind: input, shape index: {}]
  %s5 = inlined_call_operand.vmem [shape: f32[1,32], index: 5, kind: input, shape index: {}]
  %s6 = inlined_call_operand.vmem [shape: f32[16,32], index: 6, kind: output, shape index: {}, may-alias: {3,6}]
  %s7 = sld [smem:[#allocation0]]
  $region42: #{transformer_forward.30} parent=0
    _
  %s9 = ssub.s32 1, %s7
  %s10 = scalar_select 0, %s9, %s7
  // Predicated region
  $region2: #{transformer_forward.30} parent=0 // pred_check
    _
  $region3: #{transformer_forward.30} parent=0 // pred_check_branch
    %12 = sbr.rel (0) target = $region5
  $region4: #{transformer_forward.30} parent=0 // pred_region
    _
  $region5: #{transformer_forward.30} parent=0 // pred_fallthru
    _
  // Predicated region
  $region6: #{transformer_forward.30} parent=0 // pred_check
    _
  $region7: #{transformer_forward.30} parent=0 // pred_check_branch
    %14 = sbr.rel (0) target = $region9
  $region8: #{transformer_forward.30} parent=0 // pred_region
    _
  $region9: #{transformer_forward.30} parent=0 // pred_fallthru
    _
  // Predicated region
  $region10: #{transformer_forward.30} parent=0 // pred_check
    _
  $region11: #{transformer_forward.30} parent=0 // pred_check_branch
    %16 = sbr.rel (0) target = $region13
  $region12: #{transformer_forward.30} parent=0 // pred_region
    _
  $region13: #{transformer_forward.30} parent=0 // pred_fallthru
    _
  // Predicated region
  $region14: #{transformer_forward.30} parent=0 // pred_check
    _
  $region15: #{transformer_forward.30} parent=0 // pred_check_branch
    %18 = sbr.rel (0) target = $region17
  $region16: #{transformer_forward.30} parent=0 // pred_region
    _
  $region17: #{transformer_forward.30} parent=0 // pred_fallthru
    _
  // Predicated region
  $region18: #{transformer_forward.30} parent=0 // pred_check
    _
  $region19: #{transformer_forward.30} parent=0 // pred_check_branch
    %20 = sbr.rel (0) target = $region21
  $region20: #{transformer_forward.30} parent=0 // pred_region
    _
  $region21: #{transformer_forward.30} parent=0 // pred_fallthru
    _
  // Predicated region
  $region22: #{transformer_forward.30} parent=0 // pred_check
    _
  $region23: #{transformer_forward.30} parent=0 // pred_check_branch
    %22 = sbr.rel (0) target = $region25
  $region24: #{transformer_forward.30} parent=0 // pred_region
    _
  $region25: #{transformer_forward.30} parent=0 // pred_fallthru
    _
  %p24 = scmp.eq.s32.totalorder 0, 0
  // Predicated region
  $region26: #{transformer_forward.30} parent=0 // pred_check
    %p25 = pneg %p24
  $region27: #{transformer_forward.30} parent=0 // pred_check_branch
    %27 = sbr.rel (%p25) target = $region29
  $region28: #{transformer_forward.30} parent=0 // pred_region
    %vm28 = vcmask 261120
    %29 = vst.msk [vmem:[#allocation2] sm:$0xff] %vm28, 0.0
    %30 = vst.msk [vmem:[#allocation2 + $0x8] sm:$0xff] %vm28, 0.0
  $region29: #{transformer_forward.30} parent=0 // pred_fallthru
    _
  %v31 = vld [vmem:[#allocation2] sm:$0xff]
  %v32 = vld [vmem:[#allocation2 + $0x8] sm:$0xff]
  %v33 = vld [vmem:[%s0] sm:$0xf]
  %v34 = vld [vmem:[%s0 + $0x4] sm:$0xf]
  %v35 = vld [vmem:[%s1] sm:$0xf]
  %v36 = vld [vmem:[%s1 + $0x4] sm:$0xf]
  %v37 = vld [vmem:[%s1 + $0x8] sm:$0xf]
  %v38 = vld [vmem:[%s1 + $0xc] sm:$0xf]
  %v41 = vunpack.c.l.b16 %v33
  %v42 = vunpack.c.l.b16 %v34
  %v43 = vpack.c.b16 %v42, %v41
  %v48 = vunpack.c.l.b16 %v35
  %v49 = vunpack.c.l.b16 %v36
  %v50 = vunpack.c.l.b16 %v37
  %v51 = vunpack.c.l.b16 %v38
  %v52 = vpack.c.b16 %v49, %v48
  %v53 = vpack.c.b16 %v51, %v50
  %vm56 = vcmask 261120
  %v58 = vsel %vm56, %v43, 0
  %60 = vmatprep.subr.bf16.mxu0 0
  %61 = vmatpush1.bf16.msra.mxu0 %v52
  %62 = vmatprep.subr.bf16.mxu0 0
  %63 = vmatpush1.bf16.msra.mxu0 %v53
  %64 = vmatprep.subr.bf16.mxu0 0
  %65 = vmatpush1.bf16.msra.mxu0 0
  %66 = vmatprep.subr.bf16.mxu0 0
  %67 = vmatpush1.bf16.msra.mxu0 0
  %68 = vmatprep.subr.bf16.mxu0 0
  %69 = vmatpush1.bf16.msra.mxu0 0
  %70 = vmatprep.subr.bf16.mxu0 0
  %71 = vmatpush1.bf16.msra.mxu0 0
  %72 = vmatprep.subr.bf16.mxu0 0
  %73 = vmatpush1.bf16.msra.mxu0 0
  %74 = vmatprep.subr.bf16.mxu0 0
  %75 = vmatpush1.bf16.msra.mxu0 0
  %76 = vmatprep.subr.bf16.mxu0 0
  %77 = vmatpush1.bf16.msra.mxu0 0
  %78 = vmatprep.subr.bf16.mxu0 0
  %79 = vmatpush1.bf16.msra.mxu0 0
  %80 = vmatprep.subr.bf16.mxu0 0
  %81 = vmatpush1.bf16.msra.mxu0 0
  %82 = vmatprep.subr.bf16.mxu0 0
  %83 = vmatpush1.bf16.msra.mxu0 0
  %84 = vmatprep.subr.bf16.mxu0 0
  %85 = vmatpush1.bf16.msra.mxu0 0
  %86 = vmatprep.subr.bf16.mxu0 0
  %87 = vmatpush1.bf16.msra.mxu0 0
  %88 = vmatprep.subr.bf16.mxu0 0
  %89 = vmatpush1.bf16.msra.mxu0 0
  %90 = vmatprep.subr.bf16.mxu0 0
  %91 = vmatpush1.bf16.msra.mxu0 0
  %92 = vmatprep.mubr.bf16.mxu0 0
  %93 = vmatmul.mubr.bf16.gmra.mrb[0].mxu0 %v58
  %v94 = vpop.f32.mrb[0].mxu0
  %v95 = vadd.f32 0.0, %v94
  %v96 = vpop.f32.mrb[0].mxu0
  %v97 = vpop.f32.mrb[0].mxu0
  %v98 = vadd.f32 0.0, %v97
  %v99 = vpop.f32.mrb[0].mxu0
  %100 = vdwg.mxu0
  %v101 = vadd.f32 %v31, %v95
  %v102 = vadd.f32 %v32, %v98
  %103 = vst.msk [vmem:[#allocation2] sm:$0xff] %vm56, %v101
  %104 = vst.msk [vmem:[#allocation2 + $0x8] sm:$0xff] %vm56, %v102
  // Predicated region
  $region30: #{transformer_forward.30} parent=0 // pred_check
    %p105 = pneg %p24
  $region31: #{transformer_forward.30} parent=0 // pred_check_branch
    %107 = sbr.rel (%p105) target = $region33
  $region32: #{transformer_forward.30} parent=0 // pred_region
    %v108 = vld [vmem:[#allocation2] sm:$0xff]
    %v109 = vld [vmem:[#allocation2 + $0x8] sm:$0xff]
    %v110 = vld [vmem:[%s2] sm:$0x1]
    %v112 = vlaneseq
    %v113 = vshrl.u32 %v112, 7
    %v114 = vsub.s32 0, %v113
    %v115 = vrot.slane %v110, %v114
    %v117 = vadd.f32 %v108, %v115
    %v118 = vadd.f32 %v109, %v115
    %v119 = vld [vmem:[%s3] sm:$0xff]
    %v120 = vld [vmem:[%s3 + $0x8] sm:$0xff]
    %v121 = vadd.f32 %v117, %v119
    %v122 = vadd.f32 %v118, %v120
    %v123 = vsel %vm56, %v121, 0.0
    %124 = vadd.xlane.f32.xlu0 %v123
    %v125 = vpop.xlane.xlu0 %124
    %v126 = vsel %vm56, %v122, 0.0
    %127 = vadd.xlane.f32.xlu0 %v126
    %v128 = vpop.xlane.xlu0 %127
    %v129 = vrcp.pop 32.0
    %v130 = vmul.f32 %v125, %v129
    %v131 = vmul.f32 %v128, %v129
    %v132 = vsub.f32 %v121, %v130
    %v133 = vsub.f32 %v122, %v131
    %v134 = vmul.f32 %v132, %v132
    %v135 = vmul.f32 %v133, %v133
    %v136 = vsel %vm56, %v134, 0.0
    %137 = vadd.xlane.f32.xlu0 %v136
    %v138 = vpop.xlane.xlu0 %137
    %v139 = vsel %vm56, %v135, 0.0
    %140 = vadd.xlane.f32.xlu0 %v139
    %v141 = vpop.xlane.xlu0 %140
    %v142 = vmul.f32 %v138, %v129
    %v143 = vmul.f32 %v141, %v129
    %v144 = vadd.f32 %v142, 1e-12
    %v145 = vadd.f32 %v143, 1e-12
    %v146 = vrsqrt.pop %v144
    %v147 = vrsqrt.pop %v145
    %v148 = vmul.f32 %v132, %v146
    %v149 = vmul.f32 %v133, %v147
    %v150 = vld [vmem:[%s4] sm:$0x1]
    %v152 = vlaneseq
    %v153 = vshrl.u32 %v152, 7
    %v154 = vsub.s32 0, %v153
    %v155 = vrot.slane %v150, %v154
    %v157 = vmul.f32 %v148, %v155
    %v158 = vmul.f32 %v149, %v155
    %v159 = vld [vmem:[%s5] sm:$0x1]
    %v161 = vlaneseq
    %v162 = vshrl.u32 %v161, 7
    %v163 = vsub.s32 0, %v162
    %v164 = vrot.slane %v159, %v163
    %v166 = vadd.f32 %v157, %v164
    %v167 = vadd.f32 %v158, %v164
    %168 = vst.msk [vmem:[%s6] sm:$0xff] %vm56, %v166
    %169 = vst.msk [vmem:[%s6 + $0x8] sm:$0xff] %vm56, %v167
  $region33: #{transformer_forward.30} parent=0 // pred_fallthru
    _
  // Predicated region
  $region34: #{transformer_forward.30} parent=0 // pred_check
    _
  $region35: #{transformer_forward.30} parent=0 // pred_check_branch
    %171 = sbr.rel (0) target = $region37
  $region36: #{transformer_forward.30} parent=0 // pred_region
    _
  $region37: #{transformer_forward.30} parent=0 // pred_fallthru
    _
  // Predicated region
  $region38: #{transformer_forward.30} parent=0 // pred_check
    _
  $region39: #{transformer_forward.30} parent=0 // pred_check_branch
    %173 = sbr.rel (0) target = $region41
  $region40: #{transformer_forward.30} parent=0 // pred_region
    _
  $region41: #{transformer_forward.30} parent=0 // pred_fallthru
    _

// kernel: transformer_forward.31
$region0: #{transformer_forward.31}
  #allocation0 [shape = 'u32[]', space=smem, size = 0x4, offset = 0x4, fixed_abs, tag = 'smem constant byte address 0x4 - core index']
  #allocation1 [shape = 'u32[144,128]{1,0:T(1,128)}', space=vmem, size = 0x12000, scoped, tag = 'internal scratch']
  #allocation2 [shape = 'f32[16,128]{1,0:T(8,128)}', space=vmem, size = 0x2000, scoped, tag = 'scratch operand']
  %s0 = inlined_call_operand.vmem [shape: bf16[16,32], index: 0, kind: input, shape index: {}]
  %s1 = inlined_call_operand.vmem [shape: bf16[32,128], index: 1, kind: input, shape index: {}]
  %s2 = inlined_call_operand.vmem [shape: f32[1,128], index: 2, kind: input, shape index: {}]
  %s3 = inlined_call_operand.vmem [shape: bf16[16,128], index: 3, kind: output, shape index: {}]
  %s4 = sld [smem:[#allocation0]]
  $region30: #{transformer_forward.31} parent=0
    _
  %s6 = ssub.s32 1, %s4
  %s7 = scalar_select 0, %s6, %s4
  // Predicated region
  $region2: #{transformer_forward.31} parent=0 // pred_check
    _
  $region3: #{transformer_forward.31} parent=0 // pred_check_branch
    %9 = sbr.rel (0) target = $region5
  $region4: #{transformer_forward.31} parent=0 // pred_region
    _
  $region5: #{transformer_forward.31} parent=0 // pred_fallthru
    _
  // Predicated region
  $region6: #{transformer_forward.31} parent=0 // pred_check
    _
  $region7: #{transformer_forward.31} parent=0 // pred_check_branch
    %11 = sbr.rel (0) target = $region9
  $region8: #{transformer_forward.31} parent=0 // pred_region
    _
  $region9: #{transformer_forward.31} parent=0 // pred_fallthru
    _
  // Predicated region
  $region10: #{transformer_forward.31} parent=0 // pred_check
    _
  $region11: #{transformer_forward.31} parent=0 // pred_check_branch
    %13 = sbr.rel (0) target = $region13
  $region12: #{transformer_forward.31} parent=0 // pred_region
    _
  $region13: #{transformer_forward.31} parent=0 // pred_fallthru
    _
  %p15 = scmp.eq.s32.totalorder 0, 0
  // Predicated region
  $region14: #{transformer_forward.31} parent=0 // pred_check
    %p16 = pneg %p15
  $region15: #{transformer_forward.31} parent=0 // pred_check_branch
    %18 = sbr.rel (%p16) target = $region17
  $region16: #{transformer_forward.31} parent=0 // pred_region
    %19 = vst [vmem:[#allocation2] sm:$0xff] 0.0
    %20 = vst [vmem:[#allocation2 + $0x8] sm:$0xff] 0.0
  $region17: #{transformer_forward.31} parent=0 // pred_fallthru
    _
  %v21 = vld [vmem:[#allocation2] sm:$0xff]
  %v22 = vld [vmem:[#allocation2 + $0x8] sm:$0xff]
  %v23 = vld [vmem:[%s0] sm:$0xf]
  %v24 = vld [vmem:[%s0 + $0x4] sm:$0xf]
  %v25 = vld [vmem:[%s1] sm:$0xf]
  %v26 = vld [vmem:[%s1 + $0x4] sm:$0xf]
  %v27 = vld [vmem:[%s1 + $0x8] sm:$0xf]
  %v28 = vld [vmem:[%s1 + $0xc] sm:$0xf]
  %v31 = vunpack.c.l.b16 %v23
  %v32 = vunpack.c.l.b16 %v24
  %v33 = vpack.c.b16 %v32, %v31
  %v38 = vunpack.c.l.b16 %v25
  %v39 = vunpack.c.l.b16 %v26
  %v40 = vunpack.c.l.b16 %v27
  %v41 = vunpack.c.l.b16 %v28
  %v42 = vpack.c.b16 %v39, %v38
  %v43 = vpack.c.b16 %v41, %v40
  %vm46 = vcmask 261120
  %v48 = vsel %vm46, %v33, 0
  %50 = vmatprep.subr.bf16.mxu0 0
  %51 = vmatpush1.bf16.msra.mxu0 %v42
  %52 = vmatprep.subr.bf16.mxu0 0
  %53 = vmatpush1.bf16.msra.mxu0 %v43
  %54 = vmatprep.subr.bf16.mxu0 0
  %55 = vmatpush1.bf16.msra.mxu0 0
  %56 = vmatprep.subr.bf16.mxu0 0
  %57 = vmatpush1.bf16.msra.mxu0 0
  %58 = vmatprep.subr.bf16.mxu0 0
  %59 = vmatpush1.bf16.msra.mxu0 0
  %60 = vmatprep.subr.bf16.mxu0 0
  %61 = vmatpush1.bf16.msra.mxu0 0
  %62 = vmatprep.subr.bf16.mxu0 0
  %63 = vmatpush1.bf16.msra.mxu0 0
  %64 = vmatprep.subr.bf16.mxu0 0
  %65 = vmatpush1.bf16.msra.mxu0 0
  %66 = vmatprep.subr.bf16.mxu0 0
  %67 = vmatpush1.bf16.msra.mxu0 0
  %68 = vmatprep.subr.bf16.mxu0 0
  %69 = vmatpush1.bf16.msra.mxu0 0
  %70 = vmatprep.subr.bf16.mxu0 0
  %71 = vmatpush1.bf16.msra.mxu0 0
  %72 = vmatprep.subr.bf16.mxu0 0
  %73 = vmatpush1.bf16.msra.mxu0 0
  %74 = vmatprep.subr.bf16.mxu0 0
  %75 = vmatpush1.bf16.msra.mxu0 0
  %76 = vmatprep.subr.bf16.mxu0 0
  %77 = vmatpush1.bf16.msra.mxu0 0
  %78 = vmatprep.subr.bf16.mxu0 0
  %79 = vmatpush1.bf16.msra.mxu0 0
  %80 = vmatprep.subr.bf16.mxu0 0
  %81 = vmatpush1.bf16.msra.mxu0 0
  %82 = vmatprep.mubr.bf16.mxu0 0
  %83 = vmatmul.mubr.bf16.gmra.mrb[0].mxu0 %v48
  %v84 = vpop.f32.mrb[0].mxu0
  %v85 = vadd.f32 0.0, %v84
  %v86 = vpop.f32.mrb[0].mxu0
  %v87 = vpop.f32.mrb[0].mxu0
  %v88 = vadd.f32 0.0, %v87
  %v89 = vpop.f32.mrb[0].mxu0
  %90 = vdwg.mxu0
  %v91 = vadd.f32 %v21, %v85
  %v92 = vadd.f32 %v22, %v88
  %93 = vst [vmem:[#allocation2] sm:$0xff] %v91
  %94 = vst [vmem:[#allocation2 + $0x8] sm:$0xff] %v92
  // Predicated region
  $region18: #{transformer_forward.31} parent=0 // pred_check
    %p95 = pneg %p15
  $region19: #{transformer_forward.31} parent=0 // pred_check_branch
    %97 = sbr.rel (%p95) target = $region21
  $region20: #{transformer_forward.31} parent=0 // pred_region
    %v98 = vld [vmem:[#allocation2] sm:$0xff]
    %v99 = vld [vmem:[#allocation2 + $0x8] sm:$0xff]
    %v100 = vld [vmem:[%s2] sm:$0x1]
    %v102 = vlaneseq
    %v103 = vshrl.u32 %v102, 7
    %v104 = vsub.s32 0, %v103
    %v105 = vrot.slane %v100, %v104
    %v107 = vadd.f32 %v98, %v105
    %v108 = vadd.f32 %v99, %v105
    %v109 = vmul.f32 %v107, 0.5
    %v110 = vmul.f32 %v108, 0.5
    %v111 = vmul.f32 %v107, 0.70710677
    %v112 = vmul.f32 %v108, 0.70710677
    %v113 = verf.f32.pop %v111
    %v114 = verf.f32.pop %v112
    %v115 = vadd.f32 %v113, 1.0
    %v116 = vadd.f32 %v114, 1.0
    %v117 = vmul.f32 %v109, %v115
    %v118 = vmul.f32 %v110, %v116
    %v119 = vpack.c.bf16 %v118, %v117
    %v121 = vunpack.c.l.b16 %v119
    %v122 = vunpack.c.h.b16 %v119
    %v123 = vpack.c.b16 %v121, %v121
    %v124 = vpack.c.b16 %v122, %v122
    %127 = vst [vmem:[%s3] sm:$0xf] %v123
    %128 = vst [vmem:[%s3 + $0x4] sm:$0xf] %v124
  $region21: #{transformer_forward.31} parent=0 // pred_fallthru
    _
  // Predicated region
  $region22: #{transformer_forward.31} parent=0 // pred_check
    _
  $region23: #{transformer_forward.31} parent=0 // pred_check_branch
    %130 = sbr.rel (0) target = $region25
  $region24: #{transformer_forward.31} parent=0 // pred_region
    _
  $region25: #{transformer_forward.31} parent=0 // pred_fallthru
    _
  // Predicated region
  $region26: #{transformer_forward.31} parent=0 // pred_check
    _
  $region27: #{transformer_forward.31} parent=0 // pred_check_branch
    %132 = sbr.rel (0) target = $region29
  $region28: #{transformer_forward.31} parent=0 // pred_region
    _
  $region29: #{transformer_forward.31} parent=0 // pred_fallthru
    _

// kernel: transformer_forward.29
$region0: #{transformer_forward.29}
  #allocation0 [shape = 'u32[]', space=smem, size = 0x4, offset = 0x4, fixed_abs, tag = 'smem constant byte address 0x4 - core index']
  #allocation1 [shape = 'u32[144,128]{1,0:T(1,128)}', space=vmem, size = 0x12000, scoped, tag = 'internal scratch']
  %s0 = inlined_call_operand.vmem [shape: f32[2,1,8], index: 0, kind: input, shape index: {}]
  %s1 = inlined_call_operand.vmem [shape: bf16[2,4,8,8], index: 1, kind: input, shape index: {}]
  %s2 = inlined_call_operand.vmem [shape: bf16[2,4,8,8], index: 2, kind: input, shape index: {}]
  %s3 = inlined_call_operand.vmem [shape: bf16[2,4,8,8], index: 3, kind: input, shape index: {}]
  %s4 = inlined_call_operand.vmem [shape: bf16[2,4,8,8], index: 4, kind: output, shape index: {0}]
  %s5 = inlined_call_operand.hbm [shape: f32[2,4,8,8], index: 5, kind: output, shape index: {1}]
  %6 = xla_tuple %s4, %s5
  %s7 = sld [smem:[#allocation0]]
  $region57: #{transformer_forward.29} parent=0
    _
  %s9 = ssub.s32 1, %s7
  %s10 = scalar_select 0, %s9, %s7
  $region1: #{transformer_forward.29} parent=0
    #allocation2 [shape = 'u8[32768]{0}', space=vmem, size = 0x8000, scoped, tag = 'output window, operand 1']
    #allocation3 [shape = 's32[2]{0}', space=sflag, size = 0x8, scoped, tag = 'scoped memory for transformer_forward.29']
    %11 = vsyncpa [#allocation3], 0
    %s12 = scalar_lea.sflag [#allocation3], 1
    %13 = vsyncpa %s12, 0
    loop: start=0, step=1, limit=4
    $region2: #{transformer_forward.29} parent=1 // loop_pre_header
      _
    $region3: #{transformer_forward.29} parent=1 // loop_header
      %s15 = sphi 0, %s19
      %p16 = scmp.ge.s32.totalorder %s15, 4
      %s25 = sphi 0, %s27
      %s28 = sphi 0, %s25
      %s29 = sphi 0, %s28
      %s45 = sphi 0, %s29
      %s51 = sphi 0, %s53
      %s54 = sphi 0, %s51
      %s55 = sphi 0, %s54
      %s71 = sphi 0, %s55
      %s77 = sphi 0, %s79
      %s80 = sphi 0, %s77
      %s81 = sphi 0, %s80
      %s97 = sphi 0, %s81
      %s103 = sphi 0, %s105
      %s106 = sphi 0, %s103
      %s107 = sphi 0, %s106
      %s123 = sphi 0, %s107
      %s129 = sphi 0, %s131
      %s132 = sphi 0, %s129
      %s133 = sphi 0, %s132
      %s149 = sphi 0, %s133
      %s155 = sphi 0, %s157
      %s158 = sphi 0, %s155
      %s159 = sphi 0, %s158
      %s175 = sphi 0, %s159
    $region4: #{transformer_forward.29} parent=1 // loop_header_branch
      %18 = sbr.rel (%p16) target = $region8
    $region5: #{transformer_forward.29} parent=1 // loop_body
      %s20 = ssub.s32 %s15, 1
      %s21 = ssub.s32 %s15, 2
      %s22 = sadd.s32 %s15, 1
      %s23 = ssub.s32 %s15, %s22
      %p24 = scmp.eq.s32.totalorder %s23, 0
      %s26 = sadd.s32 %s25, 1
      %s27 = scalar_select %p24, %s25, %s26
      %p30 = pneg %p24
      %p31 = scmp.eq.s32.totalorder %s15, 1
      %p32 = por %p30, %p31
      %p33 = scmp.ne.s32.totalorder %s25, %s28
      %p34 = scmp.eq.s32.totalorder %s15, 0
      %p35 = por %p33, %p34
      %p36 = scmp.ne.s32.totalorder %s25, %s28
      %p37 = scmp.eq.s32.totalorder %s20, 1
      %p38 = por %p36, %p37
      %p39 = scmp.ne.s32.totalorder %s28, %s29
      %p40 = scmp.eq.s32.totalorder %s20, 0
      %p41 = por %p39, %p40
      %p42 = scmp.ne.s32.totalorder %s28, %s29
      %p43 = scmp.eq.s32.totalorder %s21, 1
      %p44 = por %p42, %p43
      %p46 = scmp.ne.s32.totalorder %s29, %s45
      %p47 = scmp.eq.s32.totalorder %s21, 0
      %p48 = por %p46, %p47
      %s49 = ssub.s32 %s15, %s22
      %p50 = scmp.eq.s32.totalorder %s49, 0
      %s52 = sadd.s32 %s51, 1
      %s53 = scalar_select %p50, %s51, %s52
      %p56 = pneg %p50
      %p57 = scmp.eq.s32.totalorder %s15, 1
      %p58 = por %p56, %p57
      %p59 = scmp.ne.s32.totalorder %s51, %s54
      %p60 = scmp.eq.s32.totalorder %s15, 0
      %p61 = por %p59, %p60
      %p62 = scmp.ne.s32.totalorder %s51, %s54
      %p63 = scmp.eq.s32.totalorder %s20, 1
      %p64 = por %p62, %p63
      %p65 = scmp.ne.s32.totalorder %s54, %s55
      %p66 = scmp.eq.s32.totalorder %s20, 0
      %p67 = por %p65, %p66
      %p68 = scmp.ne.s32.totalorder %s54, %s55
      %p69 = scmp.eq.s32.totalorder %s21, 1
      %p70 = por %p68, %p69
      %p72 = scmp.ne.s32.totalorder %s55, %s71
      %p73 = scmp.eq.s32.totalorder %s21, 0
      %p74 = por %p72, %p73
      %s75 = ssub.s32 %s15, %s22
      %p76 = scmp.eq.s32.totalorder %s75, 0
      %s78 = sadd.s32 %s77, 1
      %s79 = scalar_select %p76, %s77, %s78
      %p82 = pneg %p76
      %p83 = scmp.eq.s32.totalorder %s15, 1
      %p84 = por %p82, %p83
      %p85 = scmp.ne.s32.totalorder %s77, %s80
      %p86 = scmp.eq.s32.totalorder %s15, 0
      %p87 = por %p85, %p86
      %p88 = scmp.ne.s32.totalorder %s77, %s80
      %p89 = scmp.eq.s32.totalorder %s20, 1
      %p90 = por %p88, %p89
      %p91 = scmp.ne.s32.totalorder %s80, %s81
      %p92 = scmp.eq.s32.totalorder %s20, 0
      %p93 = por %p91, %p92
      %p94 = scmp.ne.s32.totalorder %s80, %s81
      %p95 = scmp.eq.s32.totalorder %s21, 1
      %p96 = por %p94, %p95
      %p98 = scmp.ne.s32.totalorder %s81, %s97
      %p99 = scmp.eq.s32.totalorder %s21, 0
      %p100 = por %p98, %p99
      %s101 = ssub.s32 %s15, %s22
      %p102 = scmp.eq.s32.totalorder %s101, 0
      %s104 = sadd.s32 %s103, 1
      %s105 = scalar_select %p102, %s103, %s104
      %p108 = pneg %p102
      %p109 = scmp.eq.s32.totalorder %s15, 1
      %p110 = por %p108, %p109
      %p111 = scmp.ne.s32.totalorder %s103, %s106
      %p112 = scmp.eq.s32.totalorder %s15, 0
      %p113 = por %p111, %p112
      %p114 = scmp.ne.s32.totalorder %s103, %s106
      %p115 = scmp.eq.s32.totalorder %s20, 1
      %p116 = por %p114, %p115
      %p117 = scmp.ne.s32.totalorder %s106, %s107
      %p118 = scmp.eq.s32.totalorder %s20, 0
      %p119 = por %p117, %p118
      %p120 = scmp.ne.s32.totalorder %s106, %s107
      %p121 = scmp.eq.s32.totalorder %s21, 1
      %p122 = por %p120, %p121
      %p124 = scmp.ne.s32.totalorder %s107, %s123
      %p125 = scmp.eq.s32.totalorder %s21, 0
      %p126 = por %p124, %p125
      %s127 = ssub.s32 %s15, %s22
      %p128 = scmp.eq.s32.totalorder %s127, 0
      %s130 = sadd.s32 %s129, 1
      %s131 = scalar_select %p128, %s129, %s130
      %p134 = pneg %p128
      %p135 = scmp.eq.s32.totalorder %s15, 1
      %p136 = por %p134, %p135
      %p137 = scmp.ne.s32.totalorder %s129, %s132
      %p138 = scmp.eq.s32.totalorder %s15, 0
      %p139 = por %p137, %p138
      %p140 = scmp.ne.s32.totalorder %s129, %s132
      %p141 = scmp.eq.s32.totalorder %s20, 1
      %p142 = por %p140, %p141
      %p143 = scmp.ne.s32.totalorder %s132, %s133
      %p144 = scmp.eq.s32.totalorder %s20, 0
      %p145 = por %p143, %p144
      %p146 = scmp.ne.s32.totalorder %s132, %s133
      %p147 = scmp.eq.s32.totalorder %s21, 1
      %p148 = por %p146, %p147
      %p150 = scmp.ne.s32.totalorder %s133, %s149
      %p151 = scmp.eq.s32.totalorder %s21, 0
      %p152 = por %p150, %p151
      %s153 = ssub.s32 %s15, %s22
      %p154 = scmp.eq.s32.totalorder %s153, 0
      %s156 = sadd.s32 %s155, 1
      %s157 = scalar_select %p154, %s155, %s156
      %p160 = pneg %p154
      %p161 = scmp.eq.s32.totalorder %s15, 1
      %p162 = por %p160, %p161
      %p163 = scmp.ne.s32.totalorder %s155, %s158
      %p164 = scmp.eq.s32.totalorder %s15, 0
      %p165 = por %p163, %p164
      %p166 = scmp.ne.s32.totalorder %s155, %s158
      %p167 = scmp.eq.s32.totalorder %s20, 1
      %p168 = por %p166, %p167
      %p169 = scmp.ne.s32.totalorder %s158, %s159
      %p170 = scmp.eq.s32.totalorder %s20, 0
      %p171 = por %p169, %p170
      %p172 = scmp.ne.s32.totalorder %s158, %s159
      %p173 = scmp.eq.s32.totalorder %s21, 1
      %p174 = por %p172, %p173
      %p176 = scmp.ne.s32.totalorder %s159, %s175
      %p177 = scmp.eq.s32.totalorder %s21, 0
      %p178 = por %p176, %p177
      %p179 = scmp.le.s32.totalorder 1, %s15
      %p180 = scmp.lt.s32.totalorder %s15, 3
      %p181 = pnand %p179, %p180
      %p182 = pneg %p181
      // Predicated region
      $region9: #{transformer_forward.29} parent=5 // pred_check
        _
      $region10: #{transformer_forward.29} parent=5 // pred_check_branch
        %184 = sbr.rel (%p181) target = $region12
      $region11: #{transformer_forward.29} parent=5 // pred_region
        %s185 = ssub.s32 %s15, 1
      $region12: #{transformer_forward.29} parent=5 // pred_fallthru
        _
      %p186 = scmp.lt.s32.totalorder %s15, 2
      // Predicated region
      $region13: #{transformer_forward.29} parent=5 // pred_check
        %p187 = pneg %p186
      $region14: #{transformer_forward.29} parent=5 // pred_check_branch
        %189 = sbr.rel (%p187) target = $region16
      $region15: #{transformer_forward.29} parent=5 // pred_region
        // Predicated region
        $region17: #{transformer_forward.29} parent=15 // pred_check
          %p190 = pneg %p35
        $region18: #{transformer_forward.29} parent=15 // pred_check_branch
          %192 = sbr.rel (%p190) target = $region20
        $region19: #{transformer_forward.29} parent=15 // pred_region
          %p193 = scmp.lt.s32.totalorder %s15, 1
          %s194 = scalar_select %p193, %s15, 1
          %s195 = scalar_lea.vmem %s0, %s194
        $region20: #{transformer_forward.29} parent=15 // pred_fallthru
          _
        // Predicated region
        $region21: #{transformer_forward.29} parent=15 // pred_check
          %p196 = pneg %p61
        $region22: #{transformer_forward.29} parent=15 // pred_check_branch
          %198 = sbr.rel (%p196) target = $region24
        $region23: #{transformer_forward.29} parent=15 // pred_region
          %p199 = scmp.lt.s32.totalorder %s15, 1
          %s200 = scalar_select %p199, %s15, 1
          %s201 = smul.addr %s200, 4
          %s202 = smul.addr %s201, 4
          %s203 = scalar_lea.vmem %s1, %s202
        $region24: #{transformer_forward.29} parent=15 // pred_fallthru
          _
        // Predicated region
        $region25: #{transformer_forward.29} parent=15 // pred_check
          %p204 = pneg %p87
        $region26: #{transformer_forward.29} parent=15 // pred_check_branch
          %206 = sbr.rel (%p204) target = $region28
        $region27: #{transformer_forward.29} parent=15 // pred_region
          %p207 = scmp.lt.s32.totalorder %s15, 1
          %s208 = scalar_select %p207, %s15, 1
          %s209 = smul.addr %s208, 4
          %s210 = smul.addr %s209, 4
          %s211 = scalar_lea.vmem %s2, %s210
        $region28: #{transformer_forward.29} parent=15 // pred_fallthru
          _
        // Predicated region
        $region29: #{transformer_forward.29} parent=15 // pred_check
          %p212 = pneg %p113
        $region30: #{transformer_forward.29} parent=15 // pred_check_branch
          %214 = sbr.rel (%p212) target = $region32
        $region31: #{transformer_forward.29} parent=15 // pred_region
          %p215 = scmp.lt.s32.totalorder %s15, 1
          %s216 = scalar_select %p215, %s15, 1
          %s217 = smul.addr %s216, 4
          %s218 = smul.addr %s217, 4
          %s219 = scalar_lea.vmem %s3, %s218
        $region32: #{transformer_forward.29} parent=15 // pred_fallthru
          _
      $region16: #{transformer_forward.29} parent=5 // pred_fallthru
        _
      %p220 = scmp.le.s32.totalorder 1, %s15
      %p221 = scmp.lt.s32.totalorder %s15, 3
      %p222 = pnand %p220, %p221
      %p223 = pneg %p222
      // Predicated region
      $region33: #{transformer_forward.29} parent=5 // pred_check
        _
      $region34: #{transformer_forward.29} parent=5 // pred_check_branch
        %225 = sbr.rel (%p222) target = $region36
      $region35: #{transformer_forward.29} parent=5 // pred_region
        %s226 = ssub.s32 %s15, 1
        %p227 = scmp.lt.s32.totalorder %s20, 1
        %s228 = scalar_select %p227, %s20, 1
        %s229 = scalar_lea.vmem %s0, %s228
        %p230 = pneg %p41
        %p231 = pneg %p38
        %p232 = scmp.lt.s32.totalorder %s20, 1
        %s233 = scalar_select %p232, %s20, 1
        %s234 = smul.addr %s233, 4
        %s235 = smul.addr %s234, 4
        %s236 = scalar_lea.vmem %s1, %s235
        %p237 = pneg %p67
        %p238 = pneg %p64
        %p239 = scmp.lt.s32.totalorder %s20, 1
        %s240 = scalar_select %p239, %s20, 1
        %s241 = smul.addr %s240, 4
        %s242 = smul.addr %s241, 4
        %s243 = scalar_lea.vmem %s2, %s242
        %p244 = pneg %p93
        %p245 = pneg %p90
        %p246 = scmp.lt.s32.totalorder %s20, 1
        %s247 = scalar_select %p246, %s20, 1
        %s248 = smul.addr %s247, 4
        %s249 = smul.addr %s248, 4
        %s250 = scalar_lea.vmem %s3, %s249
        %p251 = pneg %p119
        %p252 = pneg %p116
        %p253 = pneg %p145
        %p254 = pneg %p142
        %p255 = scmp.lt.s32.totalorder %s20, 1
        %s256 = scalar_select %p255, %s20, 1
        %s257 = smul.addr %s256, 4
        %s258 = smul.addr %s257, 4
        %s259 = scalar_lea.vmem %s4, %s258
        %p260 = pneg %p171
        %p261 = pneg %p168
        %s262 = sand.u32 %s158, 1
        %s263 = scalar_lea.sflag [#allocation3], %s262
        %s264 = sand.u32 %s158, 1
        %s265 = smul.addr %s264, 32
        %s266 = scalar_lea.vmem [#allocation2], %s265
        %p267 = scmp.lt.s32.totalorder %s20, 1
        %s268 = scalar_select %p267, %s20, 1
        %s269 = scalar_lea.vmem %s0, %s268
        %p270 = scmp.lt.s32.totalorder %s20, 1
        %s271 = scalar_select %p270, %s20, 1
        %s272 = smul.addr %s271, 4
        %s273 = smul.addr %s272, 4
        %s274 = scalar_lea.vmem %s1, %s273
        %p275 = scmp.lt.s32.totalorder %s20, 1
        %s276 = scalar_select %p275, %s20, 1
        %s277 = smul.addr %s276, 4
        %s278 = smul.addr %s277, 4
        %s279 = scalar_lea.vmem %s2, %s278
        %p280 = scmp.lt.s32.totalorder %s20, 1
        %s281 = scalar_select %p280, %s20, 1
        %s282 = smul.addr %s281, 4
        %s283 = smul.addr %s282, 4
        %s284 = scalar_lea.vmem %s3, %s283
        %p285 = scmp.lt.s32.totalorder %s20, 1
        %s286 = scalar_select %p285, %s20, 1
        %s287 = smul.addr %s286, 4
        %s288 = smul.addr %s287, 4
        %s289 = scalar_lea.vmem %s4, %s288
        %v291 = vld [vmem:[%s274] sm:$0xf]
        %v292 = vld [vmem:[%s274 + $0x4] sm:$0xf]
        %v293 = vld [vmem:[%s274 + $0x8] sm:$0xf]
        %v294 = vld [vmem:[%s274 + $0xc] sm:$0xf]
        %v295 = vld [vmem:[%s279] sm:$0xf]
        %v296 = vld [vmem:[%s279 + $0x4] sm:$0xf]
        %v297 = vld [vmem:[%s279 + $0x8] sm:$0xf]
        %v298 = vld [vmem:[%s279 + $0xc] sm:$0xf]
        %v299 = vld [vmem:[%s284] sm:$0xf]
        %v300 = vld [vmem:[%s284 + $0x4] sm:$0xf]
        %v301 = vld [vmem:[%s284 + $0x8] sm:$0xf]
        %v302 = vld [vmem:[%s284 + $0xc] sm:$0xf]
        %vm303 = vcmask 64512
        %v305 = vsel %vm303, %v291, 0
        %v308 = vsel %vm303, %v295, 0
        %310 = vmatprep.subr.bf16.mxu0 0
        %311 = vmatpush1.bf16.xpose.msra.mxu0 %v308
        %312 = vmatprep.subr.bf16.mxu0 0
        %313 = vmatpush1.bf16.xpose.msra.mxu0 0
        %314 = vmatprep.subr.bf16.mxu0 0
        %315 = vmatpush1.bf16.xpose.msra.mxu0 0
        %316 = vmatprep.subr.bf16.mxu0 0
        %317 = vmatpush1.bf16.xpose.msra.mxu0 0
        %318 = vmatprep.subr.bf16.mxu0 0
        %319 = vmatpush1.bf16.xpose.msra.mxu0 0
        %320 = vmatprep.subr.bf16.mxu0 0
        %321 = vmatpush1.bf16.xpose.msra.mxu0 0
        %322 = vmatprep.subr.bf16.mxu0 0
        %323 = vmatpush1.bf16.xpose.msra.mxu0 0
        %324 = vmatprep.subr.bf16.mxu0 0
        %325 = vmatpush1.bf16.xpose.msra.mxu0 0
        %326 = vmatprep.subr.bf16.mxu0 0
        %327 = vmatpush1.bf16.xpose.msra.mxu0 0
        %328 = vmatprep.subr.bf16.mxu0 0
        %329 = vmatpush1.bf16.xpose.msra.mxu0 0
        %330 = vmatprep.subr.bf16.mxu0 0
        %331 = vmatpush1.bf16.xpose.msra.mxu0 0
        %332 = vmatprep.subr.bf16.mxu0 0
        %333 = vmatpush1.bf16.xpose.msra.mxu0 0
        %334 = vmatprep.subr.bf16.mxu0 0
        %335 = vmatpush1.bf16.xpose.msra.mxu0 0
        %336 = vmatprep.subr.bf16.mxu0 0
        %337 = vmatpush1.bf16.xpose.msra.mxu0 0
        %338 = vmatprep.subr.bf16.mxu0 0
        %339 = vmatpush1.bf16.xpose.msra.mxu0 0
        %340 = vmatprep.subr.bf16.mxu0 0
        %341 = vmatpush1.bf16.xpose.msra.mxu0 0
        %342 = vmatprep.mubr.bf16.mxu0 0
        %343 = vmatmul.mubr.bf16.gmra.mrb[0].mxu0 %v305
        %v344 = vpop.f32.mrb[0].mxu0
        %v345 = vadd.f32 0.0, %v344
        %v346 = vpop.f32.mrb[0].mxu0
        %v347 = vpop.f32.mrb[0].mxu0
        %v348 = vpop.f32.mrb[0].mxu0
        %349 = vdwg.mxu0
        %v351 = vsel %vm303, %v292, 0
        %v354 = vsel %vm303, %v296, 0
        %356 = vmatprep.subr.bf16.mxu0 0
        %357 = vmatpush1.bf16.xpose.msra.mxu0 %v354
        %358 = vmatprep.subr.bf16.mxu0 0
        %359 = vmatpush1.bf16.xpose.msra.mxu0 0
        %360 = vmatprep.subr.bf16.mxu0 0
        %361 = vmatpush1.bf16.xpose.msra.mxu0 0
        %362 = vmatprep.subr.bf16.mxu0 0
        %363 = vmatpush1.bf16.xpose.msra.mxu0 0
        %364 = vmatprep.subr.bf16.mxu0 0
        %365 = vmatpush1.bf16.xpose.msra.mxu0 0
        %366 = vmatprep.subr.bf16.mxu0 0
        %367 = vmatpush1.bf16.xpose.msra.mxu0 0
        %368 = vmatprep.subr.bf16.mxu0 0
        %369 = vmatpush1.bf16.xpose.msra.mxu0 0
        %370 = vmatprep.subr.bf16.mxu0 0
        %371 = vmatpush1.bf16.xpose.msra.mxu0 0
        %372 = vmatprep.subr.bf16.mxu0 0
        %373 = vmatpush1.bf16.xpose.msra.mxu0 0
        %374 = vmatprep.subr.bf16.mxu0 0
        %375 = vmatpush1.bf16.xpose.msra.mxu0 0
        %376 = vmatprep.subr.bf16.mxu0 0
        %377 = vmatpush1.bf16.xpose.msra.mxu0 0
        %378 = vmatprep.subr.bf16.mxu0 0
        %379 = vmatpush1.bf16.xpose.msra.mxu0 0
        %380 = vmatprep.subr.bf16.mxu0 0
        %381 = vmatpush1.bf16.xpose.msra.mxu0 0
        %382 = vmatprep.subr.bf16.mxu0 0
        %383 = vmatpush1.bf16.xpose.msra.mxu0 0
        %384 = vmatprep.subr.bf16.mxu0 0
        %385 = vmatpush1.bf16.xpose.msra.mxu0 0
        %386 = vmatprep.subr.bf16.mxu0 0
        %387 = vmatpush1.bf16.xpose.msra.mxu0 0
        %388 = vmatprep.mubr.bf16.mxu0 0
        %389 = vmatmul.mubr.bf16.gmra.mrb[0].mxu0 %v351
        %v390 = vpop.f32.mrb[0].mxu0
        %v391 = vadd.f32 0.0, %v390
        %v392 = vpop.f32.mrb[0].mxu0
        %v393 = vpop.f32.mrb[0].mxu0
        %v394 = vpop.f32.mrb[0].mxu0
        %395 = vdwg.mxu0
        %v397 = vsel %vm303, %v293, 0
        %v400 = vsel %vm303, %v297, 0
        %402 = vmatprep.subr.bf16.mxu0 0
        %403 = vmatpush1.bf16.xpose.msra.mxu0 %v400
        %404 = vmatprep.subr.bf16.mxu0 0
        %405 = vmatpush1.bf16.xpose.msra.mxu0 0
        %406 = vmatprep.subr.bf16.mxu0 0
        %407 = vmatpush1.bf16.xpose.msra.mxu0 0
        %408 = vmatprep.subr.bf16.mxu0 0
        %409 = vmatpush1.bf16.xpose.msra.mxu0 0
        %410 = vmatprep.subr.bf16.mxu0 0
        %411 = vmatpush1.bf16.xpose.msra.mxu0 0
        %412 = vmatprep.subr.bf16.mxu0 0
        %413 = vmatpush1.bf16.xpose.msra.mxu0 0
        %414 = vmatprep.subr.bf16.mxu0 0
        %415 = vmatpush1.bf16.xpose.msra.mxu0 0
        %416 = vmatprep.subr.bf16.mxu0 0
        %417 = vmatpush1.bf16.xpose.msra.mxu0 0
        %418 = vmatprep.subr.bf16.mxu0 0
        %419 = vmatpush1.bf16.xpose.msra.mxu0 0
        %420 = vmatprep.subr.bf16.mxu0 0
        %421 = vmatpush1.bf16.xpose.msra.mxu0 0
        %422 = vmatprep.subr.bf16.mxu0 0
        %423 = vmatpush1.bf16.xpose.msra.mxu0 0
        %424 = vmatprep.subr.bf16.mxu0 0
        %425 = vmatpush1.bf16.xpose.msra.mxu0 0
        %426 = vmatprep.subr.bf16.mxu0 0
        %427 = vmatpush1.bf16.xpose.msra.mxu0 0
        %428 = vmatprep.subr.bf16.mxu0 0
        %429 = vmatpush1.bf16.xpose.msra.mxu0 0
        %430 = vmatprep.subr.bf16.mxu0 0
        %431 = vmatpush1.bf16.xpose.msra.mxu0 0
        %432 = vmatprep.subr.bf16.mxu0 0
        %433 = vmatpush1.bf16.xpose.msra.mxu0 0
        %434 = vmatprep.mubr.bf16.mxu0 0
        %435 = vmatmul.mubr.bf16.gmra.mrb[0].mxu0 %v397
        %v436 = vpop.f32.mrb[0].mxu0
        %v437 = vadd.f32 0.0, %v436
        %v438 = vpop.f32.mrb[0].mxu0
        %v439 = vpop.f32.mrb[0].mxu0
        %v440 = vpop.f32.mrb[0].mxu0
        %441 = vdwg.mxu0
        %v443 = vsel %vm303, %v294, 0
        %v446 = vsel %vm303, %v298, 0
        %448 = vmatprep.subr.bf16.mxu0 0
        %449 = vmatpush1.bf16.xpose.msra.mxu0 %v446
        %450 = vmatprep.subr.bf16.mxu0 0
        %451 = vmatpush1.bf16.xpose.msra.mxu0 0
        %452 = vmatprep.subr.bf16.mxu0 0
        %453 = vmatpush1.bf16.xpose.msra.mxu0 0
        %454 = vmatprep.subr.bf16.mxu0 0
        %455 = vmatpush1.bf16.xpose.msra.mxu0 0
        %456 = vmatprep.subr.bf16.mxu0 0
        %457 = vmatpush1.bf16.xpose.msra.mxu0 0
        %458 = vmatprep.subr.bf16.mxu0 0
        %459 = vmatpush1.bf16.xpose.msra.mxu0 0
        %460 = vmatprep.subr.bf16.mxu0 0
        %461 = vmatpush1.bf16.xpose.msra.mxu0 0
        %462 = vmatprep.subr.bf16.mxu0 0
        %463 = vmatpush1.bf16.xpose.msra.mxu0 0
        %464 = vmatprep.subr.bf16.mxu0 0
        %465 = vmatpush1.bf16.xpose.msra.mxu0 0
        %466 = vmatprep.subr.bf16.mxu0 0
        %467 = vmatpush1.bf16.xpose.msra.mxu0 0
        %468 = vmatprep.subr.bf16.mxu0 0
        %469 = vmatpush1.bf16.xpose.msra.mxu0 0
        %470 = vmatprep.subr.bf16.mxu0 0
        %471 = vmatpush1.bf16.xpose.msra.mxu0 0
        %472 = vmatprep.subr.bf16.mxu0 0
        %473 = vmatpush1.bf16.xpose.msra.mxu0 0
        %474 = vmatprep.subr.bf16.mxu0 0
        %475 = vmatpush1.bf16.xpose.msra.mxu0 0
        %476 = vmatprep.subr.bf16.mxu0 0
        %477 = vmatpush1.bf16.xpose.msra.mxu0 0
        %478 = vmatprep.subr.bf16.mxu0 0
        %479 = vmatpush1.bf16.xpose.msra.mxu0 0
        %480 = vmatprep.mubr.bf16.mxu0 0
        %481 = vmatmul.mubr.bf16.gmra.mrb[0].mxu0 %v443
        %v482 = vpop.f32.mrb[0].mxu0
        %v483 = vadd.f32 0.0, %v482
        %v484 = vpop.f32.mrb[0].mxu0
        %v485 = vpop.f32.mrb[0].mxu0
        %v486 = vpop.f32.mrb[0].mxu0
        %487 = vdwg.mxu0
        %v488 = vmul.f32 %v345, 0.35355338
        %v489 = vmul.f32 %v391, 0.35355338
        %v490 = vmul.f32 %v437, 0.35355338
        %v491 = vmul.f32 %v483, 0.35355338
        %v492 = vld [vmem:[%s269] sm:$0x1]
        %vm493 = vcmp.eq.f32.partialorder %v492, 0.0
        %v494 = vsel %vm493, 1, 0
        %v495 = vlaneseq
        %v496 = vshrl.u32 %v495, 7
        %v497 = vsub.s32 0, %v496
        %v498 = vrot.slane %v494, %v497
        %vm499 = vcmp.eq.s32.totalorder %v498, 1
        %v500 = vsel %vm499, -1e+09, %v488
        %v501 = vsel %vm499, -1e+09, %v489
        %v502 = vsel %vm499, -1e+09, %v490
        %v503 = vsel %vm499, -1e+09, %v491
        %v504 = vsel %vm303, %v500, -inf
        %505 = vmax.xlane.f32.xlu0 %v504
        %v506 = vpop.xlane.xlu0 %505
        %v507 = vsel %vm303, %v501, -inf
        %508 = vmax.xlane.f32.xlu0 %v507
        %v509 = vpop.xlane.xlu0 %508
        %v510 = vsel %vm303, %v502, -inf
        %511 = vmax.xlane.f32.xlu0 %v510
        %v512 = vpop.xlane.xlu0 %511
        %v513 = vsel %vm303, %v503, -inf
        %514 = vmax.xlane.f32.xlu0 %v513
        %v515 = vpop.xlane.xlu0 %514
        %v516 = vsub.f32 %v500, %v506
        %v517 = vsub.f32 %v501, %v509
        %v518 = vsub.f32 %v502, %v512
        %v519 = vsub.f32 %v503, %v515
        %v520 = vmul.f32 %v516, 1.442695
        %v521 = vpow.pop %v520
        %v522 = vmul.f32 %v517, 1.442695
        %v523 = vpow.pop %v522
        %v524 = vmul.f32 %v518, 1.442695
        %v525 = vpow.pop %v524
        %v526 = vmul.f32 %v519, 1.442695
        %v527 = vpow.pop %v526
        %v528 = vsel %vm303, %v521, 0.0
        %529 = vadd.xlane.f32.xlu0 %v528
        %v530 = vpop.xlane.xlu0 %529
        %v531 = vsel %vm303, %v523, 0.0
        %532 = vadd.xlane.f32.xlu0 %v531
        %v533 = vpop.xlane.xlu0 %532
        %v534 = vsel %vm303, %v525, 0.0
        %535 = vadd.xlane.f32.xlu0 %v534
        %v536 = vpop.xlane.xlu0 %535
        %v537 = vsel %vm303, %v527, 0.0
        %538 = vadd.xlane.f32.xlu0 %v537
        %v539 = vpop.xlane.xlu0 %538
        %v540 = vrcp.pop %v530
        %v541 = vmul.f32 %v521, %v540
        %v542 = vrcp.pop %v533
        %v543 = vmul.f32 %v523, %v542
        %v544 = vrcp.pop %v536
        %v545 = vmul.f32 %v525, %v544
        %v546 = vrcp.pop %v539
        %v547 = vmul.f32 %v527, %v546
        %548 = vst.msk [vmem:[%s266] sm:$0xff] %vm303, %v541
        %549 = vst.msk [vmem:[%s266 + $0x8] sm:$0xff] %vm303, %v543
        %550 = vst.msk [vmem:[%s266 + $0x10] sm:$0xff] %vm303, %v545
        %551 = vst.msk [vmem:[%s266 + $0x18] sm:$0xff] %vm303, %v547
        %v552 = vpack.c.bf16 %v541, %v541
        %v553 = vpack.c.bf16 %v543, %v543
        %v554 = vpack.c.bf16 %v545, %v545
        %v555 = vpack.c.bf16 %v547, %v547
        %v557 = vsel %vm303, %v552, 0
        %vm559 = vcmask 1043456
        %v561 = vsel %vm559, %v299, 0
        %563 = vmatprep.subr.bf16.mxu0 0
        %564 = vmatpush1.bf16.msra.mxu0 %v561
        %565 = vmatprep.subr.bf16.mxu0 0
        %566 = vmatpush1.bf16.msra.mxu0 0
        %567 = vmatprep.subr.bf16.mxu0 0
        %568 = vmatpush1.bf16.msra.mxu0 0
        %569 = vmatprep.subr.bf16.mxu0 0
        %570 = vmatpush1.bf16.msra.mxu0 0
        %571 = vmatprep.subr.bf16.mxu0 0
        %572 = vmatpush1.bf16.msra.mxu0 0
        %573 = vmatprep.subr.bf16.mxu0 0
        %574 = vmatpush1.bf16.msra.mxu0 0
        %575 = vmatprep.subr.bf16.mxu0 0
        %576 = vmatpush1.bf16.msra.mxu0 0
        %577 = vmatprep.subr.bf16.mxu0 0
        %578 = vmatpush1.bf16.msra.mxu0 0
        %579 = vmatprep.subr.bf16.mxu0 0
        %580 = vmatpush1.bf16.msra.mxu0 0
        %581 = vmatprep.subr.bf16.mxu0 0
        %582 = vmatpush1.bf16.msra.mxu0 0
        %583 = vmatprep.subr.bf16.mxu0 0
        %584 = vmatpush1.bf16.msra.mxu0 0
        %585 = vmatprep.subr.bf16.mxu0 0
        %586 = vmatpush1.bf16.msra.mxu0 0
        %587 = vmatprep.subr.bf16.mxu0 0
        %588 = vmatpush1.bf16.msra.mxu0 0
        %589 = vmatprep.subr.bf16.mxu0 0
        %590 = vmatpush1.bf16.msra.mxu0 0
        %591 = vmatprep.subr.bf16.mxu0 0
        %592 = vmatpush1.bf16.msra.mxu0 0
        %593 = vmatprep.subr.bf16.mxu0 0
        %594 = vmatpush1.bf16.msra.mxu0 0
        %595 = vmatprep.mubr.bf16.mxu0 0
        %596 = vmatmul.mubr.bf16.gmra.mrb[0].mxu0 %v557
        %v597 = vpop.f32.mrb[0].mxu0
        %v598 = vadd.f32 0.0, %v597
        %v599 = vpop.f32.mrb[0].mxu0
        %v600 = vpop.f32.mrb[0].mxu0
        %v601 = vpop.f32.mrb[0].mxu0
        %602 = vdwg.mxu0
        %v604 = vsel %vm303, %v553, 0
        %v607 = vsel %vm559, %v300, 0
        %609 = vmatprep.subr.bf16.mxu0 0
        %610 = vmatpush1.bf16.msra.mxu0 %v607
        %611 = vmatprep.subr.bf16.mxu0 0
        %612 = vmatpush1.bf16.msra.mxu0 0
        %613 = vmatprep.subr.bf16.mxu0 0
        %614 = vmatpush1.bf16.msra.mxu0 0
        %615 = vmatprep.subr.bf16.mxu0 0
        %616 = vmatpush1.bf16.msra.mxu0 0
        %617 = vmatprep.subr.bf16.mxu0 0
        %618 = vmatpush1.bf16.msra.mxu0 0
        %619 = vmatprep.subr.bf16.mxu0 0
        %620 = vmatpush1.bf16.msra.mxu0 0
        %621 = vmatprep.subr.bf16.mxu0 0
        %622 = vmatpush1.bf16.msra.mxu0 0
        %623 = vmatprep.subr.bf16.mxu0 0
        %624 = vmatpush1.bf16.msra.mxu0 0
        %625 = vmatprep.subr.bf16.mxu0 0
        %626 = vmatpush1.bf16.msra.mxu0 0
        %627 = vmatprep.subr.bf16.mxu0 0
        %628 = vmatpush1.bf16.msra.mxu0 0
        %629 = vmatprep.subr.bf16.mxu0 0
        %630 = vmatpush1.bf16.msra.mxu0 0
        %631 = vmatprep.subr.bf16.mxu0 0
        %632 = vmatpush1.bf16.msra.mxu0 0
        %633 = vmatprep.subr.bf16.mxu0 0
        %634 = vmatpush1.bf16.msra.mxu0 0
        %635 = vmatprep.subr.bf16.mxu0 0
        %636 = vmatpush1.bf16.msra.mxu0 0
        %637 = vmatprep.subr.bf16.mxu0 0
        %638 = vmatpush1.bf16.msra.mxu0 0
        %639 = vmatprep.subr.bf16.mxu0 0
        %640 = vmatpush1.bf16.msra.mxu0 0
        %641 = vmatprep.mubr.bf16.mxu0 0
        %642 = vmatmul.mubr.bf16.gmra.mrb[0].mxu0 %v604
        %v643 = vpop.f32.mrb[0].mxu0
        %v644 = vadd.f32 0.0, %v643
        %v645 = vpop.f32.mrb[0].mxu0
        %v646 = vpop.f32.mrb[0].mxu0
        %v647 = vpop.f32.mrb[0].mxu0
        %648 = vdwg.mxu0
        %v650 = vsel %vm303, %v554, 0
        %v653 = vsel %vm559, %v301, 0
        %655 = vmatprep.subr.bf16.mxu0 0
        %656 = vmatpush1.bf16.msra.mxu0 %v653
        %657 = vmatprep.subr.bf16.mxu0 0
        %658 = vmatpush1.bf16.msra.mxu0 0
        %659 = vmatprep.subr.bf16.mxu0 0
        %660 = vmatpush1.bf16.msra.mxu0 0
        %661 = vmatprep.subr.bf16.mxu0 0
        %662 = vmatpush1.bf16.msra.mxu0 0
        %663 = vmatprep.subr.bf16.mxu0 0
        %664 = vmatpush1.bf16.msra.mxu0 0
        %665 = vmatprep.subr.bf16.mxu0 0
        %666 = vmatpush1.bf16.msra.mxu0 0
        %667 = vmatprep.subr.bf16.mxu0 0
        %668 = vmatpush1.bf16.msra.mxu0 0
        %669 = vmatprep.subr.bf16.mxu0 0
        %670 = vmatpush1.bf16.msra.mxu0 0
        %671 = vmatprep.subr.bf16.mxu0 0
        %672 = vmatpush1.bf16.msra.mxu0 0
        %673 = vmatprep.subr.bf16.mxu0 0
        %674 = vmatpush1.bf16.msra.mxu0 0
        %675 = vmatprep.subr.bf16.mxu0 0
        %676 = vmatpush1.bf16.msra.mxu0 0
        %677 = vmatprep.subr.bf16.mxu0 0
        %678 = vmatpush1.bf16.msra.mxu0 0
        %679 = vmatprep.subr.bf16.mxu0 0
        %680 = vmatpush1.bf16.msra.mxu0 0
        %681 = vmatprep.subr.bf16.mxu0 0
        %682 = vmatpush1.bf16.msra.mxu0 0
        %683 = vmatprep.subr.bf16.mxu0 0
        %684 = vmatpush1.bf16.msra.mxu0 0
        %685 = vmatprep.subr.bf16.mxu0 0
        %686 = vmatpush1.bf16.msra.mxu0 0
        %687 = vmatprep.mubr.bf16.mxu0 0
        %688 = vmatmul.mubr.bf16.gmra.mrb[0].mxu0 %v650
        %v689 = vpop.f32.mrb[0].mxu0
        %v690 = vadd.f32 0.0, %v689
        %v691 = vpop.f32.mrb[0].mxu0
        %v692 = vpop.f32.mrb[0].mxu0
        %v693 = vpop.f32.mrb[0].mxu0
        %694 = vdwg.mxu0
        %v696 = vsel %vm303, %v555, 0
        %v699 = vsel %vm559, %v302, 0
        %701 = vmatprep.subr.bf16.mxu0 0
        %702 = vmatpush1.bf16.msra.mxu0 %v699
        %703 = vmatprep.subr.bf16.mxu0 0
        %704 = vmatpush1.bf16.msra.mxu0 0
        %705 = vmatprep.subr.bf16.mxu0 0
        %706 = vmatpush1.bf16.msra.mxu0 0
        %707 = vmatprep.subr.bf16.mxu0 0
        %708 = vmatpush1.bf16.msra.mxu0 0
        %709 = vmatprep.subr.bf16.mxu0 0
        %710 = vmatpush1.bf16.msra.mxu0 0
        %711 = vmatprep.subr.bf16.mxu0 0
        %712 = vmatpush1.bf16.msra.mxu0 0
        %713 = vmatprep.subr.bf16.mxu0 0
        %714 = vmatpush1.bf16.msra.mxu0 0
        %715 = vmatprep.subr.bf16.mxu0 0
        %716 = vmatpush1.bf16.msra.mxu0 0
        %717 = vmatprep.subr.bf16.mxu0 0
        %718 = vmatpush1.bf16.msra.mxu0 0
        %719 = vmatprep.subr.bf16.mxu0 0
        %720 = vmatpush1.bf16.msra.mxu0 0
        %721 = vmatprep.subr.bf16.mxu0 0
        %722 = vmatpush1.bf16.msra.mxu0 0
        %723 = vmatprep.subr.bf16.mxu0 0
        %724 = vmatpush1.bf16.msra.mxu0 0
        %725 = vmatprep.subr.bf16.mxu0 0
        %726 = vmatpush1.bf16.msra.mxu0 0
        %727 = vmatprep.subr.bf16.mxu0 0
        %728 = vmatpush1.bf16.msra.mxu0 0
        %729 = vmatprep.subr.bf16.mxu0 0
        %730 = vmatpush1.bf16.msra.mxu0 0
        %731 = vmatprep.subr.bf16.mxu0 0
        %732 = vmatpush1.bf16.msra.mxu0 0
        %733 = vmatprep.mubr.bf16.mxu0 0
        %734 = vmatmul.mubr.bf16.gmra.mrb[0].mxu0 %v696
        %v735 = vpop.f32.mrb[0].mxu0
        %v736 = vadd.f32 0.0, %v735
        %v737 = vpop.f32.mrb[0].mxu0
        %v738 = vpop.f32.mrb[0].mxu0
        %v739 = vpop.f32.mrb[0].mxu0
        %740 = vdwg.mxu0
        %v741 = vpack.c.bf16 %v598, %v598
        %v742 = vpack.c.bf16 %v644, %v644
        %v743 = vpack.c.bf16 %v690, %v690
        %v744 = vpack.c.bf16 %v736, %v736
        %vm745 = vcmask 60416
        %746 = vst.msk [vmem:[%s289] sm:$0xf] %vm745, %v741
        %747 = vst.msk [vmem:[%s289 + $0x4] sm:$0xf] %vm745, %v742
        %748 = vst.msk [vmem:[%s289 + $0x8] sm:$0xf] %vm745, %v743
        %749 = vst.msk [vmem:[%s289 + $0xc] sm:$0xf] %vm745, %v744
        %p750 = scmp.lt.s32.totalorder %s20, 1
        %s751 = scalar_select %p750, %s20, 1
        %s752 = smul.addr %s751, 4
        %s753 = smul.addr %s752, 4
        %s754 = scalar_lea.vmem %s4, %s753
        %s755 = sand.u32 %s158, 1
        %s756 = scalar_lea.sflag [#allocation3], %s755
        %s757 = sand.u32 %s158, 1
        %s758 = smul.addr %s757, 32
        %s759 = scalar_lea.vmem [#allocation2], %s758
        // Predicated region
        $region37: #{transformer_forward.29} parent=35 // pred_check
          %p760 = pneg %p142
        $region38: #{transformer_forward.29} parent=35 // pred_check_branch
          %762 = sbr.rel (%p760) target = $region40
        $region39: #{transformer_forward.29} parent=35 // pred_region
          _
        $region40: #{transformer_forward.29} parent=35 // pred_fallthru
          _
        // Predicated region
        $region41: #{transformer_forward.29} parent=35 // pred_check
          %p763 = pneg %p168
        $region42: #{transformer_forward.29} parent=35 // pred_check_branch
          %765 = sbr.rel (%p763) target = $region44
        $region43: #{transformer_forward.29} parent=35 // pred_region
          %s767 = ssub.s32 512, 512
          %768 = vsyncadd %s756, %s767
          %s769 = smul.addr %s20, 4
          %s770 = smul.addr %s769, 128
          %s771 = scalar_lea.hbm %s5, %s770
          %s772 = sshll.u32 %s759, 4
          %s773 = int_to_ptr.vmem [resolvable:$true] %s772
          %778 = dma.vmem_to_hbm [thread:$0]  %s773, 512, %s771, %s756, 128, 128, 8
        $region44: #{transformer_forward.29} parent=35 // pred_fallthru
          _
      $region36: #{transformer_forward.29} parent=5 // pred_fallthru
        _
      %p779 = scmp.le.s32.totalorder 2, %s15
      // Predicated region
      $region45: #{transformer_forward.29} parent=5 // pred_check
        %p780 = pneg %p779
      $region46: #{transformer_forward.29} parent=5 // pred_check_branch
        %782 = sbr.rel (%p780) target = $region48
      $region47: #{transformer_forward.29} parent=5 // pred_region
        %s783 = ssub.s32 %s15, 2
        // Predicated region
        $region49: #{transformer_forward.29} parent=47 // pred_check
          %p784 = pneg %p148
        $region50: #{transformer_forward.29} parent=47 // pred_check_branch
          %786 = sbr.rel (%p784) target = $region52
        $region51: #{transformer_forward.29} parent=47 // pred_region
          %p787 = scmp.lt.s32.totalorder %s21, 1
          %s788 = scalar_select %p787, %s21, 1
          %s789 = smul.addr %s788, 4
          %s790 = smul.addr %s789, 4
          %s791 = scalar_lea.vmem %s4, %s790
        $region52: #{transformer_forward.29} parent=47 // pred_fallthru
          _
        // Predicated region
        $region53: #{transformer_forward.29} parent=47 // pred_check
          %p792 = pneg %p174
        $region54: #{transformer_forward.29} parent=47 // pred_check_branch
          %794 = sbr.rel (%p792) target = $region56
        $region55: #{transformer_forward.29} parent=47 // pred_region
          %s795 = sand.u32 %s159, 1
          %s796 = scalar_lea.sflag [#allocation3], %s795
          %s797 = sand.u32 %s159, 1
          %s798 = smul.addr %s797, 32
          %s799 = scalar_lea.vmem [#allocation2], %s798
          %800 = dma.done %s796, 512
        $region56: #{transformer_forward.29} parent=47 // pred_fallthru
          _
      $region48: #{transformer_forward.29} parent=5 // pred_fallthru
        _
    $region6: #{transformer_forward.29} parent=1 // loop_footer
      %s19 = sadd.s32 1, %s15
    $region7: #{transformer_forward.29} parent=1 // loop_footer_branch
      %14 = sbr.rel target = $region3
    $region8: #{transformer_forward.29} parent=1 // loop_exit
      _
    %801 = vsyncpa [#allocation3], 1
    %s802 = scalar_lea.sflag [#allocation3], 1
    %803 = vsyncpa %s802, 1

// kernel: transformer_forward.42
$region0: #{transformer_forward.42}
  #allocation0 [shape = 'u32[]', space=smem, size = 0x4, offset = 0x4, fixed_abs, tag = 'smem constant byte address 0x4 - core index']
  #allocation1 [shape = 'u32[144,128]{1,0:T(1,128)}', space=vmem, size = 0x12000, scoped, tag = 'internal scratch']
  #allocation2 [shape = 'f32[16,64]{1,0:T(8,128)}', space=vmem, size = 0x2000, scoped, tag = 'scratch operand']
  %s0 = inlined_call_operand.vmem [shape: bf16[16,32], index: 0, kind: input, shape index: {}]
  %s1 = inlined_call_operand.vmem [shape: bf16[32,64], index: 1, kind: input, shape index: {}]
  %s2 = inlined_call_operand.vmem [shape: f32[1,64], index: 2, kind: input, shape index: {}]
  %s3 = inlined_call_operand.vmem [shape: bf16[16,64], index: 3, kind: output, shape index: {}]
  %s4 = sld [smem:[#allocation0]]
  $region30: #{transformer_forward.42} parent=0
    _
  %s6 = ssub.s32 1, %s4
  %s7 = scalar_select 0, %s6, %s4
  // Predicated region
  $region2: #{transformer_forward.42} parent=0 // pred_check
    _
  $region3: #{transformer_forward.42} parent=0 // pred_check_branch
    %9 = sbr.rel (0) target = $region5
  $region4: #{transformer_forward.42} parent=0 // pred_region
    _
  $region5: #{transformer_forward.42} parent=0 // pred_fallthru
    _
  // Predicated region
  $region6: #{transformer_forward.42} parent=0 // pred_check
    _
  $region7: #{transformer_forward.42} parent=0 // pred_check_branch
    %11 = sbr.rel (0) target = $region9
  $region8: #{transformer_forward.42} parent=0 // pred_region
    _
  $region9: #{transformer_forward.42} parent=0 // pred_fallthru
    _
  // Predicated region
  $region10: #{transformer_forward.42} parent=0 // pred_check
    _
  $region11: #{transformer_forward.42} parent=0 // pred_check_branch
    %13 = sbr.rel (0) target = $region13
  $region12: #{transformer_forward.42} parent=0 // pred_region
    _
  $region13: #{transformer_forward.42} parent=0 // pred_fallthru
    _
  %p15 = scmp.eq.s32.totalorder 0, 0
  // Predicated region
  $region14: #{transformer_forward.42} parent=0 // pred_check
    %p16 = pneg %p15
  $region15: #{transformer_forward.42} parent=0 // pred_check_branch
    %18 = sbr.rel (%p16) target = $region17
  $region16: #{transformer_forward.42} parent=0 // pred_region
    %vm19 = vcmask 523264
    %20 = vst.msk [vmem:[#allocation2] sm:$0xff] %vm19, 0.0
    %21 = vst.msk [vmem:[#allocation2 + $0x8] sm:$0xff] %vm19, 0.0
  $region17: #{transformer_forward.42} parent=0 // pred_fallthru
    _
  %v22 = vld [vmem:[#allocation2] sm:$0xff]
  %v23 = vld [vmem:[#allocation2 + $0x8] sm:$0xff]
  %v24 = vld [vmem:[%s0] sm:$0xf]
  %v25 = vld [vmem:[%s0 + $0x4] sm:$0xf]
  %v26 = vld [vmem:[%s1] sm:$0xf]
  %v27 = vld [vmem:[%s1 + $0x4] sm:$0xf]
  %v28 = vld [vmem:[%s1 + $0x8] sm:$0xf]
  %v29 = vld [vmem:[%s1 + $0xc] sm:$0xf]
  %v32 = vunpack.c.l.b16 %v24
  %v33 = vunpack.c.l.b16 %v25
  %v34 = vpack.c.b16 %v33, %v32
  %v39 = vunpack.c.l.b16 %v26
  %v40 = vunpack.c.l.b16 %v27
  %v41 = vunpack.c.l.b16 %v28
  %v42 = vunpack.c.l.b16 %v29
  %v43 = vpack.c.b16 %v40, %v39
  %v44 = vpack.c.b16 %v42, %v41
  %vm47 = vcmask 261120
  %v49 = vsel %vm47, %v34, 0
  %51 = vmatprep.subr.bf16.mxu0 0
  %52 = vmatpush1.bf16.msra.mxu0 %v43
  %53 = vmatprep.subr.bf16.mxu0 0
  %54 = vmatpush1.bf16.msra.mxu0 %v44
  %55 = vmatprep.subr.bf16.mxu0 0
  %56 = vmatpush1.bf16.msra.mxu0 0
  %57 = vmatprep.subr.bf16.mxu0 0
  %58 = vmatpush1.bf16.msra.mxu0 0
  %59 = vmatprep.subr.bf16.mxu0 0
  %60 = vmatpush1.bf16.msra.mxu0 0
  %61 = vmatprep.subr.bf16.mxu0 0
  %62 = vmatpush1.bf16.msra.mxu0 0
  %63 = vmatprep.subr.bf16.mxu0 0
  %64 = vmatpush1.bf16.msra.mxu0 0
  %65 = vmatprep.subr.bf16.mxu0 0
  %66 = vmatpush1.bf16.msra.mxu0 0
  %67 = vmatprep.subr.bf16.mxu0 0
  %68 = vmatpush1.bf16.msra.mxu0 0
  %69 = vmatprep.subr.bf16.mxu0 0
  %70 = vmatpush1.bf16.msra.mxu0 0
  %71 = vmatprep.subr.bf16.mxu0 0
  %72 = vmatpush1.bf16.msra.mxu0 0
  %73 = vmatprep.subr.bf16.mxu0 0
  %74 = vmatpush1.bf16.msra.mxu0 0
  %75 = vmatprep.subr.bf16.mxu0 0
  %76 = vmatpush1.bf16.msra.mxu0 0
  %77 = vmatprep.subr.bf16.mxu0 0
  %78 = vmatpush1.bf16.msra.mxu0 0
  %79 = vmatprep.subr.bf16.mxu0 0
  %80 = vmatpush1.bf16.msra.mxu0 0
  %81 = vmatprep.subr.bf16.mxu0 0
  %82 = vmatpush1.bf16.msra.mxu0 0
  %83 = vmatprep.mubr.bf16.mxu0 0
  %84 = vmatmul.mubr.bf16.gmra.mrb[0].mxu0 %v49
  %v85 = vpop.f32.mrb[0].mxu0
  %v86 = vadd.f32 0.0, %v85
  %v87 = vpop.f32.mrb[0].mxu0
  %v88 = vpop.f32.mrb[0].mxu0
  %v89 = vadd.f32 0.0, %v88
  %v90 = vpop.f32.mrb[0].mxu0
  %91 = vdwg.mxu0
  %v92 = vadd.f32 %v22, %v86
  %v93 = vadd.f32 %v23, %v89
  %vm94 = vcmask 523264
  %95 = vst.msk [vmem:[#allocation2] sm:$0xff] %vm94, %v92
  %96 = vst.msk [vmem:[#allocation2 + $0x8] sm:$0xff] %vm94, %v93
  // Predicated region
  $region18: #{transformer_forward.42} parent=0 // pred_check
    %p97 = pneg %p15
  $region19: #{transformer_forward.42} parent=0 // pred_check_branch
    %99 = sbr.rel (%p97) target = $region21
  $region20: #{transformer_forward.42} parent=0 // pred_region
    %v100 = vld [vmem:[#allocation2] sm:$0xff]
    %v101 = vld [vmem:[#allocation2 + $0x8] sm:$0xff]
    %v102 = vld [vmem:[%s2] sm:$0x1]
    %v104 = vlaneseq
    %v105 = vshrl.u32 %v104, 7
    %v106 = vsub.s32 0, %v105
    %v107 = vrot.slane %v102, %v106
    %v109 = vadd.f32 %v100, %v107
    %v110 = vadd.f32 %v101, %v107
    %v111 = vpack.c.bf16 %v110, %v109
    %v113 = vunpack.c.l.b16 %v111
    %v114 = vunpack.c.h.b16 %v111
    %v115 = vpack.c.b16 %v113, %v113
    %v116 = vpack.c.b16 %v114, %v114
    %vm119 = vcmask 519168
    %120 = vst.msk [vmem:[%s3] sm:$0xf] %vm119, %v115
    %121 = vst.msk [vmem:[%s3 + $0x4] sm:$0xf] %vm119, %v116
  $region21: #{transformer_forward.42} parent=0 // pred_fallthru
    _
  // Predicated region
  $region22: #{transformer_forward.42} parent=0 // pred_check
    _
  $region23: #{transformer_forward.42} parent=0 // pred_check_branch
    %123 = sbr.rel (0) target = $region25
  $region24: #{transformer_forward.42} parent=0 // pred_region
    _
  $region25: #{transformer_forward.42} parent=0 // pred_fallthru
    _
  // Predicated region
  $region26: #{transformer_forward.42} parent=0 // pred_check
    _
  $region27: #{transformer_forward.42} parent=0 // pred_check_branch
    %125 = sbr.rel (0) target = $region29
  $region28: #{transformer_forward.42} parent=0 // pred_region
    _
  $region29: #{transformer_forward.42} parent=0 // pred_fallthru
    _

// kernel: transformer_forward.32
$region0: #{transformer_forward.32}
  #allocation0 [shape = 'u32[]', space=smem, size = 0x4, offset = 0x4, fixed_abs, tag = 'smem constant byte address 0x4 - core index']
  #allocation1 [shape = 'u32[144,128]{1,0:T(1,128)}', space=vmem, size = 0x12000, scoped, tag = 'internal scratch']
  #allocation2 [shape = 'f32[16,32]{1,0:T(8,128)}', space=vmem, size = 0x2000, scoped, tag = 'scratch operand']
  %s0 = inlined_call_operand.vmem [shape: bf16[16,128], index: 0, kind: input, shape index: {}]
  %s1 = inlined_call_operand.vmem [shape: bf16[128,32], index: 1, kind: input, shape index: {}]
  %s2 = inlined_call_operand.vmem [shape: f32[1,32], index: 2, kind: input, shape index: {}]
  %s3 = inlined_call_operand.vmem [shape: f32[16,32], index: 3, kind: input, shape index: {}, may-alias: {3,6}]
  %s4 = inlined_call_operand.vmem [shape: f32[1,32], index: 4, kind: input, shape index: {}]
  %s5 = inlined_call_operand.vmem [shape: f32[1,32], index: 5, kind: input, shape index: {}]
  %s6 = inlined_call_operand.vmem [shape: f32[16,32], index: 6, kind: output, shape index: {}, may-alias: {3,6}]
  %s7 = sld [smem:[#allocation0]]
  $region42: #{transformer_forward.32} parent=0
    _
  %s9 = ssub.s32 1, %s7
  %s10 = scalar_select 0, %s9, %s7
  // Predicated region
  $region2: #{transformer_forward.32} parent=0 // pred_check
    _
  $region3: #{transformer_forward.32} parent=0 // pred_check_branch
    %12 = sbr.rel (0) target = $region5
  $region4: #{transformer_forward.32} parent=0 // pred_region
    _
  $region5: #{transformer_forward.32} parent=0 // pred_fallthru
    _
  // Predicated region
  $region6: #{transformer_forward.32} parent=0 // pred_check
    _
  $region7: #{transformer_forward.32} parent=0 // pred_check_branch
    %14 = sbr.rel (0) target = $region9
  $region8: #{transformer_forward.32} parent=0 // pred_region
    _
  $region9: #{transformer_forward.32} parent=0 // pred_fallthru
    _
  // Predicated region
  $region10: #{transformer_forward.32} parent=0 // pred_check
    _
  $region11: #{transformer_forward.32} parent=0 // pred_check_branch
    %16 = sbr.rel (0) target = $region13
  $region12: #{transformer_forward.32} parent=0 // pred_region
    _
  $region13: #{transformer_forward.32} parent=0 // pred_fallthru
    _
  // Predicated region
  $region14: #{transformer_forward.32} parent=0 // pred_check
    _
  $region15: #{transformer_forward.32} parent=0 // pred_check_branch
    %18 = sbr.rel (0) target = $region17
  $region16: #{transformer_forward.32} parent=0 // pred_region
    _
  $region17: #{transformer_forward.32} parent=0 // pred_fallthru
    _
  // Predicated region
  $region18: #{transformer_forward.32} parent=0 // pred_check
    _
  $region19: #{transformer_forward.32} parent=0 // pred_check_branch
    %20 = sbr.rel (0) target = $region21
  $region20: #{transformer_forward.32} parent=0 // pred_region
    _
  $region21: #{transformer_forward.32} parent=0 // pred_fallthru
    _
  // Predicated region
  $region22: #{transformer_forward.32} parent=0 // pred_check
    _
  $region23: #{transformer_forward.32} parent=0 // pred_check_branch
    %22 = sbr.rel (0) target = $region25
  $region24: #{transformer_forward.32} parent=0 // pred_region
    _
  $region25: #{transformer_forward.32} parent=0 // pred_fallthru
    _
  %p24 = scmp.eq.s32.totalorder 0, 0
  // Predicated region
  $region26: #{transformer_forward.32} parent=0 // pred_check
    %p25 = pneg %p24
  $region27: #{transformer_forward.32} parent=0 // pred_check_branch
    %27 = sbr.rel (%p25) target = $region29
  $region28: #{transformer_forward.32} parent=0 // pred_region
    %vm28 = vcmask 261120
    %29 = vst.msk [vmem:[#allocation2] sm:$0xff] %vm28, 0.0
    %30 = vst.msk [vmem:[#allocation2 + $0x8] sm:$0xff] %vm28, 0.0
  $region29: #{transformer_forward.32} parent=0 // pred_fallthru
    _
  %v31 = vld [vmem:[#allocation2] sm:$0xff]
  %v32 = vld [vmem:[#allocation2 + $0x8] sm:$0xff]
  %v33 = vld [vmem:[%s0] sm:$0xf]
  %v34 = vld [vmem:[%s0 + $0x4] sm:$0xf]
  %v35 = vld [vmem:[%s1] sm:$0xf]
  %v36 = vld [vmem:[%s1 + $0x4] sm:$0xf]
  %v37 = vld [vmem:[%s1 + $0x8] sm:$0xf]
  %v38 = vld [vmem:[%s1 + $0xc] sm:$0xf]
  %v39 = vld [vmem:[%s1 + $0x10] sm:$0xf]
  %v40 = vld [vmem:[%s1 + $0x14] sm:$0xf]
  %v41 = vld [vmem:[%s1 + $0x18] sm:$0xf]
  %v42 = vld [vmem:[%s1 + $0x1c] sm:$0xf]
  %v43 = vld [vmem:[%s1 + $0x20] sm:$0xf]
  %v44 = vld [vmem:[%s1 + $0x24] sm:$0xf]
  %v45 = vld [vmem:[%s1 + $0x28] sm:$0xf]
  %v46 = vld [vmem:[%s1 + $0x2c] sm:$0xf]
  %v47 = vld [vmem:[%s1 + $0x30] sm:$0xf]
  %v48 = vld [vmem:[%s1 + $0x34] sm:$0xf]
  %v49 = vld [vmem:[%s1 + $0x38] sm:$0xf]
  %v50 = vld [vmem:[%s1 + $0x3c] sm:$0xf]
  %v53 = vunpack.c.l.b16 %v33
  %v54 = vunpack.c.l.b16 %v34
  %v55 = vpack.c.b16 %v54, %v53
  %v73 = vunpack.c.l.b16 %v35
  %v74 = vunpack.c.l.b16 %v36
  %v75 = vunpack.c.l.b16 %v37
  %v76 = vunpack.c.l.b16 %v38
  %v77 = vunpack.c.l.b16 %v39
  %v78 = vunpack.c.l.b16 %v40
  %v79 = vunpack.c.l.b16 %v41
  %v80 = vunpack.c.l.b16 %v42
  %v81 = vunpack.c.l.b16 %v43
  %v82 = vunpack.c.l.b16 %v44
  %v83 = vunpack.c.l.b16 %v45
  %v84 = vunpack.c.l.b16 %v46
  %v85 = vunpack.c.l.b16 %v47
  %v86 = vunpack.c.l.b16 %v48
  %v87 = vunpack.c.l.b16 %v49
  %v88 = vunpack.c.l.b16 %v50
  %v89 = vpack.c.b16 %v74, %v73
  %v90 = vpack.c.b16 %v76, %v75
  %v91 = vpack.c.b16 %v78, %v77
  %v92 = vpack.c.b16 %v80, %v79
  %v93 = vpack.c.b16 %v82, %v81
  %v94 = vpack.c.b16 %v84, %v83
  %v95 = vpack.c.b16 %v86, %v85
  %v96 = vpack.c.b16 %v88, %v87
  %105 = vmatprep.subr.bf16.mxu0 0
  %106 = vmatpush1.bf16.msra.mxu0 %v89
  %107 = vmatprep.subr.bf16.mxu0 0
  %108 = vmatpush1.bf16.msra.mxu0 %v90
  %109 = vmatprep.subr.bf16.mxu0 0
  %110 = vmatpush1.bf16.msra.mxu0 %v91
  %111 = vmatprep.subr.bf16.mxu0 0
  %112 = vmatpush1.bf16.msra.mxu0 %v92
  %113 = vmatprep.subr.bf16.mxu0 0
  %114 = vmatpush1.bf16.msra.mxu0 %v93
  %115 = vmatprep.subr.bf16.mxu0 0
  %116 = vmatpush1.bf16.msra.mxu0 %v94
  %117 = vmatprep.subr.bf16.mxu0 0
  %118 = vmatpush1.bf16.msra.mxu0 %v95
  %119 = vmatprep.subr.bf16.mxu0 0
  %120 = vmatpush1.bf16.msra.mxu0 %v96
  %121 = vmatprep.subr.bf16.mxu0 0
  %122 = vmatpush1.bf16.msra.mxu0 0
  %123 = vmatprep.subr.bf16.mxu0 0
  %124 = vmatpush1.bf16.msra.mxu0 0
  %125 = vmatprep.subr.bf16.mxu0 0
  %126 = vmatpush1.bf16.msra.mxu0 0
  %127 = vmatprep.subr.bf16.mxu0 0
  %128 = vmatpush1.bf16.msra.mxu0 0
  %129 = vmatprep.subr.bf16.mxu0 0
  %130 = vmatpush1.bf16.msra.mxu0 0
  %131 = vmatprep.subr.bf16.mxu0 0
  %132 = vmatpush1.bf16.msra.mxu0 0
  %133 = vmatprep.subr.bf16.mxu0 0
  %134 = vmatpush1.bf16.msra.mxu0 0
  %135 = vmatprep.subr.bf16.mxu0 0
  %136 = vmatpush1.bf16.msra.mxu0 0
  %137 = vmatprep.mubr.bf16.mxu0 0
  %138 = vmatmul.mubr.bf16.gmra.mrb[0].mxu0 %v55
  %v139 = vpop.f32.mrb[0].mxu0
  %v140 = vadd.f32 0.0, %v139
  %v141 = vpop.f32.mrb[0].mxu0
  %v142 = vpop.f32.mrb[0].mxu0
  %v143 = vadd.f32 0.0, %v142
  %v144 = vpop.f32.mrb[0].mxu0
  %145 = vdwg.mxu0
  %v146 = vadd.f32 %v31, %v140
  %v147 = vadd.f32 %v32, %v143
  %vm148 = vcmask 261120
  %149 = vst.msk [vmem:[#allocation2] sm:$0xff] %vm148, %v146
  %150 = vst.msk [vmem:[#allocation2 + $0x8] sm:$0xff] %vm148, %v147
  // Predicated region
  $region30: #{transformer_forward.32} parent=0 // pred_check
    %p151 = pneg %p24
  $region31: #{transformer_forward.32} parent=0 // pred_check_branch
    %153 = sbr.rel (%p151) target = $region33
  $region32: #{transformer_forward.32} parent=0 // pred_region
    %v154 = vld [vmem:[#allocation2] sm:$0xff]
    %v155 = vld [vmem:[#allocation2 + $0x8] sm:$0xff]
    %v156 = vld [vmem:[%s2] sm:$0x1]
    %v158 = vlaneseq
    %v159 = vshrl.u32 %v158, 7
    %v160 = vsub.s32 0, %v159
    %v161 = vrot.slane %v156, %v160
    %v163 = vadd.f32 %v154, %v161
    %v164 = vadd.f32 %v155, %v161
    %v165 = vld [vmem:[%s3] sm:$0xff]
    %v166 = vld [vmem:[%s3 + $0x8] sm:$0xff]
    %v167 = vadd.f32 %v163, %v165
    %v168 = vadd.f32 %v164, %v166
    %v169 = vsel %vm148, %v167, 0.0
    %170 = vadd.xlane.f32.xlu0 %v169
    %v171 = vpop.xlane.xlu0 %170
    %v172 = vsel %vm148, %v168, 0.0
    %173 = vadd.xlane.f32.xlu0 %v172
    %v174 = vpop.xlane.xlu0 %173
    %v175 = vrcp.pop 32.0
    %v176 = vmul.f32 %v171, %v175
    %v177 = vmul.f32 %v174, %v175
    %v178 = vsub.f32 %v167, %v176
    %v179 = vsub.f32 %v168, %v177
    %v180 = vmul.f32 %v178, %v178
    %v181 = vmul.f32 %v179, %v179
    %v182 = vsel %vm148, %v180, 0.0
    %183 = vadd.xlane.f32.xlu0 %v182
    %v184 = vpop.xlane.xlu0 %183
    %v185 = vsel %vm148, %v181, 0.0
    %186 = vadd.xlane.f32.xlu0 %v185
    %v187 = vpop.xlane.xlu0 %186
    %v188 = vmul.f32 %v184, %v175
    %v189 = vmul.f32 %v187, %v175
    %v190 = vadd.f32 %v188, 1e-12
    %v191 = vadd.f32 %v189, 1e-12
    %v192 = vrsqrt.pop %v190
    %v193 = vrsqrt.pop %v191
    %v194 = vmul.f32 %v178, %v192
    %v195 = vmul.f32 %v179, %v193
    %v196 = vld [vmem:[%s4] sm:$0x1]
    %v198 = vlaneseq
    %v199 = vshrl.u32 %v198, 7
    %v200 = vsub.s32 0, %v199
    %v201 = vrot.slane %v196, %v200
    %v203 = vmul.f32 %v194, %v201
    %v204 = vmul.f32 %v195, %v201
    %v205 = vld [vmem:[%s5] sm:$0x1]
    %v207 = vlaneseq
    %v208 = vshrl.u32 %v207, 7
    %v209 = vsub.s32 0, %v208
    %v210 = vrot.slane %v205, %v209
    %v212 = vadd.f32 %v203, %v210
    %v213 = vadd.f32 %v204, %v210
    %214 = vst.msk [vmem:[%s6] sm:$0xff] %vm148, %v212
    %215 = vst.msk [vmem:[%s6 + $0x8] sm:$0xff] %vm148, %v213
  $region33: #{transformer_forward.32} parent=0 // pred_fallthru
    _
  // Predicated region
  $region34: #{transformer_forward.32} parent=0 // pred_check
    _
  $region35: #{transformer_forward.32} parent=0 // pred_check_branch
    %217 = sbr.rel (0) target = $region37
  $region36: #{transformer_forward.32} parent=0 // pred_region
    _
  $region37: #{transformer_forward.32} parent=0 // pred_fallthru
    _
  // Predicated region
  $region38: #{transformer_forward.32} parent=0 // pred_check
    _
  $region39: #{transformer_forward.32} parent=0 // pred_check_branch
    %219 = sbr.rel (0) target = $region41
  $region40: #{transformer_forward.32} parent=0 // pred_region
    _
  $region41: #{transformer_forward.32} parent=0 // pred_fallthru
    _

// kernel: transformer_forward.40
$region0: #{transformer_forward.40}
  #allocation0 [shape = 'u32[]', space=smem, size = 0x4, offset = 0x4, fixed_abs, tag = 'smem constant byte address 0x4 - core index']
  #allocation1 [shape = 'u32[144,128]{1,0:T(1,128)}', space=vmem, size = 0x12000, scoped, tag = 'internal scratch']
  #allocation2 [shape = 'f32[16,32]{1,0:T(8,128)}', space=vmem, size = 0x2000, scoped, tag = 'scratch operand']
  %s0 = inlined_call_operand.vmem [shape: bf16[16,32], index: 0, kind: input, shape index: {}]
  %s1 = inlined_call_operand.vmem [shape: bf16[32,32], index: 1, kind: input, shape index: {}]
  %s2 = inlined_call_operand.vmem [shape: f32[1,32], index: 2, kind: input, shape index: {}]
  %s3 = inlined_call_operand.vmem [shape: f32[16,32], index: 3, kind: input, shape index: {}, may-alias: {3,6}]
  %s4 = inlined_call_operand.vmem [shape: f32[1,32], index: 4, kind: input, shape index: {}]
  %s5 = inlined_call_operand.vmem [shape: f32[1,32], index: 5, kind: input, shape index: {}]
  %s6 = inlined_call_operand.vmem [shape: f32[16,32], index: 6, kind: output, shape index: {}, may-alias: {3,6}]
  %s7 = sld [smem:[#allocation0]]
  $region42: #{transformer_forward.40} parent=0
    _
  %s9 = ssub.s32 1, %s7
  %s10 = scalar_select 0, %s9, %s7
  // Predicated region
  $region2: #{transformer_forward.40} parent=0 // pred_check
    _
  $region3: #{transformer_forward.40} parent=0 // pred_check_branch
    %12 = sbr.rel (0) target = $region5
  $region4: #{transformer_forward.40} parent=0 // pred_region
    _
  $region5: #{transformer_forward.40} parent=0 // pred_fallthru
    _
  // Predicated region
  $region6: #{transformer_forward.40} parent=0 // pred_check
    _
  $region7: #{transformer_forward.40} parent=0 // pred_check_branch
    %14 = sbr.rel (0) target = $region9
  $region8: #{transformer_forward.40} parent=0 // pred_region
    _
  $region9: #{transformer_forward.40} parent=0 // pred_fallthru
    _
  // Predicated region
  $region10: #{transformer_forward.40} parent=0 // pred_check
    _
  $region11: #{transformer_forward.40} parent=0 // pred_check_branch
    %16 = sbr.rel (0) target = $region13
  $region12: #{transformer_forward.40} parent=0 // pred_region
    _
  $region13: #{transformer_forward.40} parent=0 // pred_fallthru
    _
  // Predicated region
  $region14: #{transformer_forward.40} parent=0 // pred_check
    _
  $region15: #{transformer_forward.40} parent=0 // pred_check_branch
    %18 = sbr.rel (0) target = $region17
  $region16: #{transformer_forward.40} parent=0 // pred_region
    _
  $region17: #{transformer_forward.40} parent=0 // pred_fallthru
    _
  // Predicated region
  $region18: #{transformer_forward.40} parent=0 // pred_check
    _
  $region19: #{transformer_forward.40} parent=0 // pred_check_branch
    %20 = sbr.rel (0) target = $region21
  $region20: #{transformer_forward.40} parent=0 // pred_region
    _
  $region21: #{transformer_forward.40} parent=0 // pred_fallthru
    _
  // Predicated region
  $region22: #{transformer_forward.40} parent=0 // pred_check
    _
  $region23: #{transformer_forward.40} parent=0 // pred_check_branch
    %22 = sbr.rel (0) target = $region25
  $region24: #{transformer_forward.40} parent=0 // pred_region
    _
  $region25: #{transformer_forward.40} parent=0 // pred_fallthru
    _
  %p24 = scmp.eq.s32.totalorder 0, 0
  // Predicated region
  $region26: #{transformer_forward.40} parent=0 // pred_check
    %p25 = pneg %p24
  $region27: #{transformer_forward.40} parent=0 // pred_check_branch
    %27 = sbr.rel (%p25) target = $region29
  $region28: #{transformer_forward.40} parent=0 // pred_region
    %vm28 = vcmask 261120
    %29 = vst.msk [vmem:[#allocation2] sm:$0xff] %vm28, 0.0
    %30 = vst.msk [vmem:[#allocation2 + $0x8] sm:$0xff] %vm28, 0.0
  $region29: #{transformer_forward.40} parent=0 // pred_fallthru
    _
  %v31 = vld [vmem:[#allocation2] sm:$0xff]
  %v32 = vld [vmem:[#allocation2 + $0x8] sm:$0xff]
  %v33 = vld [vmem:[%s0] sm:$0xf]
  %v34 = vld [vmem:[%s0 + $0x4] sm:$0xf]
  %v35 = vld [vmem:[%s1] sm:$0xf]
  %v36 = vld [vmem:[%s1 + $0x4] sm:$0xf]
  %v37 = vld [vmem:[%s1 + $0x8] sm:$0xf]
  %v38 = vld [vmem:[%s1 + $0xc] sm:$0xf]
  %v41 = vunpack.c.l.b16 %v33
  %v42 = vunpack.c.l.b16 %v34
  %v43 = vpack.c.b16 %v42, %v41
  %v48 = vunpack.c.l.b16 %v35
  %v49 = vunpack.c.l.b16 %v36
  %v50 = vunpack.c.l.b16 %v37
  %v51 = vunpack.c.l.b16 %v38
  %v52 = vpack.c.b16 %v49, %v48
  %v53 = vpack.c.b16 %v51, %v50
  %vm56 = vcmask 261120
  %v58 = vsel %vm56, %v43, 0
  %60 = vmatprep.subr.bf16.mxu0 0
  %61 = vmatpush1.bf16.msra.mxu0 %v52
  %62 = vmatprep.subr.bf16.mxu0 0
  %63 = vmatpush1.bf16.msra.mxu0 %v53
  %64 = vmatprep.subr.bf16.mxu0 0
  %65 = vmatpush1.bf16.msra.mxu0 0
  %66 = vmatprep.subr.bf16.mxu0 0
  %67 = vmatpush1.bf16.msra.mxu0 0
  %68 = vmatprep.subr.bf16.mxu0 0
  %69 = vmatpush1.bf16.msra.mxu0 0
  %70 = vmatprep.subr.bf16.mxu0 0
  %71 = vmatpush1.bf16.msra.mxu0 0
  %72 = vmatprep.subr.bf16.mxu0 0
  %73 = vmatpush1.bf16.msra.mxu0 0
  %74 = vmatprep.subr.bf16.mxu0 0
  %75 = vmatpush1.bf16.msra.mxu0 0
  %76 = vmatprep.subr.bf16.mxu0 0
  %77 = vmatpush1.bf16.msra.mxu0 0
  %78 = vmatprep.subr.bf16.mxu0 0
  %79 = vmatpush1.bf16.msra.mxu0 0
  %80 = vmatprep.subr.bf16.mxu0 0
  %81 = vmatpush1.bf16.msra.mxu0 0
  %82 = vmatprep.subr.bf16.mxu0 0
  %83 = vmatpush1.bf16.msra.mxu0 0
  %84 = vmatprep.subr.bf16.mxu0 0
  %85 = vmatpush1.bf16.msra.mxu0 0
  %86 = vmatprep.subr.bf16.mxu0 0
  %87 = vmatpush1.bf16.msra.mxu0 0
  %88 = vmatprep.subr.bf16.mxu0 0
  %89 = vmatpush1.bf16.msra.mxu0 0
  %90 = vmatprep.subr.bf16.mxu0 0
  %91 = vmatpush1.bf16.msra.mxu0 0
  %92 = vmatprep.mubr.bf16.mxu0 0
  %93 = vmatmul.mubr.bf16.gmra.mrb[0].mxu0 %v58
  %v94 = vpop.f32.mrb[0].mxu0
  %v95 = vadd.f32 0.0, %v94
  %v96 = vpop.f32.mrb[0].mxu0
  %v97 = vpop.f32.mrb[0].mxu0
  %v98 = vadd.f32 0.0, %v97
  %v99 = vpop.f32.mrb[0].mxu0
  %100 = vdwg.mxu0
  %v101 = vadd.f32 %v31, %v95
  %v102 = vadd.f32 %v32, %v98
  %103 = vst.msk [vmem:[#allocation2] sm:$0xff] %vm56, %v101
  %104 = vst.msk [vmem:[#allocation2 + $0x8] sm:$0xff] %vm56, %v102
  // Predicated region
  $region30: #{transformer_forward.40} parent=0 // pred_check
    %p105 = pneg %p24
  $region31: #{transformer_forward.40} parent=0 // pred_check_branch
    %107 = sbr.rel (%p105) target = $region33
  $region32: #{transformer_forward.40} parent=0 // pred_region
    %v108 = vld [vmem:[#allocation2] sm:$0xff]
    %v109 = vld [vmem:[#allocation2 + $0x8] sm:$0xff]
    %v110 = vld [vmem:[%s2] sm:$0x1]
    %v112 = vlaneseq
    %v113 = vshrl.u32 %v112, 7
    %v114 = vsub.s32 0, %v113
    %v115 = vrot.slane %v110, %v114
    %v117 = vadd.f32 %v108, %v115
    %v118 = vadd.f32 %v109, %v115
    %v119 = vld [vmem:[%s3] sm:$0xff]
    %v120 = vld [vmem:[%s3 + $0x8] sm:$0xff]
    %v121 = vadd.f32 %v117, %v119
    %v122 = vadd.f32 %v118, %v120
    %v123 = vsel %vm56, %v121, 0.0
    %124 = vadd.xlane.f32.xlu0 %v123
    %v125 = vpop.xlane.xlu0 %124
    %v126 = vsel %vm56, %v122, 0.0
    %127 = vadd.xlane.f32.xlu0 %v126
    %v128 = vpop.xlane.xlu0 %127
    %v129 = vrcp.pop 32.0
    %v130 = vmul.f32 %v125, %v129
    %v131 = vmul.f32 %v128, %v129
    %v132 = vsub.f32 %v121, %v130
    %v133 = vsub.f32 %v122, %v131
    %v134 = vmul.f32 %v132, %v132
    %v135 = vmul.f32 %v133, %v133
    %v136 = vsel %vm56, %v134, 0.0
    %137 = vadd.xlane.f32.xlu0 %v136
    %v138 = vpop.xlane.xlu0 %137
    %v139 = vsel %vm56, %v135, 0.0
    %140 = vadd.xlane.f32.xlu0 %v139
    %v141 = vpop.xlane.xlu0 %140
    %v142 = vmul.f32 %v138, %v129
    %v143 = vmul.f32 %v141, %v129
    %v144 = vadd.f32 %v142, 1e-05
    %v145 = vadd.f32 %v143, 1e-05
    %v146 = vrsqrt.pop %v144
    %v147 = vrsqrt.pop %v145
    %v148 = vmul.f32 %v132, %v146
    %v149 = vmul.f32 %v133, %v147
    %v150 = vld [vmem:[%s4] sm:$0x1]
    %v152 = vlaneseq
    %v153 = vshrl.u32 %v152, 7
    %v154 = vsub.s32 0, %v153
    %v155 = vrot.slane %v150, %v154
    %v157 = vmul.f32 %v148, %v155
    %v158 = vmul.f32 %v149, %v155
    %v159 = vld [vmem:[%s5] sm:$0x1]
    %v161 = vlaneseq
    %v162 = vshrl.u32 %v161, 7
    %v163 = vsub.s32 0, %v162
    %v164 = vrot.slane %v159, %v163
    %v166 = vadd.f32 %v157, %v164
    %v167 = vadd.f32 %v158, %v164
    %168 = vst.msk [vmem:[%s6] sm:$0xff] %vm56, %v166
    %169 = vst.msk [vmem:[%s6 + $0x8] sm:$0xff] %vm56, %v167
  $region33: #{transformer_forward.40} parent=0 // pred_fallthru
    _
  // Predicated region
  $region34: #{transformer_forward.40} parent=0 // pred_check
    _
  $region35: #{transformer_forward.40} parent=0 // pred_check_branch
    %171 = sbr.rel (0) target = $region37
  $region36: #{transformer_forward.40} parent=0 // pred_region
    _
  $region37: #{transformer_forward.40} parent=0 // pred_fallthru
    _
  // Predicated region
  $region38: #{transformer_forward.40} parent=0 // pred_check
    _
  $region39: #{transformer_forward.40} parent=0 // pred_check_branch
    %173 = sbr.rel (0) target = $region41
  $region40: #{transformer_forward.40} parent=0 // pred_region
    _
  $region41: #{transformer_forward.40} parent=0 // pred_fallthru
    _

// kernel: transformer_forward.39
$region0: #{transformer_forward.39}
  #allocation0 [shape = 'u32[]', space=smem, size = 0x4, offset = 0x4, fixed_abs, tag = 'smem constant byte address 0x4 - core index']
  #allocation1 [shape = 'u32[144,128]{1,0:T(1,128)}', space=vmem, size = 0x12000, scoped, tag = 'internal scratch']
  %s0 = inlined_call_operand.vmem [shape: f32[2,1,8], index: 0, kind: input, shape index: {}]
  %s1 = inlined_call_operand.vmem [shape: bf16[2,4,8,8], index: 1, kind: input, shape index: {}]
  %s2 = inlined_call_operand.vmem [shape: bf16[2,4,8,8], index: 2, kind: input, shape index: {}]
  %s3 = inlined_call_operand.vmem [shape: bf16[2,4,8,8], index: 3, kind: input, shape index: {}]
  %s4 = inlined_call_operand.vmem [shape: bf16[2,4,8,8], index: 4, kind: output, shape index: {0}]
  %s5 = inlined_call_operand.hbm [shape: f32[2,4,8,8], index: 5, kind: output, shape index: {1}]
  %6 = xla_tuple %s4, %s5
  %s7 = sld [smem:[#allocation0]]
  $region57: #{transformer_forward.39} parent=0
    _
  %s9 = ssub.s32 1, %s7
  %s10 = scalar_select 0, %s9, %s7
  $region1: #{transformer_forward.39} parent=0
    #allocation2 [shape = 'u8[32768]{0}', space=vmem, size = 0x8000, scoped, tag = 'output window, operand 1']
    #allocation3 [shape = 's32[2]{0}', space=sflag, size = 0x8, scoped, tag = 'scoped memory for transformer_forward.39']
    %11 = vsyncpa [#allocation3], 0
    %s12 = scalar_lea.sflag [#allocation3], 1
    %13 = vsyncpa %s12, 0
    loop: start=0, step=1, limit=4
    $region2: #{transformer_forward.39} parent=1 // loop_pre_header
      _
    $region3: #{transformer_forward.39} parent=1 // loop_header
      %s15 = sphi 0, %s19
      %p16 = scmp.ge.s32.totalorder %s15, 4
      %s25 = sphi 0, %s27
      %s28 = sphi 0, %s25
      %s29 = sphi 0, %s28
      %s45 = sphi 0, %s29
      %s51 = sphi 0, %s53
      %s54 = sphi 0, %s51
      %s55 = sphi 0, %s54
      %s71 = sphi 0, %s55
      %s77 = sphi 0, %s79
      %s80 = sphi 0, %s77
      %s81 = sphi 0, %s80
      %s97 = sphi 0, %s81
      %s103 = sphi 0, %s105
      %s106 = sphi 0, %s103
      %s107 = sphi 0, %s106
      %s123 = sphi 0, %s107
      %s129 = sphi 0, %s131
      %s132 = sphi 0, %s129
      %s133 = sphi 0, %s132
      %s149 = sphi 0, %s133
      %s155 = sphi 0, %s157
      %s158 = sphi 0, %s155
      %s159 = sphi 0, %s158
      %s175 = sphi 0, %s159
    $region4: #{transformer_forward.39} parent=1 // loop_header_branch
      %18 = sbr.rel (%p16) target = $region8
    $region5: #{transformer_forward.39} parent=1 // loop_body
      %s20 = ssub.s32 %s15, 1
      %s21 = ssub.s32 %s15, 2
      %s22 = sadd.s32 %s15, 1
      %s23 = ssub.s32 %s15, %s22
      %p24 = scmp.eq.s32.totalorder %s23, 0
      %s26 = sadd.s32 %s25, 1
      %s27 = scalar_select %p24, %s25, %s26
      %p30 = pneg %p24
      %p31 = scmp.eq.s32.totalorder %s15, 1
      %p32 = por %p30, %p31
      %p33 = scmp.ne.s32.totalorder %s25, %s28
      %p34 = scmp.eq.s32.totalorder %s15, 0
      %p35 = por %p33, %p34
      %p36 = scmp.ne.s32.totalorder %s25, %s28
      %p37 = scmp.eq.s32.totalorder %s20, 1
      %p38 = por %p36, %p37
      %p39 = scmp.ne.s32.totalorder %s28, %s29
      %p40 = scmp.eq.s32.totalorder %s20, 0
      %p41 = por %p39, %p40
      %p42 = scmp.ne.s32.totalorder %s28, %s29
      %p43 = scmp.eq.s32.totalorder %s21, 1
      %p44 = por %p42, %p43
      %p46 = scmp.ne.s32.totalorder %s29, %s45
      %p47 = scmp.eq.s32.totalorder %s21, 0
      %p48 = por %p46, %p47
      %s49 = ssub.s32 %s15, %s22
      %p50 = scmp.eq.s32.totalorder %s49, 0
      %s52 = sadd.s32 %s51, 1
      %s53 = scalar_select %p50, %s51, %s52
      %p56 = pneg %p50
      %p57 = scmp.eq.s32.totalorder %s15, 1
      %p58 = por %p56, %p57
      %p59 = scmp.ne.s32.totalorder %s51, %s54
      %p60 = scmp.eq.s32.totalorder %s15, 0
      %p61 = por %p59, %p60
      %p62 = scmp.ne.s32.totalorder %s51, %s54
      %p63 = scmp.eq.s32.totalorder %s20, 1
      %p64 = por %p62, %p63
      %p65 = scmp.ne.s32.totalorder %s54, %s55
      %p66 = scmp.eq.s32.totalorder %s20, 0
      %p67 = por %p65, %p66
      %p68 = scmp.ne.s32.totalorder %s54, %s55
      %p69 = scmp.eq.s32.totalorder %s21, 1
      %p70 = por %p68, %p69
      %p72 = scmp.ne.s32.totalorder %s55, %s71
      %p73 = scmp.eq.s32.totalorder %s21, 0
      %p74 = por %p72, %p73
      %s75 = ssub.s32 %s15, %s22
      %p76 = scmp.eq.s32.totalorder %s75, 0
      %s78 = sadd.s32 %s77, 1
      %s79 = scalar_select %p76, %s77, %s78
      %p82 = pneg %p76
      %p83 = scmp.eq.s32.totalorder %s15, 1
      %p84 = por %p82, %p83
      %p85 = scmp.ne.s32.totalorder %s77, %s80
      %p86 = scmp.eq.s32.totalorder %s15, 0
      %p87 = por %p85, %p86
      %p88 = scmp.ne.s32.totalorder %s77, %s80
      %p89 = scmp.eq.s32.totalorder %s20, 1
      %p90 = por %p88, %p89
      %p91 = scmp.ne.s32.totalorder %s80, %s81
      %p92 = scmp.eq.s32.totalorder %s20, 0
      %p93 = por %p91, %p92
      %p94 = scmp.ne.s32.totalorder %s80, %s81
      %p95 = scmp.eq.s32.totalorder %s21, 1
      %p96 = por %p94, %p95
      %p98 = scmp.ne.s32.totalorder %s81, %s97
      %p99 = scmp.eq.s32.totalorder %s21, 0
      %p100 = por %p98, %p99
      %s101 = ssub.s32 %s15, %s22
      %p102 = scmp.eq.s32.totalorder %s101, 0
      %s104 = sadd.s32 %s103, 1
      %s105 = scalar_select %p102, %s103, %s104
      %p108 = pneg %p102
      %p109 = scmp.eq.s32.totalorder %s15, 1
      %p110 = por %p108, %p109
      %p111 = scmp.ne.s32.totalorder %s103, %s106
      %p112 = scmp.eq.s32.totalorder %s15, 0
      %p113 = por %p111, %p112
      %p114 = scmp.ne.s32.totalorder %s103, %s106
      %p115 = scmp.eq.s32.totalorder %s20, 1
      %p116 = por %p114, %p115
      %p117 = scmp.ne.s32.totalorder %s106, %s107
      %p118 = scmp.eq.s32.totalorder %s20, 0
      %p119 = por %p117, %p118
      %p120 = scmp.ne.s32.totalorder %s106, %s107
      %p121 = scmp.eq.s32.totalorder %s21, 1
      %p122 = por %p120, %p121
      %p124 = scmp.ne.s32.totalorder %s107, %s123
      %p125 = scmp.eq.s32.totalorder %s21, 0
      %p126 = por %p124, %p125
      %s127 = ssub.s32 %s15, %s22
      %p128 = scmp.eq.s32.totalorder %s127, 0
      %s130 = sadd.s32 %s129, 1
      %s131 = scalar_select %p128, %s129, %s130
      %p134 = pneg %p128
      %p135 = scmp.eq.s32.totalorder %s15, 1
      %p136 = por %p134, %p135
      %p137 = scmp.ne.s32.totalorder %s129, %s132
      %p138 = scmp.eq.s32.totalorder %s15, 0
      %p139 = por %p137, %p138
      %p140 = scmp.ne.s32.totalorder %s129, %s132
      %p141 = scmp.eq.s32.totalorder %s20, 1
      %p142 = por %p140, %p141
      %p143 = scmp.ne.s32.totalorder %s132, %s133
      %p144 = scmp.eq.s32.totalorder %s20, 0
      %p145 = por %p143, %p144
      %p146 = scmp.ne.s32.totalorder %s132, %s133
      %p147 = scmp.eq.s32.totalorder %s21, 1
      %p148 = por %p146, %p147
      %p150 = scmp.ne.s32.totalorder %s133, %s149
      %p151 = scmp.eq.s32.totalorder %s21, 0
      %p152 = por %p150, %p151
      %s153 = ssub.s32 %s15, %s22
      %p154 = scmp.eq.s32.totalorder %s153, 0
      %s156 = sadd.s32 %s155, 1
      %s157 = scalar_select %p154, %s155, %s156
      %p160 = pneg %p154
      %p161 = scmp.eq.s32.totalorder %s15, 1
      %p162 = por %p160, %p161
      %p163 = scmp.ne.s32.totalorder %s155, %s158
      %p164 = scmp.eq.s32.totalorder %s15, 0
      %p165 = por %p163, %p164
      %p166 = scmp.ne.s32.totalorder %s155, %s158
      %p167 = scmp.eq.s32.totalorder %s20, 1
      %p168 = por %p166, %p167
      %p169 = scmp.ne.s32.totalorder %s158, %s159
      %p170 = scmp.eq.s32.totalorder %s20, 0
      %p171 = por %p169, %p170
      %p172 = scmp.ne.s32.totalorder %s158, %s159
      %p173 = scmp.eq.s32.totalorder %s21, 1
      %p174 = por %p172, %p173
      %p176 = scmp.ne.s32.totalorder %s159, %s175
      %p177 = scmp.eq.s32.totalorder %s21, 0
      %p178 = por %p176, %p177
      %p179 = scmp.le.s32.totalorder 1, %s15
      %p180 = scmp.lt.s32.totalorder %s15, 3
      %p181 = pnand %p179, %p180
      %p182 = pneg %p181
      // Predicated region
      $region9: #{transformer_forward.39} parent=5 // pred_check
        _
      $region10: #{transformer_forward.39} parent=5 // pred_check_branch
        %184 = sbr.rel (%p181) target = $region12
      $region11: #{transformer_forward.39} parent=5 // pred_region
        %s185 = ssub.s32 %s15, 1
      $region12: #{transformer_forward.39} parent=5 // pred_fallthru
        _
      %p186 = scmp.lt.s32.totalorder %s15, 2
      // Predicated region
      $region13: #{transformer_forward.39} parent=5 // pred_check
        %p187 = pneg %p186
      $region14: #{transformer_forward.39} parent=5 // pred_check_branch
        %189 = sbr.rel (%p187) target = $region16
      $region15: #{transformer_forward.39} parent=5 // pred_region
        // Predicated region
        $region17: #{transformer_forward.39} parent=15 // pred_check
          %p190 = pneg %p35
        $region18: #{transformer_forward.39} parent=15 // pred_check_branch
          %192 = sbr.rel (%p190) target = $region20
        $region19: #{transformer_forward.39} parent=15 // pred_region
          %p193 = scmp.lt.s32.totalorder %s15, 1
          %s194 = scalar_select %p193, %s15, 1
          %s195 = scalar_lea.vmem %s0, %s194
        $region20: #{transformer_forward.39} parent=15 // pred_fallthru
          _
        // Predicated region
        $region21: #{transformer_forward.39} parent=15 // pred_check
          %p196 = pneg %p61
        $region22: #{transformer_forward.39} parent=15 // pred_check_branch
          %198 = sbr.rel (%p196) target = $region24
        $region23: #{transformer_forward.39} parent=15 // pred_region
          %p199 = scmp.lt.s32.totalorder %s15, 1
          %s200 = scalar_select %p199, %s15, 1
          %s201 = smul.addr %s200, 4
          %s202 = smul.addr %s201, 4
          %s203 = scalar_lea.vmem %s1, %s202
        $region24: #{transformer_forward.39} parent=15 // pred_fallthru
          _
        // Predicated region
        $region25: #{transformer_forward.39} parent=15 // pred_check
          %p204 = pneg %p87
        $region26: #{transformer_forward.39} parent=15 // pred_check_branch
          %206 = sbr.rel (%p204) target = $region28
        $region27: #{transformer_forward.39} parent=15 // pred_region
          %p207 = scmp.lt.s32.totalorder %s15, 1
          %s208 = scalar_select %p207, %s15, 1
          %s209 = smul.addr %s208, 4
          %s210 = smul.addr %s209, 4
          %s211 = scalar_lea.vmem %s2, %s210
        $region28: #{transformer_forward.39} parent=15 // pred_fallthru
          _
        // Predicated region
        $region29: #{transformer_forward.39} parent=15 // pred_check
          %p212 = pneg %p113
        $region30: #{transformer_forward.39} parent=15 // pred_check_branch
          %214 = sbr.rel (%p212) target = $region32
        $region31: #{transformer_forward.39} parent=15 // pred_region
          %p215 = scmp.lt.s32.totalorder %s15, 1
          %s216 = scalar_select %p215, %s15, 1
          %s217 = smul.addr %s216, 4
          %s218 = smul.addr %s217, 4
          %s219 = scalar_lea.vmem %s3, %s218
        $region32: #{transformer_forward.39} parent=15 // pred_fallthru
          _
      $region16: #{transformer_forward.39} parent=5 // pred_fallthru
        _
      %p220 = scmp.le.s32.totalorder 1, %s15
      %p221 = scmp.lt.s32.totalorder %s15, 3
      %p222 = pnand %p220, %p221
      %p223 = pneg %p222
      // Predicated region
      $region33: #{transformer_forward.39} parent=5 // pred_check
        _
      $region34: #{transformer_forward.39} parent=5 // pred_check_branch
        %225 = sbr.rel (%p222) target = $region36
      $region35: #{transformer_forward.39} parent=5 // pred_region
        %s226 = ssub.s32 %s15, 1
        %p227 = scmp.lt.s32.totalorder %s20, 1
        %s228 = scalar_select %p227, %s20, 1
        %s229 = scalar_lea.vmem %s0, %s228
        %p230 = pneg %p41
        %p231 = pneg %p38
        %p232 = scmp.lt.s32.totalorder %s20, 1
        %s233 = scalar_select %p232, %s20, 1
        %s234 = smul.addr %s233, 4
        %s235 = smul.addr %s234, 4
        %s236 = scalar_lea.vmem %s1, %s235
        %p237 = pneg %p67
        %p238 = pneg %p64
        %p239 = scmp.lt.s32.totalorder %s20, 1
        %s240 = scalar_select %p239, %s20, 1
        %s241 = smul.addr %s240, 4
        %s242 = smul.addr %s241, 4
        %s243 = scalar_lea.vmem %s2, %s242
        %p244 = pneg %p93
        %p245 = pneg %p90
        %p246 = scmp.lt.s32.totalorder %s20, 1
        %s247 = scalar_select %p246, %s20, 1
        %s248 = smul.addr %s247, 4
        %s249 = smul.addr %s248, 4
        %s250 = scalar_lea.vmem %s3, %s249
        %p251 = pneg %p119
        %p252 = pneg %p116
        %p253 = pneg %p145
        %p254 = pneg %p142
        %p255 = scmp.lt.s32.totalorder %s20, 1
        %s256 = scalar_select %p255, %s20, 1
        %s257 = smul.addr %s256, 4
        %s258 = smul.addr %s257, 4
        %s259 = scalar_lea.vmem %s4, %s258
        %p260 = pneg %p171
        %p261 = pneg %p168
        %s262 = sand.u32 %s158, 1
        %s263 = scalar_lea.sflag [#allocation3], %s262
        %s264 = sand.u32 %s158, 1
        %s265 = smul.addr %s264, 32
        %s266 = scalar_lea.vmem [#allocation2], %s265
        %p267 = scmp.lt.s32.totalorder %s20, 1
        %s268 = scalar_select %p267, %s20, 1
        %s269 = scalar_lea.vmem %s0, %s268
        %p270 = scmp.lt.s32.totalorder %s20, 1
        %s271 = scalar_select %p270, %s20, 1
        %s272 = smul.addr %s271, 4
        %s273 = smul.addr %s272, 4
        %s274 = scalar_lea.vmem %s1, %s273
        %p275 = scmp.lt.s32.totalorder %s20, 1
        %s276 = scalar_select %p275, %s20, 1
        %s277 = smul.addr %s276, 4
        %s278 = smul.addr %s277, 4
        %s279 = scalar_lea.vmem %s2, %s278
        %p280 = scmp.lt.s32.totalorder %s20, 1
        %s281 = scalar_select %p280, %s20, 1
        %s282 = smul.addr %s281, 4
        %s283 = smul.addr %s282, 4
        %s284 = scalar_lea.vmem %s3, %s283
        %p285 = scmp.lt.s32.totalorder %s20, 1
        %s286 = scalar_select %p285, %s20, 1
        %s287 = smul.addr %s286, 4
        %s288 = smul.addr %s287, 4
        %s289 = scalar_lea.vmem %s4, %s288
        %v291 = vld [vmem:[%s274] sm:$0xf]
        %v292 = vld [vmem:[%s274 + $0x4] sm:$0xf]
        %v293 = vld [vmem:[%s274 + $0x8] sm:$0xf]
        %v294 = vld [vmem:[%s274 + $0xc] sm:$0xf]
        %v295 = vld [vmem:[%s279] sm:$0xf]
        %v296 = vld [vmem:[%s279 + $0x4] sm:$0xf]
        %v297 = vld [vmem:[%s279 + $0x8] sm:$0xf]
        %v298 = vld [vmem:[%s279 + $0xc] sm:$0xf]
        %v299 = vld [vmem:[%s284] sm:$0xf]
        %v300 = vld [vmem:[%s284 + $0x4] sm:$0xf]
        %v301 = vld [vmem:[%s284 + $0x8] sm:$0xf]
        %v302 = vld [vmem:[%s284 + $0xc] sm:$0xf]
        %vm303 = vcmask 64512
        %v305 = vsel %vm303, %v291, 0
        %v308 = vsel %vm303, %v295, 0
        %310 = vmatprep.subr.bf16.mxu0 0
        %311 = vmatpush1.bf16.xpose.msra.mxu0 %v308
        %312 = vmatprep.subr.bf16.mxu0 0
        %313 = vmatpush1.bf16.xpose.msra.mxu0 0
        %314 = vmatprep.subr.bf16.mxu0 0
        %315 = vmatpush1.bf16.xpose.msra.mxu0 0
        %316 = vmatprep.subr.bf16.mxu0 0
        %317 = vmatpush1.bf16.xpose.msra.mxu0 0
        %318 = vmatprep.subr.bf16.mxu0 0
        %319 = vmatpush1.bf16.xpose.msra.mxu0 0
        %320 = vmatprep.subr.bf16.mxu0 0
        %321 = vmatpush1.bf16.xpose.msra.mxu0 0
        %322 = vmatprep.subr.bf16.mxu0 0
        %323 = vmatpush1.bf16.xpose.msra.mxu0 0
        %324 = vmatprep.subr.bf16.mxu0 0
        %325 = vmatpush1.bf16.xpose.msra.mxu0 0
        %326 = vmatprep.subr.bf16.mxu0 0
        %327 = vmatpush1.bf16.xpose.msra.mxu0 0
        %328 = vmatprep.subr.bf16.mxu0 0
        %329 = vmatpush1.bf16.xpose.msra.mxu0 0
        %330 = vmatprep.subr.bf16.mxu0 0
        %331 = vmatpush1.bf16.xpose.msra.mxu0 0
        %332 = vmatprep.subr.bf16.mxu0 0
        %333 = vmatpush1.bf16.xpose.msra.mxu0 0
        %334 = vmatprep.subr.bf16.mxu0 0
        %335 = vmatpush1.bf16.xpose.msra.mxu0 0
        %336 = vmatprep.subr.bf16.mxu0 0
        %337 = vmatpush1.bf16.xpose.msra.mxu0 0
        %338 = vmatprep.subr.bf16.mxu0 0
        %339 = vmatpush1.bf16.xpose.msra.mxu0 0
        %340 = vmatprep.subr.bf16.mxu0 0
        %341 = vmatpush1.bf16.xpose.msra.mxu0 0
        %342 = vmatprep.mubr.bf16.mxu0 0
        %343 = vmatmul.mubr.bf16.gmra.mrb[0].mxu0 %v305
        %v344 = vpop.f32.mrb[0].mxu0
        %v345 = vadd.f32 0.0, %v344
        %v346 = vpop.f32.mrb[0].mxu0
        %v347 = vpop.f32.mrb[0].mxu0
        %v348 = vpop.f32.mrb[0].mxu0
        %349 = vdwg.mxu0
        %v351 = vsel %vm303, %v292, 0
        %v354 = vsel %vm303, %v296, 0
        %356 = vmatprep.subr.bf16.mxu0 0
        %357 = vmatpush1.bf16.xpose.msra.mxu0 %v354
        %358 = vmatprep.subr.bf16.mxu0 0
        %359 = vmatpush1.bf16.xpose.msra.mxu0 0
        %360 = vmatprep.subr.bf16.mxu0 0
        %361 = vmatpush1.bf16.xpose.msra.mxu0 0
        %362 = vmatprep.subr.bf16.mxu0 0
        %363 = vmatpush1.bf16.xpose.msra.mxu0 0
        %364 = vmatprep.subr.bf16.mxu0 0
        %365 = vmatpush1.bf16.xpose.msra.mxu0 0
        %366 = vmatprep.subr.bf16.mxu0 0
        %367 = vmatpush1.bf16.xpose.msra.mxu0 0
        %368 = vmatprep.subr.bf16.mxu0 0
        %369 = vmatpush1.bf16.xpose.msra.mxu0 0
        %370 = vmatprep.subr.bf16.mxu0 0
        %371 = vmatpush1.bf16.xpose.msra.mxu0 0
        %372 = vmatprep.subr.bf16.mxu0 0
        %373 = vmatpush1.bf16.xpose.msra.mxu0 0
        %374 = vmatprep.subr.bf16.mxu0 0
        %375 = vmatpush1.bf16.xpose.msra.mxu0 0
        %376 = vmatprep.subr.bf16.mxu0 0
        %377 = vmatpush1.bf16.xpose.msra.mxu0 0
        %378 = vmatprep.subr.bf16.mxu0 0
        %379 = vmatpush1.bf16.xpose.msra.mxu0 0
        %380 = vmatprep.subr.bf16.mxu0 0
        %381 = vmatpush1.bf16.xpose.msra.mxu0 0
        %382 = vmatprep.subr.bf16.mxu0 0
        %383 = vmatpush1.bf16.xpose.msra.mxu0 0
        %384 = vmatprep.subr.bf16.mxu0 0
        %385 = vmatpush1.bf16.xpose.msra.mxu0 0
        %386 = vmatprep.subr.bf16.mxu0 0
        %387 = vmatpush1.bf16.xpose.msra.mxu0 0
        %388 = vmatprep.mubr.bf16.mxu0 0
        %389 = vmatmul.mubr.bf16.gmra.mrb[0].mxu0 %v351
        %v390 = vpop.f32.mrb[0].mxu0
        %v391 = vadd.f32 0.0, %v390
        %v392 = vpop.f32.mrb[0].mxu0
        %v393 = vpop.f32.mrb[0].mxu0
        %v394 = vpop.f32.mrb[0].mxu0
        %395 = vdwg.mxu0
        %v397 = vsel %vm303, %v293, 0
        %v400 = vsel %vm303, %v297, 0
        %402 = vmatprep.subr.bf16.mxu0 0
        %403 = vmatpush1.bf16.xpose.msra.mxu0 %v400
        %404 = vmatprep.subr.bf16.mxu0 0
        %405 = vmatpush1.bf16.xpose.msra.mxu0 0
        %406 = vmatprep.subr.bf16.mxu0 0
        %407 = vmatpush1.bf16.xpose.msra.mxu0 0
        %408 = vmatprep.subr.bf16.mxu0 0
        %409 = vmatpush1.bf16.xpose.msra.mxu0 0
        %410 = vmatprep.subr.bf16.mxu0 0
        %411 = vmatpush1.bf16.xpose.msra.mxu0 0
        %412 = vmatprep.subr.bf16.mxu0 0
        %413 = vmatpush1.bf16.xpose.msra.mxu0 0
        %414 = vmatprep.subr.bf16.mxu0 0
        %415 = vmatpush1.bf16.xpose.msra.mxu0 0
        %416 = vmatprep.subr.bf16.mxu0 0
        %417 = vmatpush1.bf16.xpose.msra.mxu0 0
        %418 = vmatprep.subr.bf16.mxu0 0
        %419 = vmatpush1.bf16.xpose.msra.mxu0 0
        %420 = vmatprep.subr.bf16.mxu0 0
        %421 = vmatpush1.bf16.xpose.msra.mxu0 0
        %422 = vmatprep.subr.bf16.mxu0 0
        %423 = vmatpush1.bf16.xpose.msra.mxu0 0
        %424 = vmatprep.subr.bf16.mxu0 0
        %425 = vmatpush1.bf16.xpose.msra.mxu0 0
        %426 = vmatprep.subr.bf16.mxu0 0
        %427 = vmatpush1.bf16.xpose.msra.mxu0 0
        %428 = vmatprep.subr.bf16.mxu0 0
        %429 = vmatpush1.bf16.xpose.msra.mxu0 0
        %430 = vmatprep.subr.bf16.mxu0 0
        %431 = vmatpush1.bf16.xpose.msra.mxu0 0
        %432 = vmatprep.subr.bf16.mxu0 0
        %433 = vmatpush1.bf16.xpose.msra.mxu0 0
        %434 = vmatprep.mubr.bf16.mxu0 0
        %435 = vmatmul.mubr.bf16.gmra.mrb[0].mxu0 %v397
        %v436 = vpop.f32.mrb[0].mxu0
        %v437 = vadd.f32 0.0, %v436
        %v438 = vpop.f32.mrb[0].mxu0
        %v439 = vpop.f32.mrb[0].mxu0
        %v440 = vpop.f32.mrb[0].mxu0
        %441 = vdwg.mxu0
        %v443 = vsel %vm303, %v294, 0
        %v446 = vsel %vm303, %v298, 0
        %448 = vmatprep.subr.bf16.mxu0 0
        %449 = vmatpush1.bf16.xpose.msra.mxu0 %v446
        %450 = vmatprep.subr.bf16.mxu0 0
        %451 = vmatpush1.bf16.xpose.msra.mxu0 0
        %452 = vmatprep.subr.bf16.mxu0 0
        %453 = vmatpush1.bf16.xpose.msra.mxu0 0
        %454 = vmatprep.subr.bf16.mxu0 0
        %455 = vmatpush1.bf16.xpose.msra.mxu0 0
        %456 = vmatprep.subr.bf16.mxu0 0
        %457 = vmatpush1.bf16.xpose.msra.mxu0 0
        %458 = vmatprep.subr.bf16.mxu0 0
        %459 = vmatpush1.bf16.xpose.msra.mxu0 0
        %460 = vmatprep.subr.bf16.mxu0 0
        %461 = vmatpush1.bf16.xpose.msra.mxu0 0
        %462 = vmatprep.subr.bf16.mxu0 0
        %463 = vmatpush1.bf16.xpose.msra.mxu0 0
        %464 = vmatprep.subr.bf16.mxu0 0
        %465 = vmatpush1.bf16.xpose.msra.mxu0 0
        %466 = vmatprep.subr.bf16.mxu0 0
        %467 = vmatpush1.bf16.xpose.msra.mxu0 0
        %468 = vmatprep.subr.bf16.mxu0 0
        %469 = vmatpush1.bf16.xpose.msra.mxu0 0
        %470 = vmatprep.subr.bf16.mxu0 0
        %471 = vmatpush1.bf16.xpose.msra.mxu0 0
        %472 = vmatprep.subr.bf16.mxu0 0
        %473 = vmatpush1.bf16.xpose.msra.mxu0 0
        %474 = vmatprep.subr.bf16.mxu0 0
        %475 = vmatpush1.bf16.xpose.msra.mxu0 0
        %476 = vmatprep.subr.bf16.mxu0 0
        %477 = vmatpush1.bf16.xpose.msra.mxu0 0
        %478 = vmatprep.subr.bf16.mxu0 0
        %479 = vmatpush1.bf16.xpose.msra.mxu0 0
        %480 = vmatprep.mubr.bf16.mxu0 0
        %481 = vmatmul.mubr.bf16.gmra.mrb[0].mxu0 %v443
        %v482 = vpop.f32.mrb[0].mxu0
        %v483 = vadd.f32 0.0, %v482
        %v484 = vpop.f32.mrb[0].mxu0
        %v485 = vpop.f32.mrb[0].mxu0
        %v486 = vpop.f32.mrb[0].mxu0
        %487 = vdwg.mxu0
        %v488 = vmul.f32 %v345, 0.35355338
        %v489 = vmul.f32 %v391, 0.35355338
        %v490 = vmul.f32 %v437, 0.35355338
        %v491 = vmul.f32 %v483, 0.35355338
        %v492 = vld [vmem:[%s269] sm:$0x1]
        %vm493 = vcmp.eq.f32.partialorder %v492, 0.0
        %v494 = vsel %vm493, 1, 0
        %v495 = vlaneseq
        %v496 = vshrl.u32 %v495, 7
        %v497 = vsub.s32 0, %v496
        %v498 = vrot.slane %v494, %v497
        %vm499 = vcmp.eq.s32.totalorder %v498, 1
        %v500 = vsel %vm499, -1e+09, %v488
        %v501 = vsel %vm499, -1e+09, %v489
        %v502 = vsel %vm499, -1e+09, %v490
        %v503 = vsel %vm499, -1e+09, %v491
        %v504 = vlaneseq
        %v505 = vshrl.u32 %v504, 7
        %v506 = vlaneseq
        %v507 = vand.u32 %v506, 127
        %vm508 = vcmp.gt.s32.totalorder %v507, %v505
        %v509 = vsel %vm508, 1, 0
        %vm510 = vcmp.eq.s32.totalorder %v509, 1
        %v511 = vsel %vm510, -1e+09, %v500
        %v512 = vsel %vm510, -1e+09, %v501
        %v513 = vsel %vm510, -1e+09, %v502
        %v514 = vsel %vm510, -1e+09, %v503
        %v515 = vsel %vm303, %v511, -inf
        %516 = vmax.xlane.f32.xlu0 %v515
        %v517 = vpop.xlane.xlu0 %516
        %v518 = vsel %vm303, %v512, -inf
        %519 = vmax.xlane.f32.xlu0 %v518
        %v520 = vpop.xlane.xlu0 %519
        %v521 = vsel %vm303, %v513, -inf
        %522 = vmax.xlane.f32.xlu0 %v521
        %v523 = vpop.xlane.xlu0 %522
        %v524 = vsel %vm303, %v514, -inf
        %525 = vmax.xlane.f32.xlu0 %v524
        %v526 = vpop.xlane.xlu0 %525
        %v527 = vsub.f32 %v511, %v517
        %v528 = vsub.f32 %v512, %v520
        %v529 = vsub.f32 %v513, %v523
        %v530 = vsub.f32 %v514, %v526
        %v531 = vmul.f32 %v527, 1.442695
        %v532 = vpow.pop %v531
        %v533 = vmul.f32 %v528, 1.442695
        %v534 = vpow.pop %v533
        %v535 = vmul.f32 %v529, 1.442695
        %v536 = vpow.pop %v535
        %v537 = vmul.f32 %v530, 1.442695
        %v538 = vpow.pop %v537
        %v539 = vsel %vm303, %v532, 0.0
        %540 = vadd.xlane.f32.xlu0 %v539
        %v541 = vpop.xlane.xlu0 %540
        %v542 = vsel %vm303, %v534, 0.0
        %543 = vadd.xlane.f32.xlu0 %v542
        %v544 = vpop.xlane.xlu0 %543
        %v545 = vsel %vm303, %v536, 0.0
        %546 = vadd.xlane.f32.xlu0 %v545
        %v547 = vpop.xlane.xlu0 %546
        %v548 = vsel %vm303, %v538, 0.0
        %549 = vadd.xlane.f32.xlu0 %v548
        %v550 = vpop.xlane.xlu0 %549
        %v551 = vrcp.pop %v541
        %v552 = vmul.f32 %v532, %v551
        %v553 = vrcp.pop %v544
        %v554 = vmul.f32 %v534, %v553
        %v555 = vrcp.pop %v547
        %v556 = vmul.f32 %v536, %v555
        %v557 = vrcp.pop %v550
        %v558 = vmul.f32 %v538, %v557
        %559 = vst.msk [vmem:[%s266] sm:$0xff] %vm303, %v552
        %560 = vst.msk [vmem:[%s266 + $0x8] sm:$0xff] %vm303, %v554
        %561 = vst.msk [vmem:[%s266 + $0x10] sm:$0xff] %vm303, %v556
        %562 = vst.msk [vmem:[%s266 + $0x18] sm:$0xff] %vm303, %v558
        %v563 = vpack.c.bf16 %v552, %v552
        %v564 = vpack.c.bf16 %v554, %v554
        %v565 = vpack.c.bf16 %v556, %v556
        %v566 = vpack.c.bf16 %v558, %v558
        %v568 = vsel %vm303, %v563, 0
        %vm570 = vcmask 1043456
        %v572 = vsel %vm570, %v299, 0
        %574 = vmatprep.subr.bf16.mxu0 0
        %575 = vmatpush1.bf16.msra.mxu0 %v572
        %576 = vmatprep.subr.bf16.mxu0 0
        %577 = vmatpush1.bf16.msra.mxu0 0
        %578 = vmatprep.subr.bf16.mxu0 0
        %579 = vmatpush1.bf16.msra.mxu0 0
        %580 = vmatprep.subr.bf16.mxu0 0
        %581 = vmatpush1.bf16.msra.mxu0 0
        %582 = vmatprep.subr.bf16.mxu0 0
        %583 = vmatpush1.bf16.msra.mxu0 0
        %584 = vmatprep.subr.bf16.mxu0 0
        %585 = vmatpush1.bf16.msra.mxu0 0
        %586 = vmatprep.subr.bf16.mxu0 0
        %587 = vmatpush1.bf16.msra.mxu0 0
        %588 = vmatprep.subr.bf16.mxu0 0
        %589 = vmatpush1.bf16.msra.mxu0 0
        %590 = vmatprep.subr.bf16.mxu0 0
        %591 = vmatpush1.bf16.msra.mxu0 0
        %592 = vmatprep.subr.bf16.mxu0 0
        %593 = vmatpush1.bf16.msra.mxu0 0
        %594 = vmatprep.subr.bf16.mxu0 0
        %595 = vmatpush1.bf16.msra.mxu0 0
        %596 = vmatprep.subr.bf16.mxu0 0
        %597 = vmatpush1.bf16.msra.mxu0 0
        %598 = vmatprep.subr.bf16.mxu0 0
        %599 = vmatpush1.bf16.msra.mxu0 0
        %600 = vmatprep.subr.bf16.mxu0 0
        %601 = vmatpush1.bf16.msra.mxu0 0
        %602 = vmatprep.subr.bf16.mxu0 0
        %603 = vmatpush1.bf16.msra.mxu0 0
        %604 = vmatprep.subr.bf16.mxu0 0
        %605 = vmatpush1.bf16.msra.mxu0 0
        %606 = vmatprep.mubr.bf16.mxu0 0
        %607 = vmatmul.mubr.bf16.gmra.mrb[0].mxu0 %v568
        %v608 = vpop.f32.mrb[0].mxu0
        %v609 = vadd.f32 0.0, %v608
        %v610 = vpop.f32.mrb[0].mxu0
        %v611 = vpop.f32.mrb[0].mxu0
        %v612 = vpop.f32.mrb[0].mxu0
        %613 = vdwg.mxu0
        %v615 = vsel %vm303, %v564, 0
        %v618 = vsel %vm570, %v300, 0
        %620 = vmatprep.subr.bf16.mxu0 0
        %621 = vmatpush1.bf16.msra.mxu0 %v618
        %622 = vmatprep.subr.bf16.mxu0 0
        %623 = vmatpush1.bf16.msra.mxu0 0
        %624 = vmatprep.subr.bf16.mxu0 0
        %625 = vmatpush1.bf16.msra.mxu0 0
        %626 = vmatprep.subr.bf16.mxu0 0
        %627 = vmatpush1.bf16.msra.mxu0 0
        %628 = vmatprep.subr.bf16.mxu0 0
        %629 = vmatpush1.bf16.msra.mxu0 0
        %630 = vmatprep.subr.bf16.mxu0 0
        %631 = vmatpush1.bf16.msra.mxu0 0
        %632 = vmatprep.subr.bf16.mxu0 0
        %633 = vmatpush1.bf16.msra.mxu0 0
        %634 = vmatprep.subr.bf16.mxu0 0
        %635 = vmatpush1.bf16.msra.mxu0 0
        %636 = vmatprep.subr.bf16.mxu0 0
        %637 = vmatpush1.bf16.msra.mxu0 0
        %638 = vmatprep.subr.bf16.mxu0 0
        %639 = vmatpush1.bf16.msra.mxu0 0
        %640 = vmatprep.subr.bf16.mxu0 0
        %641 = vmatpush1.bf16.msra.mxu0 0
        %642 = vmatprep.subr.bf16.mxu0 0
        %643 = vmatpush1.bf16.msra.mxu0 0
        %644 = vmatprep.subr.bf16.mxu0 0
        %645 = vmatpush1.bf16.msra.mxu0 0
        %646 = vmatprep.subr.bf16.mxu0 0
        %647 = vmatpush1.bf16.msra.mxu0 0
        %648 = vmatprep.subr.bf16.mxu0 0
        %649 = vmatpush1.bf16.msra.mxu0 0
        %650 = vmatprep.subr.bf16.mxu0 0
        %651 = vmatpush1.bf16.msra.mxu0 0
        %652 = vmatprep.mubr.bf16.mxu0 0
        %653 = vmatmul.mubr.bf16.gmra.mrb[0].mxu0 %v615
        %v654 = vpop.f32.mrb[0].mxu0
        %v655 = vadd.f32 0.0, %v654
        %v656 = vpop.f32.mrb[0].mxu0
        %v657 = vpop.f32.mrb[0].mxu0
        %v658 = vpop.f32.mrb[0].mxu0
        %659 = vdwg.mxu0
        %v661 = vsel %vm303, %v565, 0
        %v664 = vsel %vm570, %v301, 0
        %666 = vmatprep.subr.bf16.mxu0 0
        %667 = vmatpush1.bf16.msra.mxu0 %v664
        %668 = vmatprep.subr.bf16.mxu0 0
        %669 = vmatpush1.bf16.msra.mxu0 0
        %670 = vmatprep.subr.bf16.mxu0 0
        %671 = vmatpush1.bf16.msra.mxu0 0
        %672 = vmatprep.subr.bf16.mxu0 0
        %673 = vmatpush1.bf16.msra.mxu0 0
        %674 = vmatprep.subr.bf16.mxu0 0
        %675 = vmatpush1.bf16.msra.mxu0 0
        %676 = vmatprep.subr.bf16.mxu0 0
        %677 = vmatpush1.bf16.msra.mxu0 0
        %678 = vmatprep.subr.bf16.mxu0 0
        %679 = vmatpush1.bf16.msra.mxu0 0
        %680 = vmatprep.subr.bf16.mxu0 0
        %681 = vmatpush1.bf16.msra.mxu0 0
        %682 = vmatprep.subr.bf16.mxu0 0
        %683 = vmatpush1.bf16.msra.mxu0 0
        %684 = vmatprep.subr.bf16.mxu0 0
        %685 = vmatpush1.bf16.msra.mxu0 0
        %686 = vmatprep.subr.bf16.mxu0 0
        %687 = vmatpush1.bf16.msra.mxu0 0
        %688 = vmatprep.subr.bf16.mxu0 0
        %689 = vmatpush1.bf16.msra.mxu0 0
        %690 = vmatprep.subr.bf16.mxu0 0
        %691 = vmatpush1.bf16.msra.mxu0 0
        %692 = vmatprep.subr.bf16.mxu0 0
        %693 = vmatpush1.bf16.msra.mxu0 0
        %694 = vmatprep.subr.bf16.mxu0 0
        %695 = vmatpush1.bf16.msra.mxu0 0
        %696 = vmatprep.subr.bf16.mxu0 0
        %697 = vmatpush1.bf16.msra.mxu0 0
        %698 = vmatprep.mubr.bf16.mxu0 0
        %699 = vmatmul.mubr.bf16.gmra.mrb[0].mxu0 %v661
        %v700 = vpop.f32.mrb[0].mxu0
        %v701 = vadd.f32 0.0, %v700
        %v702 = vpop.f32.mrb[0].mxu0
        %v703 = vpop.f32.mrb[0].mxu0
        %v704 = vpop.f32.mrb[0].mxu0
        %705 = vdwg.mxu0
        %v707 = vsel %vm303, %v566, 0
        %v710 = vsel %vm570, %v302, 0
        %712 = vmatprep.subr.bf16.mxu0 0
        %713 = vmatpush1.bf16.msra.mxu0 %v710
        %714 = vmatprep.subr.bf16.mxu0 0
        %715 = vmatpush1.bf16.msra.mxu0 0
        %716 = vmatprep.subr.bf16.mxu0 0
        %717 = vmatpush1.bf16.msra.mxu0 0
        %718 = vmatprep.subr.bf16.mxu0 0
        %719 = vmatpush1.bf16.msra.mxu0 0
        %720 = vmatprep.subr.bf16.mxu0 0
        %721 = vmatpush1.bf16.msra.mxu0 0
        %722 = vmatprep.subr.bf16.mxu0 0
        %723 = vmatpush1.bf16.msra.mxu0 0
        %724 = vmatprep.subr.bf16.mxu0 0
        %725 = vmatpush1.bf16.msra.mxu0 0
        %726 = vmatprep.subr.bf16.mxu0 0
        %727 = vmatpush1.bf16.msra.mxu0 0
        %728 = vmatprep.subr.bf16.mxu0 0
        %729 = vmatpush1.bf16.msra.mxu0 0
        %730 = vmatprep.subr.bf16.mxu0 0
        %731 = vmatpush1.bf16.msra.mxu0 0
        %732 = vmatprep.subr.bf16.mxu0 0
        %733 = vmatpush1.bf16.msra.mxu0 0
        %734 = vmatprep.subr.bf16.mxu0 0
        %735 = vmatpush1.bf16.msra.mxu0 0
        %736 = vmatprep.subr.bf16.mxu0 0
        %737 = vmatpush1.bf16.msra.mxu0 0
        %738 = vmatprep.subr.bf16.mxu0 0
        %739 = vmatpush1.bf16.msra.mxu0 0
        %740 = vmatprep.subr.bf16.mxu0 0
        %741 = vmatpush1.bf16.msra.mxu0 0
        %742 = vmatprep.subr.bf16.mxu0 0
        %743 = vmatpush1.bf16.msra.mxu0 0
        %744 = vmatprep.mubr.bf16.mxu0 0
        %745 = vmatmul.mubr.bf16.gmra.mrb[0].mxu0 %v707
        %v746 = vpop.f32.mrb[0].mxu0
        %v747 = vadd.f32 0.0, %v746
        %v748 = vpop.f32.mrb[0].mxu0
        %v749 = vpop.f32.mrb[0].mxu0
        %v750 = vpop.f32.mrb[0].mxu0
        %751 = vdwg.mxu0
        %v752 = vpack.c.bf16 %v609, %v609
        %v753 = vpack.c.bf16 %v655, %v655
        %v754 = vpack.c.bf16 %v701, %v701
        %v755 = vpack.c.bf16 %v747, %v747
        %vm756 = vcmask 60416
        %757 = vst.msk [vmem:[%s289] sm:$0xf] %vm756, %v752
        %758 = vst.msk [vmem:[%s289 + $0x4] sm:$0xf] %vm756, %v753
        %759 = vst.msk [vmem:[%s289 + $0x8] sm:$0xf] %vm756, %v754
        %760 = vst.msk [vmem:[%s289 + $0xc] sm:$0xf] %vm756, %v755
        %p761 = scmp.lt.s32.totalorder %s20, 1
        %s762 = scalar_select %p761, %s20, 1
        %s763 = smul.addr %s762, 4
        %s764 = smul.addr %s763, 4
        %s765 = scalar_lea.vmem %s4, %s764
        %s766 = sand.u32 %s158, 1
        %s767 = scalar_lea.sflag [#allocation3], %s766
        %s768 = sand.u32 %s158, 1
        %s769 = smul.addr %s768, 32
        %s770 = scalar_lea.vmem [#allocation2], %s769
        // Predicated region
        $region37: #{transformer_forward.39} parent=35 // pred_check
          %p771 = pneg %p142
        $region38: #{transformer_forward.39} parent=35 // pred_check_branch
          %773 = sbr.rel (%p771) target = $region40
        $region39: #{transformer_forward.39} parent=35 // pred_region
          _
        $region40: #{transformer_forward.39} parent=35 // pred_fallthru
          _
        // Predicated region
        $region41: #{transformer_forward.39} parent=35 // pred_check
          %p774 = pneg %p168
        $region42: #{transformer_forward.39} parent=35 // pred_check_branch
          %776 = sbr.rel (%p774) target = $region44
        $region43: #{transformer_forward.39} parent=35 // pred_region
          %s778 = ssub.s32 512, 512
          %779 = vsyncadd %s767, %s778
          %s780 = smul.addr %s20, 4
          %s781 = smul.addr %s780, 128
          %s782 = scalar_lea.hbm %s5, %s781
          %s783 = sshll.u32 %s770, 4
          %s784 = int_to_ptr.vmem [resolvable:$true] %s783
          %789 = dma.vmem_to_hbm [thread:$0]  %s784, 512, %s782, %s767, 128, 128, 8
        $region44: #{transformer_forward.39} parent=35 // pred_fallthru
          _
      $region36: #{transformer_forward.39} parent=5 // pred_fallthru
        _
      %p790 = scmp.le.s32.totalorder 2, %s15
      // Predicated region
      $region45: #{transformer_forward.39} parent=5 // pred_check
        %p791 = pneg %p790
      $region46: #{transformer_forward.39} parent=5 // pred_check_branch
        %793 = sbr.rel (%p791) target = $region48
      $region47: #{transformer_forward.39} parent=5 // pred_region
        %s794 = ssub.s32 %s15, 2
        // Predicated region
        $region49: #{transformer_forward.39} parent=47 // pred_check
          %p795 = pneg %p148
        $region50: #{transformer_forward.39} parent=47 // pred_check_branch
          %797 = sbr.rel (%p795) target = $region52
        $region51: #{transformer_forward.39} parent=47 // pred_region
          %p798 = scmp.lt.s32.totalorder %s21, 1
          %s799 = scalar_select %p798, %s21, 1
          %s800 = smul.addr %s799, 4
          %s801 = smul.addr %s800, 4
          %s802 = scalar_lea.vmem %s4, %s801
        $region52: #{transformer_forward.39} parent=47 // pred_fallthru
          _
        // Predicated region
        $region53: #{transformer_forward.39} parent=47 // pred_check
          %p803 = pneg %p174
        $region54: #{transformer_forward.39} parent=47 // pred_check_branch
          %805 = sbr.rel (%p803) target = $region56
        $region55: #{transformer_forward.39} parent=47 // pred_region
          %s806 = sand.u32 %s159, 1
          %s807 = scalar_lea.sflag [#allocation3], %s806
          %s808 = sand.u32 %s159, 1
          %s809 = smul.addr %s808, 32
          %s810 = scalar_lea.vmem [#allocation2], %s809
          %811 = dma.done %s807, 512
        $region56: #{transformer_forward.39} parent=47 // pred_fallthru
          _
      $region48: #{transformer_forward.39} parent=5 // pred_fallthru
        _
    $region6: #{transformer_forward.39} parent=1 // loop_footer
      %s19 = sadd.s32 1, %s15
    $region7: #{transformer_forward.39} parent=1 // loop_footer_branch
      %14 = sbr.rel target = $region3
    $region8: #{transformer_forward.39} parent=1 // loop_exit
      _
    %812 = vsyncpa [#allocation3], 1
    %s813 = scalar_lea.sflag [#allocation3], 1
    %814 = vsyncpa %s813, 1

// kernel: transformer_forward.41
$region0: #{transformer_forward.41}
  #allocation0 [shape = 'u32[]', space=smem, size = 0x4, offset = 0x4, fixed_abs, tag = 'smem constant byte address 0x4 - core index']
  #allocation1 [shape = 'u32[144,128]{1,0:T(1,128)}', space=vmem, size = 0x12000, scoped, tag = 'internal scratch']
  #allocation2 [shape = 'f32[16,32]{1,0:T(8,128)}', space=vmem, size = 0x2000, scoped, tag = 'scratch operand']
  %s0 = inlined_call_operand.vmem [shape: bf16[16,32], index: 0, kind: input, shape index: {}]
  %s1 = inlined_call_operand.vmem [shape: bf16[32,32], index: 1, kind: input, shape index: {}]
  %s2 = inlined_call_operand.vmem [shape: f32[1,32], index: 2, kind: input, shape index: {}]
  %s3 = inlined_call_operand.vmem [shape: bf16[16,32], index: 3, kind: output, shape index: {}]
  %s4 = sld [smem:[#allocation0]]
  $region30: #{transformer_forward.41} parent=0
    _
  %s6 = ssub.s32 1, %s4
  %s7 = scalar_select 0, %s6, %s4
  // Predicated region
  $region2: #{transformer_forward.41} parent=0 // pred_check
    _
  $region3: #{transformer_forward.41} parent=0 // pred_check_branch
    %9 = sbr.rel (0) target = $region5
  $region4: #{transformer_forward.41} parent=0 // pred_region
    _
  $region5: #{transformer_forward.41} parent=0 // pred_fallthru
    _
  // Predicated region
  $region6: #{transformer_forward.41} parent=0 // pred_check
    _
  $region7: #{transformer_forward.41} parent=0 // pred_check_branch
    %11 = sbr.rel (0) target = $region9
  $region8: #{transformer_forward.41} parent=0 // pred_region
    _
  $region9: #{transformer_forward.41} parent=0 // pred_fallthru
    _
  // Predicated region
  $region10: #{transformer_forward.41} parent=0 // pred_check
    _
  $region11: #{transformer_forward.41} parent=0 // pred_check_branch
    %13 = sbr.rel (0) target = $region13
  $region12: #{transformer_forward.41} parent=0 // pred_region
    _
  $region13: #{transformer_forward.41} parent=0 // pred_fallthru
    _
  %p15 = scmp.eq.s32.totalorder 0, 0
  // Predicated region
  $region14: #{transformer_forward.41} parent=0 // pred_check
    %p16 = pneg %p15
  $region15: #{transformer_forward.41} parent=0 // pred_check_branch
    %18 = sbr.rel (%p16) target = $region17
  $region16: #{transformer_forward.41} parent=0 // pred_region
    %vm19 = vcmask 261120
    %20 = vst.msk [vmem:[#allocation2] sm:$0xff] %vm19, 0.0
    %21 = vst.msk [vmem:[#allocation2 + $0x8] sm:$0xff] %vm19, 0.0
  $region17: #{transformer_forward.41} parent=0 // pred_fallthru
    _
  %v22 = vld [vmem:[#allocation2] sm:$0xff]
  %v23 = vld [vmem:[#allocation2 + $0x8] sm:$0xff]
  %v24 = vld [vmem:[%s0] sm:$0xf]
  %v25 = vld [vmem:[%s0 + $0x4] sm:$0xf]
  %v26 = vld [vmem:[%s1] sm:$0xf]
  %v27 = vld [vmem:[%s1 + $0x4] sm:$0xf]
  %v28 = vld [vmem:[%s1 + $0x8] sm:$0xf]
  %v29 = vld [vmem:[%s1 + $0xc] sm:$0xf]
  %v32 = vunpack.c.l.b16 %v24
  %v33 = vunpack.c.l.b16 %v25
  %v34 = vpack.c.b16 %v33, %v32
  %v39 = vunpack.c.l.b16 %v26
  %v40 = vunpack.c.l.b16 %v27
  %v41 = vunpack.c.l.b16 %v28
  %v42 = vunpack.c.l.b16 %v29
  %v43 = vpack.c.b16 %v40, %v39
  %v44 = vpack.c.b16 %v42, %v41
  %vm47 = vcmask 261120
  %v49 = vsel %vm47, %v34, 0
  %51 = vmatprep.subr.bf16.mxu0 0
  %52 = vmatpush1.bf16.msra.mxu0 %v43
  %53 = vmatprep.subr.bf16.mxu0 0
  %54 = vmatpush1.bf16.msra.mxu0 %v44
  %55 = vmatprep.subr.bf16.mxu0 0
  %56 = vmatpush1.bf16.msra.mxu0 0
  %57 = vmatprep.subr.bf16.mxu0 0
  %58 = vmatpush1.bf16.msra.mxu0 0
  %59 = vmatprep.subr.bf16.mxu0 0
  %60 = vmatpush1.bf16.msra.mxu0 0
  %61 = vmatprep.subr.bf16.mxu0 0
  %62 = vmatpush1.bf16.msra.mxu0 0
  %63 = vmatprep.subr.bf16.mxu0 0
  %64 = vmatpush1.bf16.msra.mxu0 0
  %65 = vmatprep.subr.bf16.mxu0 0
  %66 = vmatpush1.bf16.msra.mxu0 0
  %67 = vmatprep.subr.bf16.mxu0 0
  %68 = vmatpush1.bf16.msra.mxu0 0
  %69 = vmatprep.subr.bf16.mxu0 0
  %70 = vmatpush1.bf16.msra.mxu0 0
  %71 = vmatprep.subr.bf16.mxu0 0
  %72 = vmatpush1.bf16.msra.mxu0 0
  %73 = vmatprep.subr.bf16.mxu0 0
  %74 = vmatpush1.bf16.msra.mxu0 0
  %75 = vmatprep.subr.bf16.mxu0 0
  %76 = vmatpush1.bf16.msra.mxu0 0
  %77 = vmatprep.subr.bf16.mxu0 0
  %78 = vmatpush1.bf16.msra.mxu0 0
  %79 = vmatprep.subr.bf16.mxu0 0
  %80 = vmatpush1.bf16.msra.mxu0 0
  %81 = vmatprep.subr.bf16.mxu0 0
  %82 = vmatpush1.bf16.msra.mxu0 0
  %83 = vmatprep.mubr.bf16.mxu0 0
  %84 = vmatmul.mubr.bf16.gmra.mrb[0].mxu0 %v49
  %v85 = vpop.f32.mrb[0].mxu0
  %v86 = vadd.f32 0.0, %v85
  %v87 = vpop.f32.mrb[0].mxu0
  %v88 = vpop.f32.mrb[0].mxu0
  %v89 = vadd.f32 0.0, %v88
  %v90 = vpop.f32.mrb[0].mxu0
  %91 = vdwg.mxu0
  %v92 = vadd.f32 %v22, %v86
  %v93 = vadd.f32 %v23, %v89
  %94 = vst.msk [vmem:[#allocation2] sm:$0xff] %vm47, %v92
  %95 = vst.msk [vmem:[#allocation2 + $0x8] sm:$0xff] %vm47, %v93
  // Predicated region
  $region18: #{transformer_forward.41} parent=0 // pred_check
    %p96 = pneg %p15
  $region19: #{transformer_forward.41} parent=0 // pred_check_branch
    %98 = sbr.rel (%p96) target = $region21
  $region20: #{transformer_forward.41} parent=0 // pred_region
    %v99 = vld [vmem:[#allocation2] sm:$0xff]
    %v100 = vld [vmem:[#allocation2 + $0x8] sm:$0xff]
    %v101 = vld [vmem:[%s2] sm:$0x1]
    %v103 = vlaneseq
    %v104 = vshrl.u32 %v103, 7
    %v105 = vsub.s32 0, %v104
    %v106 = vrot.slane %v101, %v105
    %v108 = vadd.f32 %v99, %v106
    %v109 = vadd.f32 %v100, %v106
    %v110 = vpack.c.bf16 %v109, %v108
    %v112 = vunpack.c.l.b16 %v110
    %v113 = vunpack.c.h.b16 %v110
    %v114 = vpack.c.b16 %v112, %v112
    %v115 = vpack.c.b16 %v113, %v113
    %vm118 = vcmask 257024
    %119 = vst.msk [vmem:[%s3] sm:$0xf] %vm118, %v114
    %120 = vst.msk [vmem:[%s3 + $0x4] sm:$0xf] %vm118, %v115
  $region21: #{transformer_forward.41} parent=0 // pred_fallthru
    _
  // Predicated region
  $region22: #{transformer_forward.41} parent=0 // pred_check
    _
  $region23: #{transformer_forward.41} parent=0 // pred_check_branch
    %122 = sbr.rel (0) target = $region25
  $region24: #{transformer_forward.41} parent=0 // pred_region
    _
  $region25: #{transformer_forward.41} parent=0 // pred_fallthru
    _
  // Predicated region
  $region26: #{transformer_forward.41} parent=0 // pred_check
    _
  $region27: #{transformer_forward.41} parent=0 // pred_check_branch
    %124 = sbr.rel (0) target = $region29
  $region28: #{transformer_forward.41} parent=0 // pred_region
    _
  $region29: #{transformer_forward.41} parent=0 // pred_fallthru
    _

</llo_original>
